<compile_context>
chip_gen: v5e
topology: v5e:2x2
jax: 0.10.0
libtpu: 0.0.40
codegen_flags: <defaults>
</compile_context>

<pallas_src>
import functools

import jax
import jax.numpy as jnp
from jax import lax
from jax.experimental import pallas as pl
from jax.experimental.pallas import tpu as pltpu

EPS = 1e-5
K = 3  # kernel size


def _conv_in_relu(pad_ref, is_first, is_last, x, w_ref, H, W):
    """relu(instance_norm(conv3x3(replication_pad(x)))) for one image.

    x:       (H*W, C) f32 value (rows = flattened H*W, channels on the lane axis).
    pad_ref: ((H+4)*W, C) f32 VMEM scratch (1 guard + 1 pad row on each side of H).
    w_ref:   (9, C, C) packed weights, (kh*3+kw, ci, co), in the matmul dtype.
    Returns  (H*W, C) f32.
    """
    HW = H * W
    C = x.shape[-1]
    mdt = w_ref.dtype  # matmul operand dtype (bf16 for lane-dense dims, else f32)

    # --- replication pad in H only; every store starts at a multiple of W rows.
    top = x[0:W]
    bot = x[HW - W:HW]
    pad_ref[pl.ds(0, W), :] = top                    # guard row (never used unmasked)
    pad_ref[pl.ds(W, W), :] = top                    # top replication row
    pad_ref[pl.ds(2 * W, HW), :] = x                 # interior
    pad_ref[pl.ds((H + 2) * W, W), :] = bot          # bottom replication row
    pad_ref[pl.ds((H + 3) * W, W), :] = bot          # guard row

    # --- 3x3 conv as 9 accumulated matmuls over shifted views of the slab.
    # Output position r = i*W + j, tap (kh, kw) reads flat index
    # r + (kh+1)*W + (kw-1); kw = 0/2 wrap into the neighbouring row at the
    # image border, which the jnp.where fix-up replaces with the replicated
    # (clamped) value == the centre tap at that position.
    acc = jnp.zeros((HW, C), jnp.float32)
    for kh in range(K):
        base = (kh + 1) * W
        center = pad_ref[pl.ds(base, HW), :]         # aligned load
        left = pad_ref[pl.ds(base - 1, HW), :]       # -1 row: rotate-on-load (XLU)
        right = pad_ref[pl.ds(base + 1, HW), :]      # +1 row: rotate-on-load (XLU)
        taps = (
            jnp.where(is_first, center, left),       # kw = 0, clamp at column 0
            center,                                  # kw = 1
            jnp.where(is_last, center, right),       # kw = 2, clamp at column W-1
        )
        for kw in range(K):
            acc = acc + jnp.dot(
                taps[kw].astype(mdt), w_ref[kh * K + kw],
                preferred_element_type=jnp.float32)

    # --- InstanceNorm (biased variance, per channel over space), then ReLU.
    inv_n = 1.0 / HW
    mean = jnp.sum(acc, axis=0, keepdims=True) * inv_n          # (1, C)
    centered = acc - mean
    var = jnp.sum(centered * centered, axis=0, keepdims=True) * inv_n
    y = centered * lax.rsqrt(var + EPS)
    return jnp.maximum(y, 0.0)


def _fused_kernel(x_ref, w1_ref, w2_ref, o_ref, pad_ref, *, H, W):
    """One batch image: out = x + relu(IN(conv2(pad(relu(IN(conv1(pad(x)))))))."""
    HW = H * W
    col = lax.broadcasted_iota(jnp.int32, (HW, 1), 0) % W
    is_first = col == 0
    is_last = col == W - 1

    x = x_ref[0]                                                 # (HW, C) f32
    h1 = _conv_in_relu(pad_ref, is_first, is_last, x, w1_ref, H, W)
    h2 = _conv_in_relu(pad_ref, is_first, is_last, h1, w2_ref, H, W)
    o_ref[0] = x + h2


@functools.partial(jax.jit, static_argnames=("matmul_dtype",))
def residual_conv_block(x_nchw, w1, b1, w2, b2, matmul_dtype=None):
    """x_nchw: (N, C, H, W).  w*: (C, C, 3, 3) PyTorch OIHW.  b*: (C,) (cancel, unused)."""
    N, C, H, W = x_nchw.shape
    HW = H * W
    if matmul_dtype is None:
        # bf16 MXU inputs where the matmul matters (lane-dense dims);
        # exact f32 for tiny, memory-bound dims.
        matmul_dtype = jnp.bfloat16 if C >= 128 else jnp.float32
    matmul_dtype = jnp.dtype(matmul_dtype)

    # b1/b2 are accepted to mirror the module parameters, but a per-channel bias
    # added before a non-affine InstanceNorm is exactly removed by the mean
    # subtraction, so they are intentionally not used.
    del b1, b2

    # NCHW -> NHWC (channels on the lane axis), flatten spatial dims.
    # TODO(synk): accept/produce NHWC upstream to drop these two HBM passes.
    x = jnp.transpose(x_nchw, (0, 2, 3, 1)).astype(jnp.float32).reshape(N, HW, C)

    def pack_w(w):
        # OIHW (co, ci, kh, kw) -> (kh*3+kw, ci, co) in the matmul dtype.
        return jnp.transpose(w, (2, 3, 1, 0)).reshape(K * K, C, C).astype(matmul_dtype)

    w1p, w2p = pack_w(w1), pack_w(w2)

    # VMEM budget: in/out blocks double-buffered, weights single-buffered,
    # pad scratch, plus headroom for the f32 accumulator / stage intermediates.
    f32b = 4
    msz = matmul_dtype.itemsize
    xblk = HW * C * f32b
    wbytes = 2 * K * K * C * C * msz
    padbytes = (H + 4) * W * C * f32b
    needed = 4 * xblk + wbytes + padbytes + 6 * xblk
    vmem_limit = int(min(max(needed, 32 * 1024 * 1024), 120 * 1024 * 1024))

    flops = int(2 * 2 * N * HW * (K * K * C) * C)                  # two conv stages
    bytes_accessed = int(f32b * 2 * N * HW * C + msz * 2 * K * K * C * C)

    out = pl.pallas_call(
        functools.partial(_fused_kernel, H=H, W=W),
        out_shape=jax.ShapeDtypeStruct((N, HW, C), jnp.float32),
        grid_spec=pltpu.PrefetchScalarGridSpec(
            num_scalar_prefetch=0,
            grid=(N,),
            in_specs=[
                pl.BlockSpec((1, HW, C), lambda n: (n, 0, 0)),                  # x
                pl.BlockSpec((K * K, C, C), lambda n: (0, 0, 0),
                             pipeline_mode=pl.Buffered(1)),                     # w1 (resident)
                pl.BlockSpec((K * K, C, C), lambda n: (0, 0, 0),
                             pipeline_mode=pl.Buffered(1)),                     # w2 (resident)
            ],
            out_specs=pl.BlockSpec((1, HW, C), lambda n: (n, 0, 0)),
            scratch_shapes=[pltpu.VMEM(((H + 4) * W, C), jnp.float32)],
        ),
        input_output_aliases={0: 0},   # donate the NHWC x slab to the output
        compiler_params=pltpu.CompilerParams(
            dimension_semantics=("parallel",),
            vmem_limit_bytes=vmem_limit),
        cost_estimate=pl.CostEstimate(
            flops=flops, transcendentals=2 * N * C, bytes_accessed=bytes_accessed),
    )(x, w1p, w2p)

    out = out.reshape(N, H, W, C)
    return jnp.transpose(out, (0, 3, 1, 2))          # back to NCHW


def _ref_forward(x_nchw, w1, b1, w2, b2, conv_dtype=jnp.float32):
    """Pure-JAX reference matching the PyTorch module (NCHW, bias included)."""
    def stage(x, w, b):
        xp = jnp.pad(x, ((0, 0), (0, 0), (1, 1), (1, 1)), mode="edge")
        y = lax.conv_general_dilated(
            xp.astype(conv_dtype), w.astype(conv_dtype),
            window_strides=(1, 1), padding="VALID",
            dimension_numbers=("NCHW", "OIHW", "NCHW"),
            preferred_element_type=jnp.float32)
        y = y + b[None, :, None, None].astype(jnp.float32)
        mean = jnp.mean(y, axis=(2, 3), keepdims=True)
        var = jnp.mean((y - mean) ** 2, axis=(2, 3), keepdims=True)
        return jnp.maximum((y - mean) / jnp.sqrt(var + EPS), 0.0)
    return x_nchw + stage(stage(x_nchw, w1, b1), w2, b2)


if __name__ == "__main__":
    key = jax.random.PRNGKey(0)
    kx, kw1, kb1, kw2, kb2 = jax.random.split(key, 5)

    # --- Test 1: module-scale shapes (dim=4) -> exact f32 matmul path.
    N, C, H, W = 2, 4, 16, 16
    x = jax.random.normal(kx, (N, C, H, W), dtype=jnp.float32)
    w1 = 0.1 * jax.random.normal(kw1, (C, C, K, K), dtype=jnp.float32)
    b1 = 0.1 * jax.random.normal(kb1, (C,), dtype=jnp.float32)
    w2 = 0.1 * jax.random.normal(kw2, (C, C, K, K), dtype=jnp.float32)
    b2 = 0.1 * jax.random.normal(kb2, (C,), dtype=jnp.float32)

    out = jax.block_until_ready(residual_conv_block(x, w1, b1, w2, b2))
    ref = jax.block_until_ready(_ref_forward(x, w1, b1, w2, b2))
    assert out.shape == (N, C, H, W)
    assert jnp.allclose(out, ref, rtol=1e-4, atol=1e-4), \
        float(jnp.max(jnp.abs(out - ref)))

    # --- Test 2: lane-dense channel count (dim=128) -> bf16 MXU path.
    # Compared against a reference that also feeds bf16 conv operands
    # (f32 accumulation); tolerance covers 1-ulp bf16 re-rounding of the
    # stage-1 activations between the two implementations.
    N2, C2 = 2, 128
    k2 = jax.random.split(key, 5)
    x2 = jax.random.normal(k2[0], (N2, C2, H, W), dtype=jnp.float32)
    w1b = 0.05 * jax.random.normal(k2[1], (C2, C2, K, K), dtype=jnp.float32)
    b1b = 0.05 * jax.random.normal(k2[2], (C2,), dtype=jnp.float32)
    w2b = 0.05 * jax.random.normal(k2[3], (C2, C2, K, K), dtype=jnp.float32)
    b2b = 0.05 * jax.random.normal(k2[4], (C2,), dtype=jnp.float32)

    out2 = jax.block_until_ready(residual_conv_block(x2, w1b, b1b, w2b, b2b))
    ref2 = jax.block_until_ready(
        _ref_forward(x2, w1b, b1b, w2b, b2b, conv_dtype=jnp.bfloat16))
    assert out2.shape == (N2, C2, H, W)
    assert jnp.allclose(out2, ref2, rtol=1e-2, atol=1e-2), \
        float(jnp.max(jnp.abs(out2 - ref2)))

    print("KERNEL_OK")
</pallas_src>

<mosaic_0001>
module attributes {stable_mosaic.version = 11 : i64} {
  func.func @_fused_kernel(%arg0: i32, %arg1: memref<1x256x4xf32, #tpu.memory_space<vmem>>, %arg2: memref<9x4x4xf32, #tpu.memory_space<vmem>>, %arg3: memref<9x4x4xf32, #tpu.memory_space<vmem>>, %arg4: memref<1x256x4xf32, #tpu.memory_space<vmem>>, %arg5: memref<320x4xf32, #tpu.memory_space<vmem>>) attributes {dimension_semantics = [#tpu.dimension_semantics<parallel>], iteration_bounds = array<i64: 2>, scalar_prefetch = 0 : i64, scratch_operands = 1 : i64, tpu.core_type = #tpu.core_type<tc>, window_params = [{transform_indices = @transform_0, window_bounds = array<i64: 1, 256, 4>}, {pipeline_mode = #tpu.pipeline_mode<synchronous>, transform_indices = @transform_1, window_bounds = array<i64: 9, 4, 4>}, {pipeline_mode = #tpu.pipeline_mode<synchronous>, transform_indices = @transform_2, window_bounds = array<i64: 9, 4, 4>}, {transform_indices = @transform_3, window_bounds = array<i64: 1, 256, 4>}]} {
    %0 = tpu.iota {dimensions = array<i32: 0>} : vector<256x1xi32>
    %c16_i32 = arith.constant 16 : i32
    %c0_i32 = arith.constant 0 : i32
    %1 = arith.cmpi eq, %c16_i32, %c0_i32 : i32
    %c1_i32 = arith.constant 1 : i32
    %2 = arith.select %1, %c1_i32, %c16_i32 : i32
    %3 = vector.broadcast %2 : i32 to vector<256x1xi32>
    %4 = arith.remsi %0, %3 : vector<256x1xi32>
    %c0_i32_0 = arith.constant 0 : i32
    %5 = vector.broadcast %c0_i32_0 : i32 to vector<256x1xi32>
    %6 = arith.cmpi ne, %4, %5 : vector<256x1xi32>
    %c0_i32_1 = arith.constant 0 : i32
    %7 = vector.broadcast %c0_i32_1 : i32 to vector<256x1xi32>
    %8 = arith.cmpi slt, %4, %7 : vector<256x1xi32>
    %c0_i32_2 = arith.constant 0 : i32
    %9 = arith.cmpi slt, %2, %c0_i32_2 : i32
    %10 = vector.broadcast %9 : i1 to vector<256x1xi1>
    %11 = vector.broadcast %10 : vector<256x1xi1> to vector<256x1xi1>
    %12 = arith.xori %8, %11 : vector<256x1xi1>
    %13 = arith.andi %12, %6 : vector<256x1xi1>
    %14 = vector.broadcast %2 : i32 to vector<256x1xi32>
    %15 = arith.addi %4, %14 : vector<256x1xi32>
    %16 = arith.select %13, %15, %4 : vector<256x1xi1>, vector<256x1xi32>
    %c0_i32_3 = arith.constant 0 : i32
    %17 = vector.broadcast %c0_i32_3 : i32 to vector<256x1xi32>
    %18 = arith.cmpi eq, %16, %17 : vector<256x1xi32>
    %c15_i32 = arith.constant 15 : i32
    %19 = vector.broadcast %c15_i32 : i32 to vector<256x1xi32>
    %20 = arith.cmpi eq, %16, %19 : vector<256x1xi32>
    %c0 = arith.constant 0 : index
    %c0_4 = arith.constant 0 : index
    %c0_5 = arith.constant 0 : index
    %21 = vector.load %arg1[%c0, %c0_4, %c0_5] : memref<1x256x4xf32, #tpu.memory_space<vmem>>, vector<1x256x4xf32>
    %22 = vector.shape_cast %21 : vector<1x256x4xf32> to vector<256x4xf32>
    %23 = vector.extract_strided_slice %22 {offsets = [0, 0], sizes = [16, 4], strides = [1, 1]} : vector<256x4xf32> to vector<16x4xf32>
    %24 = vector.extract_strided_slice %22 {offsets = [240, 0], sizes = [16, 4], strides = [1, 1]} : vector<256x4xf32> to vector<16x4xf32>
    %c0_6 = arith.constant 0 : index
    %c0_7 = arith.constant 0 : index
    %25 = vector.load %arg5[%c0_6, %c0_7] : memref<320x4xf32, #tpu.memory_space<vmem>>, vector<16x4xf32>
    tpu.vector_store %arg5[%c0_6, %c0_7], %23 {strides = array<i32>} : memref<320x4xf32, #tpu.memory_space<vmem>>, vector<16x4xf32>,
    %c16 = arith.constant 16 : index
    %c0_8 = arith.constant 0 : index
    %26 = vector.load %arg5[%c16, %c0_8] : memref<320x4xf32, #tpu.memory_space<vmem>>, vector<16x4xf32>
    tpu.vector_store %arg5[%c16, %c0_8], %23 {strides = array<i32>} : memref<320x4xf32, #tpu.memory_space<vmem>>, vector<16x4xf32>,
    %c32 = arith.constant 32 : index
    %c0_9 = arith.constant 0 : index
    %27 = vector.load %arg5[%c32, %c0_9] : memref<320x4xf32, #tpu.memory_space<vmem>>, vector<256x4xf32>
    tpu.vector_store %arg5[%c32, %c0_9], %22 {strides = array<i32>} : memref<320x4xf32, #tpu.memory_space<vmem>>, vector<256x4xf32>,
    %c288 = arith.constant 288 : index
    %c0_10 = arith.constant 0 : index
    %28 = vector.load %arg5[%c288, %c0_10] : memref<320x4xf32, #tpu.memory_space<vmem>>, vector<16x4xf32>
    tpu.vector_store %arg5[%c288, %c0_10], %24 {strides = array<i32>} : memref<320x4xf32, #tpu.memory_space<vmem>>, vector<16x4xf32>,
    %c304 = arith.constant 304 : index
    %c0_11 = arith.constant 0 : index
    %29 = vector.load %arg5[%c304, %c0_11] : memref<320x4xf32, #tpu.memory_space<vmem>>, vector<16x4xf32>
    tpu.vector_store %arg5[%c304, %c0_11], %24 {strides = array<i32>} : memref<320x4xf32, #tpu.memory_space<vmem>>, vector<16x4xf32>,
    %cst = arith.constant 0.000000e+00 : f32
    %30 = vector.broadcast %cst : f32 to vector<256x4xf32>
    %c16_12 = arith.constant 16 : index
    %c0_13 = arith.constant 0 : index
    %31 = vector.load %arg5[%c16_12, %c0_13] : memref<320x4xf32, #tpu.memory_space<vmem>>, vector<256x4xf32>
    %c15 = arith.constant 15 : index
    %c0_14 = arith.constant 0 : index
    %32 = vector.load %arg5[%c15, %c0_14] : memref<320x4xf32, #tpu.memory_space<vmem>>, vector<256x4xf32>
    %c17 = arith.constant 17 : index
    %c0_15 = arith.constant 0 : index
    %33 = vector.load %arg5[%c17, %c0_15] : memref<320x4xf32, #tpu.memory_space<vmem>>, vector<256x4xf32>
    %34 = vector.shape_cast %18 : vector<256x1xi1> to vector<256x1xi1>
    %35 = vector.broadcast %34 : vector<256x1xi1> to vector<256x4xi1>
    %36 = arith.select %35, %31, %32 : vector<256x4xi1>, vector<256x4xf32>
    %37 = vector.shape_cast %20 : vector<256x1xi1> to vector<256x1xi1>
    %38 = vector.broadcast %37 : vector<256x1xi1> to vector<256x4xi1>
    %39 = arith.select %38, %31, %33 : vector<256x4xi1>, vector<256x4xf32>
    %c0_16 = arith.constant 0 : index
    %c0_17 = arith.constant 0 : index
    %c0_18 = arith.constant 0 : index
    %40 = vector.load %arg2[%c0_16, %c0_17, %c0_18] : memref<9x4x4xf32, #tpu.memory_space<vmem>>, vector<1x4x4xf32>
    %41 = vector.shape_cast %40 : vector<1x4x4xf32> to vector<4x4xf32>
    %cst_19 = arith.constant dense<0.000000e+00> : vector<256x4xf32>
    %42 = tpu.matmul %36, %41, %cst_19 {dimension_numbers = #tpu.dot_dimension_numbers<[1], [0], [0], [1], [0, 0, 1, 1], [], []>} : vector<256x4xf32>, vector<4x4xf32>, vector<256x4xf32> -> vector<256x4xf32>
    %43 = arith.addf %30, %42 : vector<256x4xf32>
    %c1 = arith.constant 1 : index
    %c0_20 = arith.constant 0 : index
    %c0_21 = arith.constant 0 : index
    %44 = vector.load %arg2[%c1, %c0_20, %c0_21] : memref<9x4x4xf32, #tpu.memory_space<vmem>>, vector<1x4x4xf32>
    %45 = vector.shape_cast %44 : vector<1x4x4xf32> to vector<4x4xf32>
    %cst_22 = arith.constant dense<0.000000e+00> : vector<256x4xf32>
    %46 = tpu.matmul %31, %45, %cst_22 {dimension_numbers = #tpu.dot_dimension_numbers<[1], [0], [0], [1], [0, 0, 1, 1], [], []>} : vector<256x4xf32>, vector<4x4xf32>, vector<256x4xf32> -> vector<256x4xf32>
    %47 = arith.addf %43, %46 : vector<256x4xf32>
    %c2 = arith.constant 2 : index
    %c0_23 = arith.constant 0 : index
    %c0_24 = arith.constant 0 : index
    %48 = vector.load %arg2[%c2, %c0_23, %c0_24] : memref<9x4x4xf32, #tpu.memory_space<vmem>>, vector<1x4x4xf32>
    %49 = vector.shape_cast %48 : vector<1x4x4xf32> to vector<4x4xf32>
    %cst_25 = arith.constant dense<0.000000e+00> : vector<256x4xf32>
    %50 = tpu.matmul %39, %49, %cst_25 {dimension_numbers = #tpu.dot_dimension_numbers<[1], [0], [0], [1], [0, 0, 1, 1], [], []>} : vector<256x4xf32>, vector<4x4xf32>, vector<256x4xf32> -> vector<256x4xf32>
    %51 = arith.addf %47, %50 : vector<256x4xf32>
    %c32_26 = arith.constant 32 : index
    %c0_27 = arith.constant 0 : index
    %52 = vector.load %arg5[%c32_26, %c0_27] : memref<320x4xf32, #tpu.memory_space<vmem>>, vector<256x4xf32>
    %c31 = arith.constant 31 : index
    %c0_28 = arith.constant 0 : index
    %53 = vector.load %arg5[%c31, %c0_28] : memref<320x4xf32, #tpu.memory_space<vmem>>, vector<256x4xf32>
    %c33 = arith.constant 33 : index
    %c0_29 = arith.constant 0 : index
    %54 = vector.load %arg5[%c33, %c0_29] : memref<320x4xf32, #tpu.memory_space<vmem>>, vector<256x4xf32>
    %55 = vector.shape_cast %18 : vector<256x1xi1> to vector<256x1xi1>
    %56 = vector.broadcast %55 : vector<256x1xi1> to vector<256x4xi1>
    %57 = arith.select %56, %52, %53 : vector<256x4xi1>, vector<256x4xf32>
    %58 = vector.shape_cast %20 : vector<256x1xi1> to vector<256x1xi1>
    %59 = vector.broadcast %58 : vector<256x1xi1> to vector<256x4xi1>
    %60 = arith.select %59, %52, %54 : vector<256x4xi1>, vector<256x4xf32>
    %c3 = arith.constant 3 : index
    %c0_30 = arith.constant 0 : index
    %c0_31 = arith.constant 0 : index
    %61 = vector.load %arg2[%c3, %c0_30, %c0_31] : memref<9x4x4xf32, #tpu.memory_space<vmem>>, vector<1x4x4xf32>
    %62 = vector.shape_cast %61 : vector<1x4x4xf32> to vector<4x4xf32>
    %cst_32 = arith.constant dense<0.000000e+00> : vector<256x4xf32>
    %63 = tpu.matmul %57, %62, %cst_32 {dimension_numbers = #tpu.dot_dimension_numbers<[1], [0], [0], [1], [0, 0, 1, 1], [], []>} : vector<256x4xf32>, vector<4x4xf32>, vector<256x4xf32> -> vector<256x4xf32>
    %64 = arith.addf %51, %63 : vector<256x4xf32>
    %c4 = arith.constant 4 : index
    %c0_33 = arith.constant 0 : index
    %c0_34 = arith.constant 0 : index
    %65 = vector.load %arg2[%c4, %c0_33, %c0_34] : memref<9x4x4xf32, #tpu.memory_space<vmem>>, vector<1x4x4xf32>
    %66 = vector.shape_cast %65 : vector<1x4x4xf32> to vector<4x4xf32>
    %cst_35 = arith.constant dense<0.000000e+00> : vector<256x4xf32>
    %67 = tpu.matmul %52, %66, %cst_35 {dimension_numbers = #tpu.dot_dimension_numbers<[1], [0], [0], [1], [0, 0, 1, 1], [], []>} : vector<256x4xf32>, vector<4x4xf32>, vector<256x4xf32> -> vector<256x4xf32>
    %68 = arith.addf %64, %67 : vector<256x4xf32>
    %c5 = arith.constant 5 : index
    %c0_36 = arith.constant 0 : index
    %c0_37 = arith.constant 0 : index
    %69 = vector.load %arg2[%c5, %c0_36, %c0_37] : memref<9x4x4xf32, #tpu.memory_space<vmem>>, vector<1x4x4xf32>
    %70 = vector.shape_cast %69 : vector<1x4x4xf32> to vector<4x4xf32>
    %cst_38 = arith.constant dense<0.000000e+00> : vector<256x4xf32>
    %71 = tpu.matmul %60, %70, %cst_38 {dimension_numbers = #tpu.dot_dimension_numbers<[1], [0], [0], [1], [0, 0, 1, 1], [], []>} : vector<256x4xf32>, vector<4x4xf32>, vector<256x4xf32> -> vector<256x4xf32>
    %72 = arith.addf %68, %71 : vector<256x4xf32>
    %c48 = arith.constant 48 : index
    %c0_39 = arith.constant 0 : index
    %73 = vector.load %arg5[%c48, %c0_39] : memref<320x4xf32, #tpu.memory_space<vmem>>, vector<256x4xf32>
    %c47 = arith.constant 47 : index
    %c0_40 = arith.constant 0 : index
    %74 = vector.load %arg5[%c47, %c0_40] : memref<320x4xf32, #tpu.memory_space<vmem>>, vector<256x4xf32>
    %c49 = arith.constant 49 : index
    %c0_41 = arith.constant 0 : index
    %75 = vector.load %arg5[%c49, %c0_41] : memref<320x4xf32, #tpu.memory_space<vmem>>, vector<256x4xf32>
    %76 = vector.shape_cast %18 : vector<256x1xi1> to vector<256x1xi1>
    %77 = vector.broadcast %76 : vector<256x1xi1> to vector<256x4xi1>
    %78 = arith.select %77, %73, %74 : vector<256x4xi1>, vector<256x4xf32>
    %79 = vector.shape_cast %20 : vector<256x1xi1> to vector<256x1xi1>
    %80 = vector.broadcast %79 : vector<256x1xi1> to vector<256x4xi1>
    %81 = arith.select %80, %73, %75 : vector<256x4xi1>, vector<256x4xf32>
    %c6 = arith.constant 6 : index
    %c0_42 = arith.constant 0 : index
    %c0_43 = arith.constant 0 : index
    %82 = vector.load %arg2[%c6, %c0_42, %c0_43] : memref<9x4x4xf32, #tpu.memory_space<vmem>>, vector<1x4x4xf32>
    %83 = vector.shape_cast %82 : vector<1x4x4xf32> to vector<4x4xf32>
    %cst_44 = arith.constant dense<0.000000e+00> : vector<256x4xf32>
    %84 = tpu.matmul %78, %83, %cst_44 {dimension_numbers = #tpu.dot_dimension_numbers<[1], [0], [0], [1], [0, 0, 1, 1], [], []>} : vector<256x4xf32>, vector<4x4xf32>, vector<256x4xf32> -> vector<256x4xf32>
    %85 = arith.addf %72, %84 : vector<256x4xf32>
    %c7 = arith.constant 7 : index
    %c0_45 = arith.constant 0 : index
    %c0_46 = arith.constant 0 : index
    %86 = vector.load %arg2[%c7, %c0_45, %c0_46] : memref<9x4x4xf32, #tpu.memory_space<vmem>>, vector<1x4x4xf32>
    %87 = vector.shape_cast %86 : vector<1x4x4xf32> to vector<4x4xf32>
    %cst_47 = arith.constant dense<0.000000e+00> : vector<256x4xf32>
    %88 = tpu.matmul %73, %87, %cst_47 {dimension_numbers = #tpu.dot_dimension_numbers<[1], [0], [0], [1], [0, 0, 1, 1], [], []>} : vector<256x4xf32>, vector<4x4xf32>, vector<256x4xf32> -> vector<256x4xf32>
    %89 = arith.addf %85, %88 : vector<256x4xf32>
    %c8 = arith.constant 8 : index
    %c0_48 = arith.constant 0 : index
    %c0_49 = arith.constant 0 : index
    %90 = vector.load %arg2[%c8, %c0_48, %c0_49] : memref<9x4x4xf32, #tpu.memory_space<vmem>>, vector<1x4x4xf32>
    %91 = vector.shape_cast %90 : vector<1x4x4xf32> to vector<4x4xf32>
    %cst_50 = arith.constant dense<0.000000e+00> : vector<256x4xf32>
    %92 = tpu.matmul %81, %91, %cst_50 {dimension_numbers = #tpu.dot_dimension_numbers<[1], [0], [0], [1], [0, 0, 1, 1], [], []>} : vector<256x4xf32>, vector<4x4xf32>, vector<256x4xf32> -> vector<256x4xf32>
    %93 = arith.addf %89, %92 : vector<256x4xf32>
    %cst_51 = arith.constant dense<0.000000e+00> : vector<4xf32>
    %94 = vector.multi_reduction <add>, %93, %cst_51 [0] : vector<256x4xf32> to vector<4xf32>
    %95 = vector.shape_cast %94 : vector<4xf32> to vector<1x4xf32>
    %cst_52 = arith.constant 3.906250e-03 : f32
    %96 = vector.broadcast %cst_52 : f32 to vector<1x4xf32>
    %97 = arith.mulf %95, %96 : vector<1x4xf32>
    %98 = vector.broadcast %97 : vector<1x4xf32> to vector<256x4xf32>
    %99 = arith.subf %93, %98 : vector<256x4xf32>
    %100 = arith.mulf %99, %99 : vector<256x4xf32>
    %cst_53 = arith.constant dense<0.000000e+00> : vector<4xf32>
    %101 = vector.multi_reduction <add>, %100, %cst_53 [0] : vector<256x4xf32> to vector<4xf32>
    %102 = vector.shape_cast %101 : vector<4xf32> to vector<1x4xf32>
    %cst_54 = arith.constant 3.906250e-03 : f32
    %103 = vector.broadcast %cst_54 : f32 to vector<1x4xf32>
    %104 = arith.mulf %102, %103 : vector<1x4xf32>
    %cst_55 = arith.constant 9.99999974E-6 : f32
    %105 = vector.broadcast %cst_55 : f32 to vector<1x4xf32>
    %106 = arith.addf %104, %105 : vector<1x4xf32>
    %107 = math.rsqrt %106 : vector<1x4xf32>
    %108 = vector.broadcast %107 : vector<1x4xf32> to vector<256x4xf32>
    %109 = arith.mulf %99, %108 : vector<256x4xf32>
    %cst_56 = arith.constant 0.000000e+00 : f32
    %110 = vector.broadcast %cst_56 : f32 to vector<256x4xf32>
    %111 = arith.maximumf %109, %110 : vector<256x4xf32>
    %112 = vector.extract_strided_slice %111 {offsets = [0, 0], sizes = [16, 4], strides = [1, 1]} : vector<256x4xf32> to vector<16x4xf32>
    %113 = vector.extract_strided_slice %111 {offsets = [240, 0], sizes = [16, 4], strides = [1, 1]} : vector<256x4xf32> to vector<16x4xf32>
    %c0_57 = arith.constant 0 : index
    %c0_58 = arith.constant 0 : index
    %114 = vector.load %arg5[%c0_57, %c0_58] : memref<320x4xf32, #tpu.memory_space<vmem>>, vector<16x4xf32>
    tpu.vector_store %arg5[%c0_57, %c0_58], %112 {strides = array<i32>} : memref<320x4xf32, #tpu.memory_space<vmem>>, vector<16x4xf32>,
    %c16_59 = arith.constant 16 : index
    %c0_60 = arith.constant 0 : index
    %115 = vector.load %arg5[%c16_59, %c0_60] : memref<320x4xf32, #tpu.memory_space<vmem>>, vector<16x4xf32>
    tpu.vector_store %arg5[%c16_59, %c0_60], %112 {strides = array<i32>} : memref<320x4xf32, #tpu.memory_space<vmem>>, vector<16x4xf32>,
    %c32_61 = arith.constant 32 : index
    %c0_62 = arith.constant 0 : index
    %116 = vector.load %arg5[%c32_61, %c0_62] : memref<320x4xf32, #tpu.memory_space<vmem>>, vector<256x4xf32>
    tpu.vector_store %arg5[%c32_61, %c0_62], %111 {strides = array<i32>} : memref<320x4xf32, #tpu.memory_space<vmem>>, vector<256x4xf32>,
    %c288_63 = arith.constant 288 : index
    %c0_64 = arith.constant 0 : index
    %117 = vector.load %arg5[%c288_63, %c0_64] : memref<320x4xf32, #tpu.memory_space<vmem>>, vector<16x4xf32>
    tpu.vector_store %arg5[%c288_63, %c0_64], %113 {strides = array<i32>} : memref<320x4xf32, #tpu.memory_space<vmem>>, vector<16x4xf32>,
    %c304_65 = arith.constant 304 : index
    %c0_66 = arith.constant 0 : index
    %118 = vector.load %arg5[%c304_65, %c0_66] : memref<320x4xf32, #tpu.memory_space<vmem>>, vector<16x4xf32>
    tpu.vector_store %arg5[%c304_65, %c0_66], %113 {strides = array<i32>} : memref<320x4xf32, #tpu.memory_space<vmem>>, vector<16x4xf32>,
    %cst_67 = arith.constant 0.000000e+00 : f32
    %119 = vector.broadcast %cst_67 : f32 to vector<256x4xf32>
    %c16_68 = arith.constant 16 : index
    %c0_69 = arith.constant 0 : index
    %120 = vector.load %arg5[%c16_68, %c0_69] : memref<320x4xf32, #tpu.memory_space<vmem>>, vector<256x4xf32>
    %c15_70 = arith.constant 15 : index
    %c0_71 = arith.constant 0 : index
    %121 = vector.load %arg5[%c15_70, %c0_71] : memref<320x4xf32, #tpu.memory_space<vmem>>, vector<256x4xf32>
    %c17_72 = arith.constant 17 : index
    %c0_73 = arith.constant 0 : index
    %122 = vector.load %arg5[%c17_72, %c0_73] : memref<320x4xf32, #tpu.memory_space<vmem>>, vector<256x4xf32>
    %123 = vector.shape_cast %18 : vector<256x1xi1> to vector<256x1xi1>
    %124 = vector.broadcast %123 : vector<256x1xi1> to vector<256x4xi1>
    %125 = arith.select %124, %120, %121 : vector<256x4xi1>, vector<256x4xf32>
    %126 = vector.shape_cast %20 : vector<256x1xi1> to vector<256x1xi1>
    %127 = vector.broadcast %126 : vector<256x1xi1> to vector<256x4xi1>
    %128 = arith.select %127, %120, %122 : vector<256x4xi1>, vector<256x4xf32>
    %c0_74 = arith.constant 0 : index
    %c0_75 = arith.constant 0 : index
    %c0_76 = arith.constant 0 : index
    %129 = vector.load %arg3[%c0_74, %c0_75, %c0_76] : memref<9x4x4xf32, #tpu.memory_space<vmem>>, vector<1x4x4xf32>
    %130 = vector.shape_cast %129 : vector<1x4x4xf32> to vector<4x4xf32>
    %cst_77 = arith.constant dense<0.000000e+00> : vector<256x4xf32>
    %131 = tpu.matmul %125, %130, %cst_77 {dimension_numbers = #tpu.dot_dimension_numbers<[1], [0], [0], [1], [0, 0, 1, 1], [], []>} : vector<256x4xf32>, vector<4x4xf32>, vector<256x4xf32> -> vector<256x4xf32>
    %132 = arith.addf %119, %131 : vector<256x4xf32>
    %c1_78 = arith.constant 1 : index
    %c0_79 = arith.constant 0 : index
    %c0_80 = arith.constant 0 : index
    %133 = vector.load %arg3[%c1_78, %c0_79, %c0_80] : memref<9x4x4xf32, #tpu.memory_space<vmem>>, vector<1x4x4xf32>
    %134 = vector.shape_cast %133 : vector<1x4x4xf32> to vector<4x4xf32>
    %cst_81 = arith.constant dense<0.000000e+00> : vector<256x4xf32>
    %135 = tpu.matmul %120, %134, %cst_81 {dimension_numbers = #tpu.dot_dimension_numbers<[1], [0], [0], [1], [0, 0, 1, 1], [], []>} : vector<256x4xf32>, vector<4x4xf32>, vector<256x4xf32> -> vector<256x4xf32>
    %136 = arith.addf %132, %135 : vector<256x4xf32>
    %c2_82 = arith.constant 2 : index
    %c0_83 = arith.constant 0 : index
    %c0_84 = arith.constant 0 : index
    %137 = vector.load %arg3[%c2_82, %c0_83, %c0_84] : memref<9x4x4xf32, #tpu.memory_space<vmem>>, vector<1x4x4xf32>
    %138 = vector.shape_cast %137 : vector<1x4x4xf32> to vector<4x4xf32>
    %cst_85 = arith.constant dense<0.000000e+00> : vector<256x4xf32>
    %139 = tpu.matmul %128, %138, %cst_85 {dimension_numbers = #tpu.dot_dimension_numbers<[1], [0], [0], [1], [0, 0, 1, 1], [], []>} : vector<256x4xf32>, vector<4x4xf32>, vector<256x4xf32> -> vector<256x4xf32>
    %140 = arith.addf %136, %139 : vector<256x4xf32>
    %c32_86 = arith.constant 32 : index
    %c0_87 = arith.constant 0 : index
    %141 = vector.load %arg5[%c32_86, %c0_87] : memref<320x4xf32, #tpu.memory_space<vmem>>, vector<256x4xf32>
    %c31_88 = arith.constant 31 : index
    %c0_89 = arith.constant 0 : index
    %142 = vector.load %arg5[%c31_88, %c0_89] : memref<320x4xf32, #tpu.memory_space<vmem>>, vector<256x4xf32>
    %c33_90 = arith.constant 33 : index
    %c0_91 = arith.constant 0 : index
    %143 = vector.load %arg5[%c33_90, %c0_91] : memref<320x4xf32, #tpu.memory_space<vmem>>, vector<256x4xf32>
    %144 = vector.shape_cast %18 : vector<256x1xi1> to vector<256x1xi1>
    %145 = vector.broadcast %144 : vector<256x1xi1> to vector<256x4xi1>
    %146 = arith.select %145, %141, %142 : vector<256x4xi1>, vector<256x4xf32>
    %147 = vector.shape_cast %20 : vector<256x1xi1> to vector<256x1xi1>
    %148 = vector.broadcast %147 : vector<256x1xi1> to vector<256x4xi1>
    %149 = arith.select %148, %141, %143 : vector<256x4xi1>, vector<256x4xf32>
    %c3_92 = arith.constant 3 : index
    %c0_93 = arith.constant 0 : index
    %c0_94 = arith.constant 0 : index
    %150 = vector.load %arg3[%c3_92, %c0_93, %c0_94] : memref<9x4x4xf32, #tpu.memory_space<vmem>>, vector<1x4x4xf32>
    %151 = vector.shape_cast %150 : vector<1x4x4xf32> to vector<4x4xf32>
    %cst_95 = arith.constant dense<0.000000e+00> : vector<256x4xf32>
    %152 = tpu.matmul %146, %151, %cst_95 {dimension_numbers = #tpu.dot_dimension_numbers<[1], [0], [0], [1], [0, 0, 1, 1], [], []>} : vector<256x4xf32>, vector<4x4xf32>, vector<256x4xf32> -> vector<256x4xf32>
    %153 = arith.addf %140, %152 : vector<256x4xf32>
    %c4_96 = arith.constant 4 : index
    %c0_97 = arith.constant 0 : index
    %c0_98 = arith.constant 0 : index
    %154 = vector.load %arg3[%c4_96, %c0_97, %c0_98] : memref<9x4x4xf32, #tpu.memory_space<vmem>>, vector<1x4x4xf32>
    %155 = vector.shape_cast %154 : vector<1x4x4xf32> to vector<4x4xf32>
    %cst_99 = arith.constant dense<0.000000e+00> : vector<256x4xf32>
    %156 = tpu.matmul %141, %155, %cst_99 {dimension_numbers = #tpu.dot_dimension_numbers<[1], [0], [0], [1], [0, 0, 1, 1], [], []>} : vector<256x4xf32>, vector<4x4xf32>, vector<256x4xf32> -> vector<256x4xf32>
    %157 = arith.addf %153, %156 : vector<256x4xf32>
    %c5_100 = arith.constant 5 : index
    %c0_101 = arith.constant 0 : index
    %c0_102 = arith.constant 0 : index
    %158 = vector.load %arg3[%c5_100, %c0_101, %c0_102] : memref<9x4x4xf32, #tpu.memory_space<vmem>>, vector<1x4x4xf32>
    %159 = vector.shape_cast %158 : vector<1x4x4xf32> to vector<4x4xf32>
    %cst_103 = arith.constant dense<0.000000e+00> : vector<256x4xf32>
    %160 = tpu.matmul %149, %159, %cst_103 {dimension_numbers = #tpu.dot_dimension_numbers<[1], [0], [0], [1], [0, 0, 1, 1], [], []>} : vector<256x4xf32>, vector<4x4xf32>, vector<256x4xf32> -> vector<256x4xf32>
    %161 = arith.addf %157, %160 : vector<256x4xf32>
    %c48_104 = arith.constant 48 : index
    %c0_105 = arith.constant 0 : index
    %162 = vector.load %arg5[%c48_104, %c0_105] : memref<320x4xf32, #tpu.memory_space<vmem>>, vector<256x4xf32>
    %c47_106 = arith.constant 47 : index
    %c0_107 = arith.constant 0 : index
    %163 = vector.load %arg5[%c47_106, %c0_107] : memref<320x4xf32, #tpu.memory_space<vmem>>, vector<256x4xf32>
    %c49_108 = arith.constant 49 : index
    %c0_109 = arith.constant 0 : index
    %164 = vector.load %arg5[%c49_108, %c0_109] : memref<320x4xf32, #tpu.memory_space<vmem>>, vector<256x4xf32>
    %165 = vector.shape_cast %18 : vector<256x1xi1> to vector<256x1xi1>
    %166 = vector.broadcast %165 : vector<256x1xi1> to vector<256x4xi1>
    %167 = arith.select %166, %162, %163 : vector<256x4xi1>, vector<256x4xf32>
    %168 = vector.shape_cast %20 : vector<256x1xi1> to vector<256x1xi1>
    %169 = vector.broadcast %168 : vector<256x1xi1> to vector<256x4xi1>
    %170 = arith.select %169, %162, %164 : vector<256x4xi1>, vector<256x4xf32>
    %c6_110 = arith.constant 6 : index
    %c0_111 = arith.constant 0 : index
    %c0_112 = arith.constant 0 : index
    %171 = vector.load %arg3[%c6_110, %c0_111, %c0_112] : memref<9x4x4xf32, #tpu.memory_space<vmem>>, vector<1x4x4xf32>
    %172 = vector.shape_cast %171 : vector<1x4x4xf32> to vector<4x4xf32>
    %cst_113 = arith.constant dense<0.000000e+00> : vector<256x4xf32>
    %173 = tpu.matmul %167, %172, %cst_113 {dimension_numbers = #tpu.dot_dimension_numbers<[1], [0], [0], [1], [0, 0, 1, 1], [], []>} : vector<256x4xf32>, vector<4x4xf32>, vector<256x4xf32> -> vector<256x4xf32>
    %174 = arith.addf %161, %173 : vector<256x4xf32>
    %c7_114 = arith.constant 7 : index
    %c0_115 = arith.constant 0 : index
    %c0_116 = arith.constant 0 : index
    %175 = vector.load %arg3[%c7_114, %c0_115, %c0_116] : memref<9x4x4xf32, #tpu.memory_space<vmem>>, vector<1x4x4xf32>
    %176 = vector.shape_cast %175 : vector<1x4x4xf32> to vector<4x4xf32>
    %cst_117 = arith.constant dense<0.000000e+00> : vector<256x4xf32>
    %177 = tpu.matmul %162, %176, %cst_117 {dimension_numbers = #tpu.dot_dimension_numbers<[1], [0], [0], [1], [0, 0, 1, 1], [], []>} : vector<256x4xf32>, vector<4x4xf32>, vector<256x4xf32> -> vector<256x4xf32>
    %178 = arith.addf %174, %177 : vector<256x4xf32>
    %c8_118 = arith.constant 8 : index
    %c0_119 = arith.constant 0 : index
    %c0_120 = arith.constant 0 : index
    %179 = vector.load %arg3[%c8_118, %c0_119, %c0_120] : memref<9x4x4xf32, #tpu.memory_space<vmem>>, vector<1x4x4xf32>
    %180 = vector.shape_cast %179 : vector<1x4x4xf32> to vector<4x4xf32>
    %cst_121 = arith.constant dense<0.000000e+00> : vector<256x4xf32>
    %181 = tpu.matmul %170, %180, %cst_121 {dimension_numbers = #tpu.dot_dimension_numbers<[1], [0], [0], [1], [0, 0, 1, 1], [], []>} : vector<256x4xf32>, vector<4x4xf32>, vector<256x4xf32> -> vector<256x4xf32>
    %182 = arith.addf %178, %181 : vector<256x4xf32>
    %cst_122 = arith.constant dense<0.000000e+00> : vector<4xf32>
    %183 = vector.multi_reduction <add>, %182, %cst_122 [0] : vector<256x4xf32> to vector<4xf32>
    %184 = vector.shape_cast %183 : vector<4xf32> to vector<1x4xf32>
    %cst_123 = arith.constant 3.906250e-03 : f32
    %185 = vector.broadcast %cst_123 : f32 to vector<1x4xf32>
    %186 = arith.mulf %184, %185 : vector<1x4xf32>
    %187 = vector.broadcast %186 : vector<1x4xf32> to vector<256x4xf32>
    %188 = arith.subf %182, %187 : vector<256x4xf32>
    %189 = arith.mulf %188, %188 : vector<256x4xf32>
    %cst_124 = arith.constant dense<0.000000e+00> : vector<4xf32>
    %190 = vector.multi_reduction <add>, %189, %cst_124 [0] : vector<256x4xf32> to vector<4xf32>
    %191 = vector.shape_cast %190 : vector<4xf32> to vector<1x4xf32>
    %cst_125 = arith.constant 3.906250e-03 : f32
    %192 = vector.broadcast %cst_125 : f32 to vector<1x4xf32>
    %193 = arith.mulf %191, %192 : vector<1x4xf32>
    %cst_126 = arith.constant 9.99999974E-6 : f32
    %194 = vector.broadcast %cst_126 : f32 to vector<1x4xf32>
    %195 = arith.addf %193, %194 : vector<1x4xf32>
    %196 = math.rsqrt %195 : vector<1x4xf32>
    %197 = vector.broadcast %196 : vector<1x4xf32> to vector<256x4xf32>
    %198 = arith.mulf %188, %197 : vector<256x4xf32>
    %cst_127 = arith.constant 0.000000e+00 : f32
    %199 = vector.broadcast %cst_127 : f32 to vector<256x4xf32>
    %200 = arith.maximumf %198, %199 : vector<256x4xf32>
    %201 = arith.addf %22, %200 : vector<256x4xf32>
    %c0_128 = arith.constant 0 : index
    %c0_129 = arith.constant 0 : index
    %c0_130 = arith.constant 0 : index
    %202 = vector.load %arg4[%c0_128, %c0_129, %c0_130] : memref<1x256x4xf32, #tpu.memory_space<vmem>>, vector<1x256x4xf32>
    %203 = vector.shape_cast %202 : vector<1x256x4xf32> to vector<256x4xf32>
    %204 = vector.shape_cast %201 : vector<256x4xf32> to vector<1x256x4xf32>
    tpu.vector_store %arg4[%c0_128, %c0_129, %c0_130], %204 {strides = array<i32>} : memref<1x256x4xf32, #tpu.memory_space<vmem>>, vector<1x256x4xf32>,
    return
  }
  func.func @transform_0(%arg0: i32) -> (i32, i32, i32) {
    %c0_i32 = arith.constant 0 : i32
    %c0_i32_0 = arith.constant 0 : i32
    %c0_i32_1 = arith.constant 0 : i32
    return %arg0, %c0_i32, %c0_i32_0 : i32, i32, i32
  }
  func.func @transform_1(%arg0: i32) -> (i32, i32, i32) {
    %c0_i32 = arith.constant 0 : i32
    %c0_i32_0 = arith.constant 0 : i32
    %c0_i32_1 = arith.constant 0 : i32
    %c0_i32_2 = arith.constant 0 : i32
    return %c0_i32, %c0_i32_0, %c0_i32_1 : i32, i32, i32
  }
  func.func @transform_2(%arg0: i32) -> (i32, i32, i32) {
    %c0_i32 = arith.constant 0 : i32
    %c0_i32_0 = arith.constant 0 : i32
    %c0_i32_1 = arith.constant 0 : i32
    %c0_i32_2 = arith.constant 0 : i32
    return %c0_i32, %c0_i32_0, %c0_i32_1 : i32, i32, i32
  }
  func.func @transform_3(%arg0: i32) -> (i32, i32, i32) {
    %c0_i32 = arith.constant 0 : i32
    %c0_i32_0 = arith.constant 0 : i32
    %c0_i32_1 = arith.constant 0 : i32
    return %arg0, %c0_i32, %c0_i32_0 : i32, i32, i32
  }
}

</mosaic_0001>

<llo_original>
// kernel: residual_conv_block.1
$region0: #{residual_conv_block.1}
  #allocation0 [shape = 'u32[]', space=smem, size = 0x4, offset = 0x4, fixed_abs, tag = 'smem constant byte address 0x4 - core index']
  #allocation1 [shape = 'u32[72,128]{1,0:T(1,128)}', space=vmem, size = 0x9000, scoped, tag = 'internal scratch']
  #allocation2 [shape = 'f32[320,4]{1,0:T(8,128)}', space=vmem, size = 0x28000, scoped, tag = 'scratch operand']
  %s0 = inlined_call_operand.vmem [shape: f32[2,256,4], index: 0, kind: input, shape index: {}, may-alias: {0,3}]
  %s1 = inlined_call_operand.vmem [shape: f32[9,4,4], index: 1, kind: input, shape index: {}]
  %s2 = inlined_call_operand.vmem [shape: f32[9,4,4], index: 2, kind: input, shape index: {}]
  %s3 = inlined_call_operand.vmem [shape: f32[2,256,4], index: 3, kind: output, shape index: {}, may-alias: {0,3}]
  %s4 = sld [smem:[#allocation0]]
  $region45: #{residual_conv_block.1} parent=0
    _
  %s6 = ssub.s32 1, %s4
  %s7 = scalar_select 0, %s6, %s4
  loop: start=0, step=1, limit=4
  $region2: #{residual_conv_block.1} parent=0 // loop_pre_header
    _
  $region3: #{residual_conv_block.1} parent=0 // loop_header
    %s9 = sphi 0, %s13
    %p10 = scmp.ge.s32.totalorder %s9, 4
    %s19 = sphi 0, %s21
    %s22 = sphi 0, %s19
    %s23 = sphi 0, %s22
    %s39 = sphi 0, %s23
    %s43 = sphi 0, %s43
    %s45 = sphi 0, %s43
    %s46 = sphi 0, %s45
    %s60 = sphi 0, %s46
    %s64 = sphi 0, %s64
    %s66 = sphi 0, %s64
    %s67 = sphi 0, %s66
    %s81 = sphi 0, %s67
    %s87 = sphi 0, %s89
    %s90 = sphi 0, %s87
    %s91 = sphi 0, %s90
    %s107 = sphi 0, %s91
  $region4: #{residual_conv_block.1} parent=0 // loop_header_branch
    %12 = sbr.rel (%p10) target = $region8
  $region5: #{residual_conv_block.1} parent=0 // loop_body
    %s14 = ssub.s32 %s9, 1
    %s15 = ssub.s32 %s9, 2
    %s16 = sadd.s32 %s9, 1
    %s17 = ssub.s32 %s9, %s16
    %p18 = scmp.eq.s32.totalorder %s17, 0
    %s20 = sadd.s32 %s19, 1
    %s21 = scalar_select %p18, %s19, %s20
    %p24 = pneg %p18
    %p25 = scmp.eq.s32.totalorder %s9, 1
    %p26 = por %p24, %p25
    %p27 = scmp.ne.s32.totalorder %s19, %s22
    %p28 = scmp.eq.s32.totalorder %s9, 0
    %p29 = por %p27, %p28
    %p30 = scmp.ne.s32.totalorder %s19, %s22
    %p31 = scmp.eq.s32.totalorder %s14, 1
    %p32 = por %p30, %p31
    %p33 = scmp.ne.s32.totalorder %s22, %s23
    %p34 = scmp.eq.s32.totalorder %s14, 0
    %p35 = por %p33, %p34
    %p36 = scmp.ne.s32.totalorder %s22, %s23
    %p37 = scmp.eq.s32.totalorder %s15, 1
    %p38 = por %p36, %p37
    %p40 = scmp.ne.s32.totalorder %s23, %s39
    %p41 = scmp.eq.s32.totalorder %s15, 0
    %p42 = por %p40, %p41
    %s44 = sadd.s32 %s43, 1
    %p47 = scmp.eq.s32.totalorder %s9, 1
    %p48 = scmp.ne.s32.totalorder %s43, %s45
    %p49 = scmp.eq.s32.totalorder %s9, 0
    %p50 = por %p48, %p49
    %p51 = scmp.ne.s32.totalorder %s43, %s45
    %p52 = scmp.eq.s32.totalorder %s14, 1
    %p53 = por %p51, %p52
    %p54 = scmp.ne.s32.totalorder %s45, %s46
    %p55 = scmp.eq.s32.totalorder %s14, 0
    %p56 = por %p54, %p55
    %p57 = scmp.ne.s32.totalorder %s45, %s46
    %p58 = scmp.eq.s32.totalorder %s15, 1
    %p59 = por %p57, %p58
    %p61 = scmp.ne.s32.totalorder %s46, %s60
    %p62 = scmp.eq.s32.totalorder %s15, 0
    %p63 = por %p61, %p62
    %s65 = sadd.s32 %s64, 1
    %p68 = scmp.eq.s32.totalorder %s9, 1
    %p69 = scmp.ne.s32.totalorder %s64, %s66
    %p70 = scmp.eq.s32.totalorder %s9, 0
    %p71 = por %p69, %p70
    %p72 = scmp.ne.s32.totalorder %s64, %s66
    %p73 = scmp.eq.s32.totalorder %s14, 1
    %p74 = por %p72, %p73
    %p75 = scmp.ne.s32.totalorder %s66, %s67
    %p76 = scmp.eq.s32.totalorder %s14, 0
    %p77 = por %p75, %p76
    %p78 = scmp.ne.s32.totalorder %s66, %s67
    %p79 = scmp.eq.s32.totalorder %s15, 1
    %p80 = por %p78, %p79
    %p82 = scmp.ne.s32.totalorder %s67, %s81
    %p83 = scmp.eq.s32.totalorder %s15, 0
    %p84 = por %p82, %p83
    %s85 = ssub.s32 %s9, %s16
    %p86 = scmp.eq.s32.totalorder %s85, 0
    %s88 = sadd.s32 %s87, 1
    %s89 = scalar_select %p86, %s87, %s88
    %p92 = pneg %p86
    %p93 = scmp.eq.s32.totalorder %s9, 1
    %p94 = por %p92, %p93
    %p95 = scmp.ne.s32.totalorder %s87, %s90
    %p96 = scmp.eq.s32.totalorder %s9, 0
    %p97 = por %p95, %p96
    %p98 = scmp.ne.s32.totalorder %s87, %s90
    %p99 = scmp.eq.s32.totalorder %s14, 1
    %p100 = por %p98, %p99
    %p101 = scmp.ne.s32.totalorder %s90, %s91
    %p102 = scmp.eq.s32.totalorder %s14, 0
    %p103 = por %p101, %p102
    %p104 = scmp.ne.s32.totalorder %s90, %s91
    %p105 = scmp.eq.s32.totalorder %s15, 1
    %p106 = por %p104, %p105
    %p108 = scmp.ne.s32.totalorder %s91, %s107
    %p109 = scmp.eq.s32.totalorder %s15, 0
    %p110 = por %p108, %p109
    %p111 = scmp.le.s32.totalorder 1, %s9
    %p112 = scmp.lt.s32.totalorder %s9, 3
    %p113 = pnand %p111, %p112
    %p114 = pneg %p113
    // Predicated region
    $region9: #{residual_conv_block.1} parent=5 // pred_check
      _
    $region10: #{residual_conv_block.1} parent=5 // pred_check_branch
      %116 = sbr.rel (%p113) target = $region12
    $region11: #{residual_conv_block.1} parent=5 // pred_region
      %s117 = ssub.s32 %s9, 1
      // Predicated region
      $region13: #{residual_conv_block.1} parent=11 // pred_check
        %p118 = pneg %p56
      $region14: #{residual_conv_block.1} parent=11 // pred_check_branch
        %120 = sbr.rel (%p118) target = $region16
      $region15: #{residual_conv_block.1} parent=11 // pred_region
        _
      $region16: #{residual_conv_block.1} parent=11 // pred_fallthru
        _
      // Predicated region
      $region17: #{residual_conv_block.1} parent=11 // pred_check
        %p121 = pneg %p77
      $region18: #{residual_conv_block.1} parent=11 // pred_check_branch
        %123 = sbr.rel (%p121) target = $region20
      $region19: #{residual_conv_block.1} parent=11 // pred_region
        _
      $region20: #{residual_conv_block.1} parent=11 // pred_fallthru
        _
    $region12: #{residual_conv_block.1} parent=5 // pred_fallthru
      _
    %p124 = scmp.lt.s32.totalorder %s9, 2
    // Predicated region
    $region21: #{residual_conv_block.1} parent=5 // pred_check
      %p125 = pneg %p124
    $region22: #{residual_conv_block.1} parent=5 // pred_check_branch
      %127 = sbr.rel (%p125) target = $region24
    $region23: #{residual_conv_block.1} parent=5 // pred_region
      // Predicated region
      $region25: #{residual_conv_block.1} parent=23 // pred_check
        %p128 = pneg %p29
      $region26: #{residual_conv_block.1} parent=23 // pred_check_branch
        %130 = sbr.rel (%p128) target = $region28
      $region27: #{residual_conv_block.1} parent=23 // pred_region
        %p131 = scmp.lt.s32.totalorder %s9, 1
        %s132 = scalar_select %p131, %s9, 1
        %s133 = smul.addr %s132, 32
        %s134 = smul.addr %s133, 8
        %s135 = scalar_lea.vmem %s0, %s134
      $region28: #{residual_conv_block.1} parent=23 // pred_fallthru
        _
    $region24: #{residual_conv_block.1} parent=5 // pred_fallthru
      _
    %p136 = scmp.le.s32.totalorder 1, %s9
    %p137 = scmp.lt.s32.totalorder %s9, 3
    %p138 = pnand %p136, %p137
    %p139 = pneg %p138
    // Predicated region
    $region29: #{residual_conv_block.1} parent=5 // pred_check
      _
    $region30: #{residual_conv_block.1} parent=5 // pred_check_branch
      %141 = sbr.rel (%p138) target = $region32
    $region31: #{residual_conv_block.1} parent=5 // pred_region
      %s142 = ssub.s32 %s9, 1
      %p143 = scmp.lt.s32.totalorder %s14, 1
      %s144 = scalar_select %p143, %s14, 1
      %s145 = smul.addr %s144, 32
      %s146 = smul.addr %s145, 8
      %s147 = scalar_lea.vmem %s0, %s146
      %p148 = pneg %p35
      %p149 = pneg %p32
      %p150 = pneg %p56
      %p151 = pneg %p53
      %p152 = pneg %p77
      %p153 = pneg %p74
      %p154 = pneg %p103
      %p155 = pneg %p100
      %p156 = scmp.lt.s32.totalorder %s14, 1
      %s157 = scalar_select %p156, %s14, 1
      %s158 = smul.addr %s157, 32
      %s159 = smul.addr %s158, 8
      %s160 = scalar_lea.vmem %s3, %s159
      %p161 = scmp.lt.s32.totalorder %s14, 1
      %s162 = scalar_select %p161, %s14, 1
      %s163 = smul.addr %s162, 32
      %s164 = smul.addr %s163, 8
      %s165 = scalar_lea.vmem %s0, %s164
      %p166 = scmp.lt.s32.totalorder %s14, 1
      %s167 = scalar_select %p166, %s14, 1
      %s168 = smul.addr %s167, 32
      %s169 = smul.addr %s168, 8
      %s170 = scalar_lea.vmem %s3, %s169
      %v171 = vlaneseq
      %v172 = vshrl.u32 %v171, 7
      %v173 = vadd.s32 %v172, 8
      %v174 = vadd.s32 %v172, 16
      %v175 = vadd.s32 %v172, 24
      %v176 = vadd.s32 %v172, 32
      %v177 = vadd.s32 %v172, 40
      %v178 = vadd.s32 %v172, 48
      %v179 = vadd.s32 %v172, 56
      %v180 = vadd.s32 %v172, 64
      %v181 = vadd.s32 %v172, 72
      %v182 = vadd.s32 %v172, 80
      %v183 = vadd.s32 %v172, 88
      %v184 = vadd.s32 %v172, 96
      %v185 = vadd.s32 %v172, 104
      %v186 = vadd.s32 %v172, 112
      %v187 = vadd.s32 %v172, 120
      %v188 = vadd.s32 %v172, 128
      %v189 = vadd.s32 %v172, 136
      %v190 = vadd.s32 %v172, 144
      %v191 = vadd.s32 %v172, 152
      %v192 = vadd.s32 %v172, 160
      %v193 = vadd.s32 %v172, 168
      %v194 = vadd.s32 %v172, 176
      %v195 = vadd.s32 %v172, 184
      %v196 = vadd.s32 %v172, 192
      %v197 = vadd.s32 %v172, 200
      %v198 = vadd.s32 %v172, 208
      %v199 = vadd.s32 %v172, 216
      %v200 = vadd.s32 %v172, 224
      %v201 = vadd.s32 %v172, 232
      %v202 = vadd.s32 %v172, 240
      %v203 = vadd.s32 %v172, 248
      %vm204 = vcmp.lt.s32.totalorder %v172, 0
      %v205 = vsub.s32 0, %v172
      %v206 = vsel %vm204, %v205, %v172
      %v207 = vshrl.u32 %v206, 4
      %v208 = vand.u32 %v206, 15
      %v209 = vsub.s32 0, %v208
      %v210 = vsel %vm204, %v209, %v208
      %vm211 = vcmp.lt.s32.totalorder %v173, 0
      %v212 = vsub.s32 0, %v173
      %v213 = vsel %vm211, %v212, %v173
      %v214 = vshrl.u32 %v213, 4
      %v215 = vand.u32 %v213, 15
      %v216 = vsub.s32 0, %v215
      %v217 = vsel %vm211, %v216, %v215
      %vm218 = vcmp.lt.s32.totalorder %v174, 0
      %v219 = vsub.s32 0, %v174
      %v220 = vsel %vm218, %v219, %v174
      %v221 = vshrl.u32 %v220, 4
      %v222 = vand.u32 %v220, 15
      %v223 = vsub.s32 0, %v222
      %v224 = vsel %vm218, %v223, %v222
      %vm225 = vcmp.lt.s32.totalorder %v175, 0
      %v226 = vsub.s32 0, %v175
      %v227 = vsel %vm225, %v226, %v175
      %v228 = vshrl.u32 %v227, 4
      %v229 = vand.u32 %v227, 15
      %v230 = vsub.s32 0, %v229
      %v231 = vsel %vm225, %v230, %v229
      %vm232 = vcmp.lt.s32.totalorder %v176, 0
      %v233 = vsub.s32 0, %v176
      %v234 = vsel %vm232, %v233, %v176
      %v235 = vshrl.u32 %v234, 4
      %v236 = vand.u32 %v234, 15
      %v237 = vsub.s32 0, %v236
      %v238 = vsel %vm232, %v237, %v236
      %vm239 = vcmp.lt.s32.totalorder %v177, 0
      %v240 = vsub.s32 0, %v177
      %v241 = vsel %vm239, %v240, %v177
      %v242 = vshrl.u32 %v241, 4
      %v243 = vand.u32 %v241, 15
      %v244 = vsub.s32 0, %v243
      %v245 = vsel %vm239, %v244, %v243
      %vm246 = vcmp.lt.s32.totalorder %v178, 0
      %v247 = vsub.s32 0, %v178
      %v248 = vsel %vm246, %v247, %v178
      %v249 = vshrl.u32 %v248, 4
      %v250 = vand.u32 %v248, 15
      %v251 = vsub.s32 0, %v250
      %v252 = vsel %vm246, %v251, %v250
      %vm253 = vcmp.lt.s32.totalorder %v179, 0
      %v254 = vsub.s32 0, %v179
      %v255 = vsel %vm253, %v254, %v179
      %v256 = vshrl.u32 %v255, 4
      %v257 = vand.u32 %v255, 15
      %v258 = vsub.s32 0, %v257
      %v259 = vsel %vm253, %v258, %v257
      %vm260 = vcmp.lt.s32.totalorder %v180, 0
      %v261 = vsub.s32 0, %v180
      %v262 = vsel %vm260, %v261, %v180
      %v263 = vshrl.u32 %v262, 4
      %v264 = vand.u32 %v262, 15
      %v265 = vsub.s32 0, %v264
      %v266 = vsel %vm260, %v265, %v264
      %vm267 = vcmp.lt.s32.totalorder %v181, 0
      %v268 = vsub.s32 0, %v181
      %v269 = vsel %vm267, %v268, %v181
      %v270 = vshrl.u32 %v269, 4
      %v271 = vand.u32 %v269, 15
      %v272 = vsub.s32 0, %v271
      %v273 = vsel %vm267, %v272, %v271
      %vm274 = vcmp.lt.s32.totalorder %v182, 0
      %v275 = vsub.s32 0, %v182
      %v276 = vsel %vm274, %v275, %v182
      %v277 = vshrl.u32 %v276, 4
      %v278 = vand.u32 %v276, 15
      %v279 = vsub.s32 0, %v278
      %v280 = vsel %vm274, %v279, %v278
      %vm281 = vcmp.lt.s32.totalorder %v183, 0
      %v282 = vsub.s32 0, %v183
      %v283 = vsel %vm281, %v282, %v183
      %v284 = vshrl.u32 %v283, 4
      %v285 = vand.u32 %v283, 15
      %v286 = vsub.s32 0, %v285
      %v287 = vsel %vm281, %v286, %v285
      %vm288 = vcmp.lt.s32.totalorder %v184, 0
      %v289 = vsub.s32 0, %v184
      %v290 = vsel %vm288, %v289, %v184
      %v291 = vshrl.u32 %v290, 4
      %v292 = vand.u32 %v290, 15
      %v293 = vsub.s32 0, %v292
      %v294 = vsel %vm288, %v293, %v292
      %vm295 = vcmp.lt.s32.totalorder %v185, 0
      %v296 = vsub.s32 0, %v185
      %v297 = vsel %vm295, %v296, %v185
      %v298 = vshrl.u32 %v297, 4
      %v299 = vand.u32 %v297, 15
      %v300 = vsub.s32 0, %v299
      %v301 = vsel %vm295, %v300, %v299
      %vm302 = vcmp.lt.s32.totalorder %v186, 0
      %v303 = vsub.s32 0, %v186
      %v304 = vsel %vm302, %v303, %v186
      %v305 = vshrl.u32 %v304, 4
      %v306 = vand.u32 %v304, 15
      %v307 = vsub.s32 0, %v306
      %v308 = vsel %vm302, %v307, %v306
      %vm309 = vcmp.lt.s32.totalorder %v187, 0
      %v310 = vsub.s32 0, %v187
      %v311 = vsel %vm309, %v310, %v187
      %v312 = vshrl.u32 %v311, 4
      %v313 = vand.u32 %v311, 15
      %v314 = vsub.s32 0, %v313
      %v315 = vsel %vm309, %v314, %v313
      %vm316 = vcmp.lt.s32.totalorder %v188, 0
      %v317 = vsub.s32 0, %v188
      %v318 = vsel %vm316, %v317, %v188
      %v319 = vshrl.u32 %v318, 4
      %v320 = vand.u32 %v318, 15
      %v321 = vsub.s32 0, %v320
      %v322 = vsel %vm316, %v321, %v320
      %vm323 = vcmp.lt.s32.totalorder %v189, 0
      %v324 = vsub.s32 0, %v189
      %v325 = vsel %vm323, %v324, %v189
      %v326 = vshrl.u32 %v325, 4
      %v327 = vand.u32 %v325, 15
      %v328 = vsub.s32 0, %v327
      %v329 = vsel %vm323, %v328, %v327
      %vm330 = vcmp.lt.s32.totalorder %v190, 0
      %v331 = vsub.s32 0, %v190
      %v332 = vsel %vm330, %v331, %v190
      %v333 = vshrl.u32 %v332, 4
      %v334 = vand.u32 %v332, 15
      %v335 = vsub.s32 0, %v334
      %v336 = vsel %vm330, %v335, %v334
      %vm337 = vcmp.lt.s32.totalorder %v191, 0
      %v338 = vsub.s32 0, %v191
      %v339 = vsel %vm337, %v338, %v191
      %v340 = vshrl.u32 %v339, 4
      %v341 = vand.u32 %v339, 15
      %v342 = vsub.s32 0, %v341
      %v343 = vsel %vm337, %v342, %v341
      %vm344 = vcmp.lt.s32.totalorder %v192, 0
      %v345 = vsub.s32 0, %v192
      %v346 = vsel %vm344, %v345, %v192
      %v347 = vshrl.u32 %v346, 4
      %v348 = vand.u32 %v346, 15
      %v349 = vsub.s32 0, %v348
      %v350 = vsel %vm344, %v349, %v348
      %vm351 = vcmp.lt.s32.totalorder %v193, 0
      %v352 = vsub.s32 0, %v193
      %v353 = vsel %vm351, %v352, %v193
      %v354 = vshrl.u32 %v353, 4
      %v355 = vand.u32 %v353, 15
      %v356 = vsub.s32 0, %v355
      %v357 = vsel %vm351, %v356, %v355
      %vm358 = vcmp.lt.s32.totalorder %v194, 0
      %v359 = vsub.s32 0, %v194
      %v360 = vsel %vm358, %v359, %v194
      %v361 = vshrl.u32 %v360, 4
      %v362 = vand.u32 %v360, 15
      %v363 = vsub.s32 0, %v362
      %v364 = vsel %vm358, %v363, %v362
      %vm365 = vcmp.lt.s32.totalorder %v195, 0
      %v366 = vsub.s32 0, %v195
      %v367 = vsel %vm365, %v366, %v195
      %v368 = vshrl.u32 %v367, 4
      %v369 = vand.u32 %v367, 15
      %v370 = vsub.s32 0, %v369
      %v371 = vsel %vm365, %v370, %v369
      %vm372 = vcmp.lt.s32.totalorder %v196, 0
      %v373 = vsub.s32 0, %v196
      %v374 = vsel %vm372, %v373, %v196
      %v375 = vshrl.u32 %v374, 4
      %v376 = vand.u32 %v374, 15
      %v377 = vsub.s32 0, %v376
      %v378 = vsel %vm372, %v377, %v376
      %vm379 = vcmp.lt.s32.totalorder %v197, 0
      %v380 = vsub.s32 0, %v197
      %v381 = vsel %vm379, %v380, %v197
      %v382 = vshrl.u32 %v381, 4
      %v383 = vand.u32 %v381, 15
      %v384 = vsub.s32 0, %v383
      %v385 = vsel %vm379, %v384, %v383
      %vm386 = vcmp.lt.s32.totalorder %v198, 0
      %v387 = vsub.s32 0, %v198
      %v388 = vsel %vm386, %v387, %v198
      %v389 = vshrl.u32 %v388, 4
      %v390 = vand.u32 %v388, 15
      %v391 = vsub.s32 0, %v390
      %v392 = vsel %vm386, %v391, %v390
      %vm393 = vcmp.lt.s32.totalorder %v199, 0
      %v394 = vsub.s32 0, %v199
      %v395 = vsel %vm393, %v394, %v199
      %v396 = vshrl.u32 %v395, 4
      %v397 = vand.u32 %v395, 15
      %v398 = vsub.s32 0, %v397
      %v399 = vsel %vm393, %v398, %v397
      %vm400 = vcmp.lt.s32.totalorder %v200, 0
      %v401 = vsub.s32 0, %v200
      %v402 = vsel %vm400, %v401, %v200
      %v403 = vshrl.u32 %v402, 4
      %v404 = vand.u32 %v402, 15
      %v405 = vsub.s32 0, %v404
      %v406 = vsel %vm400, %v405, %v404
      %vm407 = vcmp.lt.s32.totalorder %v201, 0
      %v408 = vsub.s32 0, %v201
      %v409 = vsel %vm407, %v408, %v201
      %v410 = vshrl.u32 %v409, 4
      %v411 = vand.u32 %v409, 15
      %v412 = vsub.s32 0, %v411
      %v413 = vsel %vm407, %v412, %v411
      %vm414 = vcmp.lt.s32.totalorder %v202, 0
      %v415 = vsub.s32 0, %v202
      %v416 = vsel %vm414, %v415, %v202
      %v417 = vshrl.u32 %v416, 4
      %v418 = vand.u32 %v416, 15
      %v419 = vsub.s32 0, %v418
      %v420 = vsel %vm414, %v419, %v418
      %vm421 = vcmp.lt.s32.totalorder %v203, 0
      %v422 = vsub.s32 0, %v203
      %v423 = vsel %vm421, %v422, %v203
      %v424 = vshrl.u32 %v423, 4
      %v425 = vand.u32 %v423, 15
      %v426 = vsub.s32 0, %v425
      %v427 = vsel %vm421, %v426, %v425
      %vm428 = vcmp.ne.s32.totalorder %v210, 0
      %vm429 = vcmp.ne.s32.totalorder %v217, 0
      %vm430 = vcmp.ne.s32.totalorder %v224, 0
      %vm431 = vcmp.ne.s32.totalorder %v231, 0
      %vm432 = vcmp.ne.s32.totalorder %v238, 0
      %vm433 = vcmp.ne.s32.totalorder %v245, 0
      %vm434 = vcmp.ne.s32.totalorder %v252, 0
      %vm435 = vcmp.ne.s32.totalorder %v259, 0
      %vm436 = vcmp.ne.s32.totalorder %v266, 0
      %vm437 = vcmp.ne.s32.totalorder %v273, 0
      %vm438 = vcmp.ne.s32.totalorder %v280, 0
      %vm439 = vcmp.ne.s32.totalorder %v287, 0
      %vm440 = vcmp.ne.s32.totalorder %v294, 0
      %vm441 = vcmp.ne.s32.totalorder %v301, 0
      %vm442 = vcmp.ne.s32.totalorder %v308, 0
      %vm443 = vcmp.ne.s32.totalorder %v315, 0
      %vm444 = vcmp.ne.s32.totalorder %v322, 0
      %vm445 = vcmp.ne.s32.totalorder %v329, 0
      %vm446 = vcmp.ne.s32.totalorder %v336, 0
      %vm447 = vcmp.ne.s32.totalorder %v343, 0
      %vm448 = vcmp.ne.s32.totalorder %v350, 0
      %vm449 = vcmp.ne.s32.totalorder %v357, 0
      %vm450 = vcmp.ne.s32.totalorder %v364, 0
      %vm451 = vcmp.ne.s32.totalorder %v371, 0
      %vm452 = vcmp.ne.s32.totalorder %v378, 0
      %vm453 = vcmp.ne.s32.totalorder %v385, 0
      %vm454 = vcmp.ne.s32.totalorder %v392, 0
      %vm455 = vcmp.ne.s32.totalorder %v399, 0
      %vm456 = vcmp.ne.s32.totalorder %v406, 0
      %vm457 = vcmp.ne.s32.totalorder %v413, 0
      %vm458 = vcmp.ne.s32.totalorder %v420, 0
      %vm459 = vcmp.ne.s32.totalorder %v427, 0
      %vm460 = vcmp.lt.s32.totalorder %v210, 0
      %vm461 = vcmp.lt.s32.totalorder %v217, 0
      %vm462 = vcmp.lt.s32.totalorder %v224, 0
      %vm463 = vcmp.lt.s32.totalorder %v231, 0
      %vm464 = vcmp.lt.s32.totalorder %v238, 0
      %vm465 = vcmp.lt.s32.totalorder %v245, 0
      %vm466 = vcmp.lt.s32.totalorder %v252, 0
      %vm467 = vcmp.lt.s32.totalorder %v259, 0
      %vm468 = vcmp.lt.s32.totalorder %v266, 0
      %vm469 = vcmp.lt.s32.totalorder %v273, 0
      %vm470 = vcmp.lt.s32.totalorder %v280, 0
      %vm471 = vcmp.lt.s32.totalorder %v287, 0
      %vm472 = vcmp.lt.s32.totalorder %v294, 0
      %vm473 = vcmp.lt.s32.totalorder %v301, 0
      %vm474 = vcmp.lt.s32.totalorder %v308, 0
      %vm475 = vcmp.lt.s32.totalorder %v315, 0
      %vm476 = vcmp.lt.s32.totalorder %v322, 0
      %vm477 = vcmp.lt.s32.totalorder %v329, 0
      %vm478 = vcmp.lt.s32.totalorder %v336, 0
      %vm479 = vcmp.lt.s32.totalorder %v343, 0
      %vm480 = vcmp.lt.s32.totalorder %v350, 0
      %vm481 = vcmp.lt.s32.totalorder %v357, 0
      %vm482 = vcmp.lt.s32.totalorder %v364, 0
      %vm483 = vcmp.lt.s32.totalorder %v371, 0
      %vm484 = vcmp.lt.s32.totalorder %v378, 0
      %vm485 = vcmp.lt.s32.totalorder %v385, 0
      %vm486 = vcmp.lt.s32.totalorder %v392, 0
      %vm487 = vcmp.lt.s32.totalorder %v399, 0
      %vm488 = vcmp.lt.s32.totalorder %v406, 0
      %vm489 = vcmp.lt.s32.totalorder %v413, 0
      %vm490 = vcmp.lt.s32.totalorder %v420, 0
      %vm491 = vcmp.lt.s32.totalorder %v427, 0
      %vm492 = vmand %vm460, %vm428
      %vm493 = vmand %vm461, %vm429
      %vm494 = vmand %vm462, %vm430
      %vm495 = vmand %vm463, %vm431
      %vm496 = vmand %vm464, %vm432
      %vm497 = vmand %vm465, %vm433
      %vm498 = vmand %vm466, %vm434
      %vm499 = vmand %vm467, %vm435
      %vm500 = vmand %vm468, %vm436
      %vm501 = vmand %vm469, %vm437
      %vm502 = vmand %vm470, %vm438
      %vm503 = vmand %vm471, %vm439
      %vm504 = vmand %vm472, %vm440
      %vm505 = vmand %vm473, %vm441
      %vm506 = vmand %vm474, %vm442
      %vm507 = vmand %vm475, %vm443
      %vm508 = vmand %vm476, %vm444
      %vm509 = vmand %vm477, %vm445
      %vm510 = vmand %vm478, %vm446
      %vm511 = vmand %vm479, %vm447
      %vm512 = vmand %vm480, %vm448
      %vm513 = vmand %vm481, %vm449
      %vm514 = vmand %vm482, %vm450
      %vm515 = vmand %vm483, %vm451
      %vm516 = vmand %vm484, %vm452
      %vm517 = vmand %vm485, %vm453
      %vm518 = vmand %vm486, %vm454
      %vm519 = vmand %vm487, %vm455
      %vm520 = vmand %vm488, %vm456
      %vm521 = vmand %vm489, %vm457
      %vm522 = vmand %vm490, %vm458
      %vm523 = vmand %vm491, %vm459
      %v524 = vadd.s32 %v210, 16
      %v525 = vadd.s32 %v217, 16
      %v526 = vadd.s32 %v224, 16
      %v527 = vadd.s32 %v231, 16
      %v528 = vadd.s32 %v238, 16
      %v529 = vadd.s32 %v245, 16
      %v530 = vadd.s32 %v252, 16
      %v531 = vadd.s32 %v259, 16
      %v532 = vadd.s32 %v266, 16
      %v533 = vadd.s32 %v273, 16
      %v534 = vadd.s32 %v280, 16
      %v535 = vadd.s32 %v287, 16
      %v536 = vadd.s32 %v294, 16
      %v537 = vadd.s32 %v301, 16
      %v538 = vadd.s32 %v308, 16
      %v539 = vadd.s32 %v315, 16
      %v540 = vadd.s32 %v322, 16
      %v541 = vadd.s32 %v329, 16
      %v542 = vadd.s32 %v336, 16
      %v543 = vadd.s32 %v343, 16
      %v544 = vadd.s32 %v350, 16
      %v545 = vadd.s32 %v357, 16
      %v546 = vadd.s32 %v364, 16
      %v547 = vadd.s32 %v371, 16
      %v548 = vadd.s32 %v378, 16
      %v549 = vadd.s32 %v385, 16
      %v550 = vadd.s32 %v392, 16
      %v551 = vadd.s32 %v399, 16
      %v552 = vadd.s32 %v406, 16
      %v553 = vadd.s32 %v413, 16
      %v554 = vadd.s32 %v420, 16
      %v555 = vadd.s32 %v427, 16
      %v556 = vsel %vm492, %v524, %v210
      %v557 = vsel %vm493, %v525, %v217
      %v558 = vsel %vm494, %v526, %v224
      %v559 = vsel %vm495, %v527, %v231
      %v560 = vsel %vm496, %v528, %v238
      %v561 = vsel %vm497, %v529, %v245
      %v562 = vsel %vm498, %v530, %v252
      %v563 = vsel %vm499, %v531, %v259
      %v564 = vsel %vm500, %v532, %v266
      %v565 = vsel %vm501, %v533, %v273
      %v566 = vsel %vm502, %v534, %v280
      %v567 = vsel %vm503, %v535, %v287
      %v568 = vsel %vm504, %v536, %v294
      %v569 = vsel %vm505, %v537, %v301
      %v570 = vsel %vm506, %v538, %v308
      %v571 = vsel %vm507, %v539, %v315
      %v572 = vsel %vm508, %v540, %v322
      %v573 = vsel %vm509, %v541, %v329
      %v574 = vsel %vm510, %v542, %v336
      %v575 = vsel %vm511, %v543, %v343
      %v576 = vsel %vm512, %v544, %v350
      %v577 = vsel %vm513, %v545, %v357
      %v578 = vsel %vm514, %v546, %v364
      %v579 = vsel %vm515, %v547, %v371
      %v580 = vsel %vm516, %v548, %v378
      %v581 = vsel %vm517, %v549, %v385
      %v582 = vsel %vm518, %v550, %v392
      %v583 = vsel %vm519, %v551, %v399
      %v584 = vsel %vm520, %v552, %v406
      %v585 = vsel %vm521, %v553, %v413
      %v586 = vsel %vm522, %v554, %v420
      %v587 = vsel %vm523, %v555, %v427
      %vm588 = vcmp.eq.s32.totalorder %v556, 0
      %vm589 = vcmp.eq.s32.totalorder %v557, 0
      %vm590 = vcmp.eq.s32.totalorder %v558, 0
      %vm591 = vcmp.eq.s32.totalorder %v559, 0
      %vm592 = vcmp.eq.s32.totalorder %v560, 0
      %vm593 = vcmp.eq.s32.totalorder %v561, 0
      %vm594 = vcmp.eq.s32.totalorder %v562, 0
      %vm595 = vcmp.eq.s32.totalorder %v563, 0
      %vm596 = vcmp.eq.s32.totalorder %v564, 0
      %vm597 = vcmp.eq.s32.totalorder %v565, 0
      %vm598 = vcmp.eq.s32.totalorder %v566, 0
      %vm599 = vcmp.eq.s32.totalorder %v567, 0
      %vm600 = vcmp.eq.s32.totalorder %v568, 0
      %vm601 = vcmp.eq.s32.totalorder %v569, 0
      %vm602 = vcmp.eq.s32.totalorder %v570, 0
      %vm603 = vcmp.eq.s32.totalorder %v571, 0
      %vm604 = vcmp.eq.s32.totalorder %v572, 0
      %vm605 = vcmp.eq.s32.totalorder %v573, 0
      %vm606 = vcmp.eq.s32.totalorder %v574, 0
      %vm607 = vcmp.eq.s32.totalorder %v575, 0
      %vm608 = vcmp.eq.s32.totalorder %v576, 0
      %vm609 = vcmp.eq.s32.totalorder %v577, 0
      %vm610 = vcmp.eq.s32.totalorder %v578, 0
      %vm611 = vcmp.eq.s32.totalorder %v579, 0
      %vm612 = vcmp.eq.s32.totalorder %v580, 0
      %vm613 = vcmp.eq.s32.totalorder %v581, 0
      %vm614 = vcmp.eq.s32.totalorder %v582, 0
      %vm615 = vcmp.eq.s32.totalorder %v583, 0
      %vm616 = vcmp.eq.s32.totalorder %v584, 0
      %vm617 = vcmp.eq.s32.totalorder %v585, 0
      %vm618 = vcmp.eq.s32.totalorder %v586, 0
      %vm619 = vcmp.eq.s32.totalorder %v587, 0
      %vm620 = vcmp.eq.s32.totalorder %v556, 15
      %vm621 = vcmp.eq.s32.totalorder %v557, 15
      %vm622 = vcmp.eq.s32.totalorder %v558, 15
      %vm623 = vcmp.eq.s32.totalorder %v559, 15
      %vm624 = vcmp.eq.s32.totalorder %v560, 15
      %vm625 = vcmp.eq.s32.totalorder %v561, 15
      %vm626 = vcmp.eq.s32.totalorder %v562, 15
      %vm627 = vcmp.eq.s32.totalorder %v563, 15
      %vm628 = vcmp.eq.s32.totalorder %v564, 15
      %vm629 = vcmp.eq.s32.totalorder %v565, 15
      %vm630 = vcmp.eq.s32.totalorder %v566, 15
      %vm631 = vcmp.eq.s32.totalorder %v567, 15
      %vm632 = vcmp.eq.s32.totalorder %v568, 15
      %vm633 = vcmp.eq.s32.totalorder %v569, 15
      %vm634 = vcmp.eq.s32.totalorder %v570, 15
      %vm635 = vcmp.eq.s32.totalorder %v571, 15
      %vm636 = vcmp.eq.s32.totalorder %v572, 15
      %vm637 = vcmp.eq.s32.totalorder %v573, 15
      %vm638 = vcmp.eq.s32.totalorder %v574, 15
      %vm639 = vcmp.eq.s32.totalorder %v575, 15
      %vm640 = vcmp.eq.s32.totalorder %v576, 15
      %vm641 = vcmp.eq.s32.totalorder %v577, 15
      %vm642 = vcmp.eq.s32.totalorder %v578, 15
      %vm643 = vcmp.eq.s32.totalorder %v579, 15
      %vm644 = vcmp.eq.s32.totalorder %v580, 15
      %vm645 = vcmp.eq.s32.totalorder %v581, 15
      %vm646 = vcmp.eq.s32.totalorder %v582, 15
      %vm647 = vcmp.eq.s32.totalorder %v583, 15
      %vm648 = vcmp.eq.s32.totalorder %v584, 15
      %vm649 = vcmp.eq.s32.totalorder %v585, 15
      %vm650 = vcmp.eq.s32.totalorder %v586, 15
      %vm651 = vcmp.eq.s32.totalorder %v587, 15
      %v652 = vld [vmem:[%s165] sm:$0xff]
      %v653 = vld [vmem:[%s165 + $0x8] sm:$0xff]
      %v654 = vld [vmem:[%s165 + $0x10] sm:$0xff]
      %v655 = vld [vmem:[%s165 + $0x18] sm:$0xff]
      %v656 = vld [vmem:[%s165 + $0x20] sm:$0xff]
      %v657 = vld [vmem:[%s165 + $0x28] sm:$0xff]
      %v658 = vld [vmem:[%s165 + $0x30] sm:$0xff]
      %v659 = vld [vmem:[%s165 + $0x38] sm:$0xff]
      %v660 = vld [vmem:[%s165 + $0x40] sm:$0xff]
      %v661 = vld [vmem:[%s165 + $0x48] sm:$0xff]
      %v662 = vld [vmem:[%s165 + $0x50] sm:$0xff]
      %v663 = vld [vmem:[%s165 + $0x58] sm:$0xff]
      %v664 = vld [vmem:[%s165 + $0x60] sm:$0xff]
      %v665 = vld [vmem:[%s165 + $0x68] sm:$0xff]
      %v666 = vld [vmem:[%s165 + $0x70] sm:$0xff]
      %v667 = vld [vmem:[%s165 + $0x78] sm:$0xff]
      %v668 = vld [vmem:[%s165 + $0x80] sm:$0xff]
      %v669 = vld [vmem:[%s165 + $0x88] sm:$0xff]
      %v670 = vld [vmem:[%s165 + $0x90] sm:$0xff]
      %v671 = vld [vmem:[%s165 + $0x98] sm:$0xff]
      %v672 = vld [vmem:[%s165 + $0xa0] sm:$0xff]
      %v673 = vld [vmem:[%s165 + $0xa8] sm:$0xff]
      %v674 = vld [vmem:[%s165 + $0xb0] sm:$0xff]
      %v675 = vld [vmem:[%s165 + $0xb8] sm:$0xff]
      %v676 = vld [vmem:[%s165 + $0xc0] sm:$0xff]
      %v677 = vld [vmem:[%s165 + $0xc8] sm:$0xff]
      %v678 = vld [vmem:[%s165 + $0xd0] sm:$0xff]
      %v679 = vld [vmem:[%s165 + $0xd8] sm:$0xff]
      %v680 = vld [vmem:[%s165 + $0xe0] sm:$0xff]
      %v681 = vld [vmem:[%s165 + $0xe8] sm:$0xff]
      %v682 = vld [vmem:[%s165 + $0xf0] sm:$0xff]
      %v683 = vld [vmem:[%s165 + $0xf8] sm:$0xff]
      %vm684 = vcmask 31744
      %685 = vst.msk [vmem:[#allocation2] sm:$0xff] %vm684, %v652
      %686 = vst.msk [vmem:[#allocation2 + $0x8] sm:$0xff] %vm684, %v653
      %687 = vst.msk [vmem:[#allocation2 + $0x10] sm:$0xff] %vm684, %v652
      %688 = vst.msk [vmem:[#allocation2 + $0x18] sm:$0xff] %vm684, %v653
      %689 = vst.msk [vmem:[#allocation2 + $0x20] sm:$0xff] %vm684, %v652
      %690 = vst.msk [vmem:[#allocation2 + $0x28] sm:$0xff] %vm684, %v653
      %691 = vst.msk [vmem:[#allocation2 + $0x30] sm:$0xff] %vm684, %v654
      %692 = vst.msk [vmem:[#allocation2 + $0x38] sm:$0xff] %vm684, %v655
      %693 = vst.msk [vmem:[#allocation2 + $0x40] sm:$0xff] %vm684, %v656
      %694 = vst.msk [vmem:[#allocation2 + $0x48] sm:$0xff] %vm684, %v657
      %695 = vst.msk [vmem:[#allocation2 + $0x50] sm:$0xff] %vm684, %v658
      %696 = vst.msk [vmem:[#allocation2 + $0x58] sm:$0xff] %vm684, %v659
      %697 = vst.msk [vmem:[#allocation2 + $0x60] sm:$0xff] %vm684, %v660
      %698 = vst.msk [vmem:[#allocation2 + $0x68] sm:$0xff] %vm684, %v661
      %699 = vst.msk [vmem:[#allocation2 + $0x70] sm:$0xff] %vm684, %v662
      %700 = vst.msk [vmem:[#allocation2 + $0x78] sm:$0xff] %vm684, %v663
      %701 = vst.msk [vmem:[#allocation2 + $0x80] sm:$0xff] %vm684, %v664
      %702 = vst.msk [vmem:[#allocation2 + $0x88] sm:$0xff] %vm684, %v665
      %703 = vst.msk [vmem:[#allocation2 + $0x90] sm:$0xff] %vm684, %v666
      %704 = vst.msk [vmem:[#allocation2 + $0x98] sm:$0xff] %vm684, %v667
      %705 = vst.msk [vmem:[#allocation2 + $0xa0] sm:$0xff] %vm684, %v668
      %706 = vst.msk [vmem:[#allocation2 + $0xa8] sm:$0xff] %vm684, %v669
      %707 = vst.msk [vmem:[#allocation2 + $0xb0] sm:$0xff] %vm684, %v670
      %708 = vst.msk [vmem:[#allocation2 + $0xb8] sm:$0xff] %vm684, %v671
      %709 = vst.msk [vmem:[#allocation2 + $0xc0] sm:$0xff] %vm684, %v672
      %710 = vst.msk [vmem:[#allocation2 + $0xc8] sm:$0xff] %vm684, %v673
      %711 = vst.msk [vmem:[#allocation2 + $0xd0] sm:$0xff] %vm684, %v674
      %712 = vst.msk [vmem:[#allocation2 + $0xd8] sm:$0xff] %vm684, %v675
      %713 = vst.msk [vmem:[#allocation2 + $0xe0] sm:$0xff] %vm684, %v676
      %714 = vst.msk [vmem:[#allocation2 + $0xe8] sm:$0xff] %vm684, %v677
      %715 = vst.msk [vmem:[#allocation2 + $0xf0] sm:$0xff] %vm684, %v678
      %716 = vst.msk [vmem:[#allocation2 + $0xf8] sm:$0xff] %vm684, %v679
      %717 = vst.msk [vmem:[#allocation2 + $0x100] sm:$0xff] %vm684, %v680
      %718 = vst.msk [vmem:[#allocation2 + $0x108] sm:$0xff] %vm684, %v681
      %719 = vst.msk [vmem:[#allocation2 + $0x110] sm:$0xff] %vm684, %v682
      %720 = vst.msk [vmem:[#allocation2 + $0x118] sm:$0xff] %vm684, %v683
      %721 = vst.msk [vmem:[#allocation2 + $0x120] sm:$0xff] %vm684, %v682
      %722 = vst.msk [vmem:[#allocation2 + $0x128] sm:$0xff] %vm684, %v683
      %723 = vst.msk [vmem:[#allocation2 + $0x130] sm:$0xff] %vm684, %v682
      %724 = vst.msk [vmem:[#allocation2 + $0x138] sm:$0xff] %vm684, %v683
      %v725 = vld [vmem:[#allocation2 + $0x10] sm:$0xff]
      %v726 = vld [vmem:[#allocation2 + $0x18] sm:$0xff]
      %v727 = vld [vmem:[#allocation2 + $0x20] sm:$0xff]
      %v728 = vld [vmem:[#allocation2 + $0x28] sm:$0xff]
      %v729 = vld [vmem:[#allocation2 + $0x30] sm:$0xff]
      %v730 = vld [vmem:[#allocation2 + $0x38] sm:$0xff]
      %v731 = vld [vmem:[#allocation2 + $0x40] sm:$0xff]
      %v732 = vld [vmem:[#allocation2 + $0x48] sm:$0xff]
      %v733 = vld [vmem:[#allocation2 + $0x50] sm:$0xff]
      %v734 = vld [vmem:[#allocation2 + $0x58] sm:$0xff]
      %v735 = vld [vmem:[#allocation2 + $0x60] sm:$0xff]
      %v736 = vld [vmem:[#allocation2 + $0x68] sm:$0xff]
      %v737 = vld [vmem:[#allocation2 + $0x70] sm:$0xff]
      %v738 = vld [vmem:[#allocation2 + $0x78] sm:$0xff]
      %v739 = vld [vmem:[#allocation2 + $0x80] sm:$0xff]
      %v740 = vld [vmem:[#allocation2 + $0x88] sm:$0xff]
      %v741 = vld [vmem:[#allocation2 + $0x90] sm:$0xff]
      %v742 = vld [vmem:[#allocation2 + $0x98] sm:$0xff]
      %v743 = vld [vmem:[#allocation2 + $0xa0] sm:$0xff]
      %v744 = vld [vmem:[#allocation2 + $0xa8] sm:$0xff]
      %v745 = vld [vmem:[#allocation2 + $0xb0] sm:$0xff]
      %v746 = vld [vmem:[#allocation2 + $0xb8] sm:$0xff]
      %v747 = vld [vmem:[#allocation2 + $0xc0] sm:$0xff]
      %v748 = vld [vmem:[#allocation2 + $0xc8] sm:$0xff]
      %v749 = vld [vmem:[#allocation2 + $0xd0] sm:$0xff]
      %v750 = vld [vmem:[#allocation2 + $0xd8] sm:$0xff]
      %v751 = vld [vmem:[#allocation2 + $0xe0] sm:$0xff]
      %v752 = vld [vmem:[#allocation2 + $0xe8] sm:$0xff]
      %v753 = vld [vmem:[#allocation2 + $0xf0] sm:$0xff]
      %v754 = vld [vmem:[#allocation2 + $0xf8] sm:$0xff]
      %v755 = vld [vmem:[#allocation2 + $0x100] sm:$0xff]
      %v756 = vld [vmem:[#allocation2 + $0x108] sm:$0xff]
      %v757 = vld [vmem:[#allocation2 + $0xf] sm:$0xff]
      %v758 = vld [vmem:[#allocation2 + $0x17] sm:$0xff]
      %v759 = vld [vmem:[#allocation2 + $0x1f] sm:$0xff]
      %v760 = vld [vmem:[#allocation2 + $0x27] sm:$0xff]
      %v761 = vld [vmem:[#allocation2 + $0x2f] sm:$0xff]
      %v762 = vld [vmem:[#allocation2 + $0x37] sm:$0xff]
      %v763 = vld [vmem:[#allocation2 + $0x3f] sm:$0xff]
      %v764 = vld [vmem:[#allocation2 + $0x47] sm:$0xff]
      %v765 = vld [vmem:[#allocation2 + $0x4f] sm:$0xff]
      %v766 = vld [vmem:[#allocation2 + $0x57] sm:$0xff]
      %v767 = vld [vmem:[#allocation2 + $0x5f] sm:$0xff]
      %v768 = vld [vmem:[#allocation2 + $0x67] sm:$0xff]
      %v769 = vld [vmem:[#allocation2 + $0x6f] sm:$0xff]
      %v770 = vld [vmem:[#allocation2 + $0x77] sm:$0xff]
      %v771 = vld [vmem:[#allocation2 + $0x7f] sm:$0xff]
      %v772 = vld [vmem:[#allocation2 + $0x87] sm:$0xff]
      %v773 = vld [vmem:[#allocation2 + $0x8f] sm:$0xff]
      %v774 = vld [vmem:[#allocation2 + $0x97] sm:$0xff]
      %v775 = vld [vmem:[#allocation2 + $0x9f] sm:$0xff]
      %v776 = vld [vmem:[#allocation2 + $0xa7] sm:$0xff]
      %v777 = vld [vmem:[#allocation2 + $0xaf] sm:$0xff]
      %v778 = vld [vmem:[#allocation2 + $0xb7] sm:$0xff]
      %v779 = vld [vmem:[#allocation2 + $0xbf] sm:$0xff]
      %v780 = vld [vmem:[#allocation2 + $0xc7] sm:$0xff]
      %v781 = vld [vmem:[#allocation2 + $0xcf] sm:$0xff]
      %v782 = vld [vmem:[#allocation2 + $0xd7] sm:$0xff]
      %v783 = vld [vmem:[#allocation2 + $0xdf] sm:$0xff]
      %v784 = vld [vmem:[#allocation2 + $0xe7] sm:$0xff]
      %v785 = vld [vmem:[#allocation2 + $0xef] sm:$0xff]
      %v786 = vld [vmem:[#allocation2 + $0xf7] sm:$0xff]
      %v787 = vld [vmem:[#allocation2 + $0xff] sm:$0xff]
      %v788 = vld [vmem:[#allocation2 + $0x107] sm:$0xff]
      %v789 = vld [vmem:[#allocation2 + $0x11] sm:$0xff]
      %v790 = vld [vmem:[#allocation2 + $0x19] sm:$0xff]
      %v791 = vld [vmem:[#allocation2 + $0x21] sm:$0xff]
      %v792 = vld [vmem:[#allocation2 + $0x29] sm:$0xff]
      %v793 = vld [vmem:[#allocation2 + $0x31] sm:$0xff]
      %v794 = vld [vmem:[#allocation2 + $0x39] sm:$0xff]
      %v795 = vld [vmem:[#allocation2 + $0x41] sm:$0xff]
      %v796 = vld [vmem:[#allocation2 + $0x49] sm:$0xff]
      %v797 = vld [vmem:[#allocation2 + $0x51] sm:$0xff]
      %v798 = vld [vmem:[#allocation2 + $0x59] sm:$0xff]
      %v799 = vld [vmem:[#allocation2 + $0x61] sm:$0xff]
      %v800 = vld [vmem:[#allocation2 + $0x69] sm:$0xff]
      %v801 = vld [vmem:[#allocation2 + $0x71] sm:$0xff]
      %v802 = vld [vmem:[#allocation2 + $0x79] sm:$0xff]
      %v803 = vld [vmem:[#allocation2 + $0x81] sm:$0xff]
      %v804 = vld [vmem:[#allocation2 + $0x89] sm:$0xff]
      %v805 = vld [vmem:[#allocation2 + $0x91] sm:$0xff]
      %v806 = vld [vmem:[#allocation2 + $0x99] sm:$0xff]
      %v807 = vld [vmem:[#allocation2 + $0xa1] sm:$0xff]
      %v808 = vld [vmem:[#allocation2 + $0xa9] sm:$0xff]
      %v809 = vld [vmem:[#allocation2 + $0xb1] sm:$0xff]
      %v810 = vld [vmem:[#allocation2 + $0xb9] sm:$0xff]
      %v811 = vld [vmem:[#allocation2 + $0xc1] sm:$0xff]
      %v812 = vld [vmem:[#allocation2 + $0xc9] sm:$0xff]
      %v813 = vld [vmem:[#allocation2 + $0xd1] sm:$0xff]
      %v814 = vld [vmem:[#allocation2 + $0xd9] sm:$0xff]
      %v815 = vld [vmem:[#allocation2 + $0xe1] sm:$0xff]
      %v816 = vld [vmem:[#allocation2 + $0xe9] sm:$0xff]
      %v817 = vld [vmem:[#allocation2 + $0xf1] sm:$0xff]
      %v818 = vld [vmem:[#allocation2 + $0xf9] sm:$0xff]
      %v819 = vld [vmem:[#allocation2 + $0x101] sm:$0xff]
      %v820 = vld [vmem:[#allocation2 + $0x109] sm:$0xff]
      %v821 = vsel %vm588, 1, 0
      %v822 = vsel %vm589, 1, 0
      %v823 = vsel %vm590, 1, 0
      %v824 = vsel %vm591, 1, 0
      %v825 = vsel %vm592, 1, 0
      %v826 = vsel %vm593, 1, 0
      %v827 = vsel %vm594, 1, 0
      %v828 = vsel %vm595, 1, 0
      %v829 = vsel %vm596, 1, 0
      %v830 = vsel %vm597, 1, 0
      %v831 = vsel %vm598, 1, 0
      %v832 = vsel %vm599, 1, 0
      %v833 = vsel %vm600, 1, 0
      %v834 = vsel %vm601, 1, 0
      %v835 = vsel %vm602, 1, 0
      %v836 = vsel %vm603, 1, 0
      %v837 = vsel %vm604, 1, 0
      %v838 = vsel %vm605, 1, 0
      %v839 = vsel %vm606, 1, 0
      %v840 = vsel %vm607, 1, 0
      %v841 = vsel %vm608, 1, 0
      %v842 = vsel %vm609, 1, 0
      %v843 = vsel %vm610, 1, 0
      %v844 = vsel %vm611, 1, 0
      %v845 = vsel %vm612, 1, 0
      %v846 = vsel %vm613, 1, 0
      %v847 = vsel %vm614, 1, 0
      %v848 = vsel %vm615, 1, 0
      %v849 = vsel %vm616, 1, 0
      %v850 = vsel %vm617, 1, 0
      %v851 = vsel %vm618, 1, 0
      %v852 = vsel %vm619, 1, 0
      %vm853 = vcmp.eq.s32.totalorder %v821, 1
      %vm854 = vcmp.eq.s32.totalorder %v822, 1
      %vm855 = vcmp.eq.s32.totalorder %v823, 1
      %vm856 = vcmp.eq.s32.totalorder %v824, 1
      %vm857 = vcmp.eq.s32.totalorder %v825, 1
      %vm858 = vcmp.eq.s32.totalorder %v826, 1
      %vm859 = vcmp.eq.s32.totalorder %v827, 1
      %vm860 = vcmp.eq.s32.totalorder %v828, 1
      %vm861 = vcmp.eq.s32.totalorder %v829, 1
      %vm862 = vcmp.eq.s32.totalorder %v830, 1
      %vm863 = vcmp.eq.s32.totalorder %v831, 1
      %vm864 = vcmp.eq.s32.totalorder %v832, 1
      %vm865 = vcmp.eq.s32.totalorder %v833, 1
      %vm866 = vcmp.eq.s32.totalorder %v834, 1
      %vm867 = vcmp.eq.s32.totalorder %v835, 1
      %vm868 = vcmp.eq.s32.totalorder %v836, 1
      %vm869 = vcmp.eq.s32.totalorder %v837, 1
      %vm870 = vcmp.eq.s32.totalorder %v838, 1
      %vm871 = vcmp.eq.s32.totalorder %v839, 1
      %vm872 = vcmp.eq.s32.totalorder %v840, 1
      %vm873 = vcmp.eq.s32.totalorder %v841, 1
      %vm874 = vcmp.eq.s32.totalorder %v842, 1
      %vm875 = vcmp.eq.s32.totalorder %v843, 1
      %vm876 = vcmp.eq.s32.totalorder %v844, 1
      %vm877 = vcmp.eq.s32.totalorder %v845, 1
      %vm878 = vcmp.eq.s32.totalorder %v846, 1
      %vm879 = vcmp.eq.s32.totalorder %v847, 1
      %vm880 = vcmp.eq.s32.totalorder %v848, 1
      %vm881 = vcmp.eq.s32.totalorder %v849, 1
      %vm882 = vcmp.eq.s32.totalorder %v850, 1
      %vm883 = vcmp.eq.s32.totalorder %v851, 1
      %vm884 = vcmp.eq.s32.totalorder %v852, 1
      %v885 = vsel %vm853, %v725, %v757
      %v886 = vsel %vm854, %v726, %v758
      %v887 = vsel %vm855, %v727, %v759
      %v888 = vsel %vm856, %v728, %v760
      %v889 = vsel %vm857, %v729, %v761
      %v890 = vsel %vm858, %v730, %v762
      %v891 = vsel %vm859, %v731, %v763
      %v892 = vsel %vm860, %v732, %v764
      %v893 = vsel %vm861, %v733, %v765
      %v894 = vsel %vm862, %v734, %v766
      %v895 = vsel %vm863, %v735, %v767
      %v896 = vsel %vm864, %v736, %v768
      %v897 = vsel %vm865, %v737, %v769
      %v898 = vsel %vm866, %v738, %v770
      %v899 = vsel %vm867, %v739, %v771
      %v900 = vsel %vm868, %v740, %v772
      %v901 = vsel %vm869, %v741, %v773
      %v902 = vsel %vm870, %v742, %v774
      %v903 = vsel %vm871, %v743, %v775
      %v904 = vsel %vm872, %v744, %v776
      %v905 = vsel %vm873, %v745, %v777
      %v906 = vsel %vm874, %v746, %v778
      %v907 = vsel %vm875, %v747, %v779
      %v908 = vsel %vm876, %v748, %v780
      %v909 = vsel %vm877, %v749, %v781
      %v910 = vsel %vm878, %v750, %v782
      %v911 = vsel %vm879, %v751, %v783
      %v912 = vsel %vm880, %v752, %v784
      %v913 = vsel %vm881, %v753, %v785
      %v914 = vsel %vm882, %v754, %v786
      %v915 = vsel %vm883, %v755, %v787
      %v916 = vsel %vm884, %v756, %v788
      %v917 = vsel %vm620, 1, 0
      %v918 = vsel %vm621, 1, 0
      %v919 = vsel %vm622, 1, 0
      %v920 = vsel %vm623, 1, 0
      %v921 = vsel %vm624, 1, 0
      %v922 = vsel %vm625, 1, 0
      %v923 = vsel %vm626, 1, 0
      %v924 = vsel %vm627, 1, 0
      %v925 = vsel %vm628, 1, 0
      %v926 = vsel %vm629, 1, 0
      %v927 = vsel %vm630, 1, 0
      %v928 = vsel %vm631, 1, 0
      %v929 = vsel %vm632, 1, 0
      %v930 = vsel %vm633, 1, 0
      %v931 = vsel %vm634, 1, 0
      %v932 = vsel %vm635, 1, 0
      %v933 = vsel %vm636, 1, 0
      %v934 = vsel %vm637, 1, 0
      %v935 = vsel %vm638, 1, 0
      %v936 = vsel %vm639, 1, 0
      %v937 = vsel %vm640, 1, 0
      %v938 = vsel %vm641, 1, 0
      %v939 = vsel %vm642, 1, 0
      %v940 = vsel %vm643, 1, 0
      %v941 = vsel %vm644, 1, 0
      %v942 = vsel %vm645, 1, 0
      %v943 = vsel %vm646, 1, 0
      %v944 = vsel %vm647, 1, 0
      %v945 = vsel %vm648, 1, 0
      %v946 = vsel %vm649, 1, 0
      %v947 = vsel %vm650, 1, 0
      %v948 = vsel %vm651, 1, 0
      %vm949 = vcmp.eq.s32.totalorder %v917, 1
      %vm950 = vcmp.eq.s32.totalorder %v918, 1
      %vm951 = vcmp.eq.s32.totalorder %v919, 1
      %vm952 = vcmp.eq.s32.totalorder %v920, 1
      %vm953 = vcmp.eq.s32.totalorder %v921, 1
      %vm954 = vcmp.eq.s32.totalorder %v922, 1
      %vm955 = vcmp.eq.s32.totalorder %v923, 1
      %vm956 = vcmp.eq.s32.totalorder %v924, 1
      %vm957 = vcmp.eq.s32.totalorder %v925, 1
      %vm958 = vcmp.eq.s32.totalorder %v926, 1
      %vm959 = vcmp.eq.s32.totalorder %v927, 1
      %vm960 = vcmp.eq.s32.totalorder %v928, 1
      %vm961 = vcmp.eq.s32.totalorder %v929, 1
      %vm962 = vcmp.eq.s32.totalorder %v930, 1
      %vm963 = vcmp.eq.s32.totalorder %v931, 1
      %vm964 = vcmp.eq.s32.totalorder %v932, 1
      %vm965 = vcmp.eq.s32.totalorder %v933, 1
      %vm966 = vcmp.eq.s32.totalorder %v934, 1
      %vm967 = vcmp.eq.s32.totalorder %v935, 1
      %vm968 = vcmp.eq.s32.totalorder %v936, 1
      %vm969 = vcmp.eq.s32.totalorder %v937, 1
      %vm970 = vcmp.eq.s32.totalorder %v938, 1
      %vm971 = vcmp.eq.s32.totalorder %v939, 1
      %vm972 = vcmp.eq.s32.totalorder %v940, 1
      %vm973 = vcmp.eq.s32.totalorder %v941, 1
      %vm974 = vcmp.eq.s32.totalorder %v942, 1
      %vm975 = vcmp.eq.s32.totalorder %v943, 1
      %vm976 = vcmp.eq.s32.totalorder %v944, 1
      %vm977 = vcmp.eq.s32.totalorder %v945, 1
      %vm978 = vcmp.eq.s32.totalorder %v946, 1
      %vm979 = vcmp.eq.s32.totalorder %v947, 1
      %vm980 = vcmp.eq.s32.totalorder %v948, 1
      %v981 = vsel %vm949, %v725, %v789
      %v982 = vsel %vm950, %v726, %v790
      %v983 = vsel %vm951, %v727, %v791
      %v984 = vsel %vm952, %v728, %v792
      %v985 = vsel %vm953, %v729, %v793
      %v986 = vsel %vm954, %v730, %v794
      %v987 = vsel %vm955, %v731, %v795
      %v988 = vsel %vm956, %v732, %v796
      %v989 = vsel %vm957, %v733, %v797
      %v990 = vsel %vm958, %v734, %v798
      %v991 = vsel %vm959, %v735, %v799
      %v992 = vsel %vm960, %v736, %v800
      %v993 = vsel %vm961, %v737, %v801
      %v994 = vsel %vm962, %v738, %v802
      %v995 = vsel %vm963, %v739, %v803
      %v996 = vsel %vm964, %v740, %v804
      %v997 = vsel %vm965, %v741, %v805
      %v998 = vsel %vm966, %v742, %v806
      %v999 = vsel %vm967, %v743, %v807
      %v1000 = vsel %vm968, %v744, %v808
      %v1001 = vsel %vm969, %v745, %v809
      %v1002 = vsel %vm970, %v746, %v810
      %v1003 = vsel %vm971, %v747, %v811
      %v1004 = vsel %vm972, %v748, %v812
      %v1005 = vsel %vm973, %v749, %v813
      %v1006 = vsel %vm974, %v750, %v814
      %v1007 = vsel %vm975, %v751, %v815
      %v1008 = vsel %vm976, %v752, %v816
      %v1009 = vsel %vm977, %v753, %v817
      %v1010 = vsel %vm978, %v754, %v818
      %v1011 = vsel %vm979, %v755, %v819
      %v1012 = vsel %vm980, %v756, %v820
      %v1013 = vld [vmem:[%s1] sm:$0xf]
      %s1014 = scalar_lea.vmem %s1, 4
      %v1015 = vld [vmem:[%s1014] sm:$0xf]
      %v1017 = vsel %vm684, %v725, 0
      %v1020 = vsel %vm684, %v726, 0
      %v1023 = vsel %vm684, %v727, 0
      %v1026 = vsel %vm684, %v728, 0
      %v1029 = vsel %vm684, %v729, 0
      %v1032 = vsel %vm684, %v730, 0
      %v1035 = vsel %vm684, %v731, 0
      %v1038 = vsel %vm684, %v732, 0
      %v1041 = vsel %vm684, %v733, 0
      %v1044 = vsel %vm684, %v734, 0
      %v1047 = vsel %vm684, %v735, 0
      %v1050 = vsel %vm684, %v736, 0
      %v1053 = vsel %vm684, %v737, 0
      %v1056 = vsel %vm684, %v738, 0
      %v1059 = vsel %vm684, %v739, 0
      %v1062 = vsel %vm684, %v740, 0
      %v1065 = vsel %vm684, %v741, 0
      %v1068 = vsel %vm684, %v742, 0
      %v1071 = vsel %vm684, %v743, 0
      %v1074 = vsel %vm684, %v744, 0
      %v1077 = vsel %vm684, %v745, 0
      %v1080 = vsel %vm684, %v746, 0
      %v1083 = vsel %vm684, %v747, 0
      %v1086 = vsel %vm684, %v748, 0
      %v1089 = vsel %vm684, %v749, 0
      %v1092 = vsel %vm684, %v750, 0
      %v1095 = vsel %vm684, %v751, 0
      %v1098 = vsel %vm684, %v752, 0
      %v1101 = vsel %vm684, %v753, 0
      %v1104 = vsel %vm684, %v754, 0
      %v1107 = vsel %vm684, %v755, 0
      %v1110 = vsel %vm684, %v756, 0
      %vm1112 = vcmask 1043456
      %v1114 = vsel %vm1112, %v1015, 0
      %1116 = vmatpush.msra.mxu0 0.0
      %1117 = vmatpush.msra.mxu0 0.0
      %1118 = vmatpush.msra.mxu0 0.0
      %1119 = vmatpush.msra.mxu0 0.0
      %1120 = vmatpush.msra.mxu0 0.0
      %1121 = vmatpush.msra.mxu0 0.0
      %1122 = vmatpush.msra.mxu0 0.0
      %1123 = vmatpush.msra.mxu0 0.0
      %1124 = vmatpush.msra.mxu0 0.0
      %1125 = vmatpush.msra.mxu0 0.0
      %1126 = vmatpush.msra.mxu0 0.0
      %1127 = vmatpush.msra.mxu0 0.0
      %1128 = vmatpush.msra.mxu0 0.0
      %1129 = vmatpush.msra.mxu0 0.0
      %1130 = vmatpush.msra.mxu0 0.0
      %1131 = vmatpush.msra.mxu0 %v1114
      %1132 = vmatmul.f32.gmra.mxu0 %v1017
      %v1133 = vpop.f32.mrf.mxu0
      %v1134 = vadd.f32 0.0, %v1133
      %1135 = vmatmul.f32.gmra.mxu0 %v1020
      %v1136 = vpop.f32.mrf.mxu0
      %v1137 = vadd.f32 0.0, %v1136
      %1138 = vmatmul.f32.gmra.mxu0 %v1023
      %v1139 = vpop.f32.mrf.mxu0
      %v1140 = vadd.f32 0.0, %v1139
      %1141 = vmatmul.f32.gmra.mxu0 %v1026
      %v1142 = vpop.f32.mrf.mxu0
      %v1143 = vadd.f32 0.0, %v1142
      %1144 = vmatmul.f32.gmra.mxu0 %v1029
      %v1145 = vpop.f32.mrf.mxu0
      %v1146 = vadd.f32 0.0, %v1145
      %1147 = vmatmul.f32.gmra.mxu0 %v1032
      %v1148 = vpop.f32.mrf.mxu0
      %v1149 = vadd.f32 0.0, %v1148
      %1150 = vmatmul.f32.gmra.mxu0 %v1035
      %v1151 = vpop.f32.mrf.mxu0
      %v1152 = vadd.f32 0.0, %v1151
      %1153 = vmatmul.f32.gmra.mxu0 %v1038
      %v1154 = vpop.f32.mrf.mxu0
      %v1155 = vadd.f32 0.0, %v1154
      %1156 = vmatmul.f32.gmra.mxu0 %v1041
      %v1157 = vpop.f32.mrf.mxu0
      %v1158 = vadd.f32 0.0, %v1157
      %1159 = vmatmul.f32.gmra.mxu0 %v1044
      %v1160 = vpop.f32.mrf.mxu0
      %v1161 = vadd.f32 0.0, %v1160
      %1162 = vmatmul.f32.gmra.mxu0 %v1047
      %v1163 = vpop.f32.mrf.mxu0
      %v1164 = vadd.f32 0.0, %v1163
      %1165 = vmatmul.f32.gmra.mxu0 %v1050
      %v1166 = vpop.f32.mrf.mxu0
      %v1167 = vadd.f32 0.0, %v1166
      %1168 = vmatmul.f32.gmra.mxu0 %v1053
      %v1169 = vpop.f32.mrf.mxu0
      %v1170 = vadd.f32 0.0, %v1169
      %1171 = vmatmul.f32.gmra.mxu0 %v1056
      %v1172 = vpop.f32.mrf.mxu0
      %v1173 = vadd.f32 0.0, %v1172
      %1174 = vmatmul.f32.gmra.mxu0 %v1059
      %v1175 = vpop.f32.mrf.mxu0
      %v1176 = vadd.f32 0.0, %v1175
      %1177 = vmatmul.f32.gmra.mxu0 %v1062
      %v1178 = vpop.f32.mrf.mxu0
      %v1179 = vadd.f32 0.0, %v1178
      %1180 = vmatmul.f32.gmra.mxu0 %v1065
      %v1181 = vpop.f32.mrf.mxu0
      %v1182 = vadd.f32 0.0, %v1181
      %1183 = vmatmul.f32.gmra.mxu0 %v1068
      %v1184 = vpop.f32.mrf.mxu0
      %v1185 = vadd.f32 0.0, %v1184
      %1186 = vmatmul.f32.gmra.mxu0 %v1071
      %v1187 = vpop.f32.mrf.mxu0
      %v1188 = vadd.f32 0.0, %v1187
      %1189 = vmatmul.f32.gmra.mxu0 %v1074
      %v1190 = vpop.f32.mrf.mxu0
      %v1191 = vadd.f32 0.0, %v1190
      %1192 = vmatmul.f32.gmra.mxu0 %v1077
      %v1193 = vpop.f32.mrf.mxu0
      %v1194 = vadd.f32 0.0, %v1193
      %1195 = vmatmul.f32.gmra.mxu0 %v1080
      %v1196 = vpop.f32.mrf.mxu0
      %v1197 = vadd.f32 0.0, %v1196
      %1198 = vmatmul.f32.gmra.mxu0 %v1083
      %v1199 = vpop.f32.mrf.mxu0
      %v1200 = vadd.f32 0.0, %v1199
      %1201 = vmatmul.f32.gmra.mxu0 %v1086
      %v1202 = vpop.f32.mrf.mxu0
      %v1203 = vadd.f32 0.0, %v1202
      %1204 = vmatmul.f32.gmra.mxu0 %v1089
      %v1205 = vpop.f32.mrf.mxu0
      %v1206 = vadd.f32 0.0, %v1205
      %1207 = vmatmul.f32.gmra.mxu0 %v1092
      %v1208 = vpop.f32.mrf.mxu0
      %v1209 = vadd.f32 0.0, %v1208
      %1210 = vmatmul.f32.gmra.mxu0 %v1095
      %v1211 = vpop.f32.mrf.mxu0
      %v1212 = vadd.f32 0.0, %v1211
      %1213 = vmatmul.f32.gmra.mxu0 %v1098
      %v1214 = vpop.f32.mrf.mxu0
      %v1215 = vadd.f32 0.0, %v1214
      %1216 = vmatmul.f32.gmra.mxu0 %v1101
      %v1217 = vpop.f32.mrf.mxu0
      %v1218 = vadd.f32 0.0, %v1217
      %1219 = vmatmul.f32.gmra.mxu0 %v1104
      %v1220 = vpop.f32.mrf.mxu0
      %v1221 = vadd.f32 0.0, %v1220
      %1222 = vmatmul.f32.gmra.mxu0 %v1107
      %v1223 = vpop.f32.mrf.mxu0
      %v1224 = vadd.f32 0.0, %v1223
      %1225 = vmatmul.f32.gmra.mxu0 %v1110
      %v1226 = vpop.f32.mrf.mxu0
      %v1227 = vadd.f32 0.0, %v1226
      %1228 = vdwg.mxu0
      %v1230 = vsel %vm684, %v885, 0
      %v1233 = vsel %vm684, %v886, 0
      %v1236 = vsel %vm684, %v887, 0
      %v1239 = vsel %vm684, %v888, 0
      %v1242 = vsel %vm684, %v889, 0
      %v1245 = vsel %vm684, %v890, 0
      %v1248 = vsel %vm684, %v891, 0
      %v1251 = vsel %vm684, %v892, 0
      %v1254 = vsel %vm684, %v893, 0
      %v1257 = vsel %vm684, %v894, 0
      %v1260 = vsel %vm684, %v895, 0
      %v1263 = vsel %vm684, %v896, 0
      %v1266 = vsel %vm684, %v897, 0
      %v1269 = vsel %vm684, %v898, 0
      %v1272 = vsel %vm684, %v899, 0
      %v1275 = vsel %vm684, %v900, 0
      %v1278 = vsel %vm684, %v901, 0
      %v1281 = vsel %vm684, %v902, 0
      %v1284 = vsel %vm684, %v903, 0
      %v1287 = vsel %vm684, %v904, 0
      %v1290 = vsel %vm684, %v905, 0
      %v1293 = vsel %vm684, %v906, 0
      %v1296 = vsel %vm684, %v907, 0
      %v1299 = vsel %vm684, %v908, 0
      %v1302 = vsel %vm684, %v909, 0
      %v1305 = vsel %vm684, %v910, 0
      %v1308 = vsel %vm684, %v911, 0
      %v1311 = vsel %vm684, %v912, 0
      %v1314 = vsel %vm684, %v913, 0
      %v1317 = vsel %vm684, %v914, 0
      %v1320 = vsel %vm684, %v915, 0
      %v1323 = vsel %vm684, %v916, 0
      %v1326 = vsel %vm1112, %v1013, 0
      %1328 = vmatpush.msra.mxu0 0.0
      %1329 = vmatpush.msra.mxu0 0.0
      %1330 = vmatpush.msra.mxu0 0.0
      %1331 = vmatpush.msra.mxu0 0.0
      %1332 = vmatpush.msra.mxu0 0.0
      %1333 = vmatpush.msra.mxu0 0.0
      %1334 = vmatpush.msra.mxu0 0.0
      %1335 = vmatpush.msra.mxu0 0.0
      %1336 = vmatpush.msra.mxu0 0.0
      %1337 = vmatpush.msra.mxu0 0.0
      %1338 = vmatpush.msra.mxu0 0.0
      %1339 = vmatpush.msra.mxu0 0.0
      %1340 = vmatpush.msra.mxu0 0.0
      %1341 = vmatpush.msra.mxu0 0.0
      %1342 = vmatpush.msra.mxu0 0.0
      %1343 = vmatpush.msra.mxu0 %v1326
      %1344 = vmatmul.f32.gmra.mxu0 %v1230
      %v1345 = vpop.f32.mrf.mxu0
      %v1346 = vadd.f32 %v1134, %v1345
      %1347 = vmatmul.f32.gmra.mxu0 %v1233
      %v1348 = vpop.f32.mrf.mxu0
      %v1349 = vadd.f32 %v1137, %v1348
      %1350 = vmatmul.f32.gmra.mxu0 %v1236
      %v1351 = vpop.f32.mrf.mxu0
      %v1352 = vadd.f32 %v1140, %v1351
      %1353 = vmatmul.f32.gmra.mxu0 %v1239
      %v1354 = vpop.f32.mrf.mxu0
      %v1355 = vadd.f32 %v1143, %v1354
      %1356 = vmatmul.f32.gmra.mxu0 %v1242
      %v1357 = vpop.f32.mrf.mxu0
      %v1358 = vadd.f32 %v1146, %v1357
      %1359 = vmatmul.f32.gmra.mxu0 %v1245
      %v1360 = vpop.f32.mrf.mxu0
      %v1361 = vadd.f32 %v1149, %v1360
      %1362 = vmatmul.f32.gmra.mxu0 %v1248
      %v1363 = vpop.f32.mrf.mxu0
      %v1364 = vadd.f32 %v1152, %v1363
      %1365 = vmatmul.f32.gmra.mxu0 %v1251
      %v1366 = vpop.f32.mrf.mxu0
      %v1367 = vadd.f32 %v1155, %v1366
      %1368 = vmatmul.f32.gmra.mxu0 %v1254
      %v1369 = vpop.f32.mrf.mxu0
      %v1370 = vadd.f32 %v1158, %v1369
      %1371 = vmatmul.f32.gmra.mxu0 %v1257
      %v1372 = vpop.f32.mrf.mxu0
      %v1373 = vadd.f32 %v1161, %v1372
      %1374 = vmatmul.f32.gmra.mxu0 %v1260
      %v1375 = vpop.f32.mrf.mxu0
      %v1376 = vadd.f32 %v1164, %v1375
      %1377 = vmatmul.f32.gmra.mxu0 %v1263
      %v1378 = vpop.f32.mrf.mxu0
      %v1379 = vadd.f32 %v1167, %v1378
      %1380 = vmatmul.f32.gmra.mxu0 %v1266
      %v1381 = vpop.f32.mrf.mxu0
      %v1382 = vadd.f32 %v1170, %v1381
      %1383 = vmatmul.f32.gmra.mxu0 %v1269
      %v1384 = vpop.f32.mrf.mxu0
      %v1385 = vadd.f32 %v1173, %v1384
      %1386 = vmatmul.f32.gmra.mxu0 %v1272
      %v1387 = vpop.f32.mrf.mxu0
      %v1388 = vadd.f32 %v1176, %v1387
      %1389 = vmatmul.f32.gmra.mxu0 %v1275
      %v1390 = vpop.f32.mrf.mxu0
      %v1391 = vadd.f32 %v1179, %v1390
      %1392 = vmatmul.f32.gmra.mxu0 %v1278
      %v1393 = vpop.f32.mrf.mxu0
      %v1394 = vadd.f32 %v1182, %v1393
      %1395 = vmatmul.f32.gmra.mxu0 %v1281
      %v1396 = vpop.f32.mrf.mxu0
      %v1397 = vadd.f32 %v1185, %v1396
      %1398 = vmatmul.f32.gmra.mxu0 %v1284
      %v1399 = vpop.f32.mrf.mxu0
      %v1400 = vadd.f32 %v1188, %v1399
      %1401 = vmatmul.f32.gmra.mxu0 %v1287
      %v1402 = vpop.f32.mrf.mxu0
      %v1403 = vadd.f32 %v1191, %v1402
      %1404 = vmatmul.f32.gmra.mxu0 %v1290
      %v1405 = vpop.f32.mrf.mxu0
      %v1406 = vadd.f32 %v1194, %v1405
      %1407 = vmatmul.f32.gmra.mxu0 %v1293
      %v1408 = vpop.f32.mrf.mxu0
      %v1409 = vadd.f32 %v1197, %v1408
      %1410 = vmatmul.f32.gmra.mxu0 %v1296
      %v1411 = vpop.f32.mrf.mxu0
      %v1412 = vadd.f32 %v1200, %v1411
      %1413 = vmatmul.f32.gmra.mxu0 %v1299
      %v1414 = vpop.f32.mrf.mxu0
      %v1415 = vadd.f32 %v1203, %v1414
      %1416 = vmatmul.f32.gmra.mxu0 %v1302
      %v1417 = vpop.f32.mrf.mxu0
      %v1418 = vadd.f32 %v1206, %v1417
      %1419 = vmatmul.f32.gmra.mxu0 %v1305
      %v1420 = vpop.f32.mrf.mxu0
      %v1421 = vadd.f32 %v1209, %v1420
      %1422 = vmatmul.f32.gmra.mxu0 %v1308
      %v1423 = vpop.f32.mrf.mxu0
      %v1424 = vadd.f32 %v1212, %v1423
      %1425 = vmatmul.f32.gmra.mxu0 %v1311
      %v1426 = vpop.f32.mrf.mxu0
      %v1427 = vadd.f32 %v1215, %v1426
      %1428 = vmatmul.f32.gmra.mxu0 %v1314
      %v1429 = vpop.f32.mrf.mxu0
      %v1430 = vadd.f32 %v1218, %v1429
      %1431 = vmatmul.f32.gmra.mxu0 %v1317
      %v1432 = vpop.f32.mrf.mxu0
      %v1433 = vadd.f32 %v1221, %v1432
      %1434 = vmatmul.f32.gmra.mxu0 %v1320
      %v1435 = vpop.f32.mrf.mxu0
      %v1436 = vadd.f32 %v1224, %v1435
      %1437 = vmatmul.f32.gmra.mxu0 %v1323
      %v1438 = vpop.f32.mrf.mxu0
      %v1439 = vadd.f32 %v1227, %v1438
      %1440 = vdwg.mxu0
      %s1441 = scalar_lea.vmem %s1, 8
      %v1442 = vld [vmem:[%s1441] sm:$0xf]
      %v1444 = vsel %vm684, %v981, 0
      %v1447 = vsel %vm684, %v982, 0
      %v1450 = vsel %vm684, %v983, 0
      %v1453 = vsel %vm684, %v984, 0
      %v1456 = vsel %vm684, %v985, 0
      %v1459 = vsel %vm684, %v986, 0
      %v1462 = vsel %vm684, %v987, 0
      %v1465 = vsel %vm684, %v988, 0
      %v1468 = vsel %vm684, %v989, 0
      %v1471 = vsel %vm684, %v990, 0
      %v1474 = vsel %vm684, %v991, 0
      %v1477 = vsel %vm684, %v992, 0
      %v1480 = vsel %vm684, %v993, 0
      %v1483 = vsel %vm684, %v994, 0
      %v1486 = vsel %vm684, %v995, 0
      %v1489 = vsel %vm684, %v996, 0
      %v1492 = vsel %vm684, %v997, 0
      %v1495 = vsel %vm684, %v998, 0
      %v1498 = vsel %vm684, %v999, 0
      %v1501 = vsel %vm684, %v1000, 0
      %v1504 = vsel %vm684, %v1001, 0
      %v1507 = vsel %vm684, %v1002, 0
      %v1510 = vsel %vm684, %v1003, 0
      %v1513 = vsel %vm684, %v1004, 0
      %v1516 = vsel %vm684, %v1005, 0
      %v1519 = vsel %vm684, %v1006, 0
      %v1522 = vsel %vm684, %v1007, 0
      %v1525 = vsel %vm684, %v1008, 0
      %v1528 = vsel %vm684, %v1009, 0
      %v1531 = vsel %vm684, %v1010, 0
      %v1534 = vsel %vm684, %v1011, 0
      %v1537 = vsel %vm684, %v1012, 0
      %v1540 = vsel %vm1112, %v1442, 0
      %1542 = vmatpush.msra.mxu0 0.0
      %1543 = vmatpush.msra.mxu0 0.0
      %1544 = vmatpush.msra.mxu0 0.0
      %1545 = vmatpush.msra.mxu0 0.0
      %1546 = vmatpush.msra.mxu0 0.0
      %1547 = vmatpush.msra.mxu0 0.0
      %1548 = vmatpush.msra.mxu0 0.0
      %1549 = vmatpush.msra.mxu0 0.0
      %1550 = vmatpush.msra.mxu0 0.0
      %1551 = vmatpush.msra.mxu0 0.0
      %1552 = vmatpush.msra.mxu0 0.0
      %1553 = vmatpush.msra.mxu0 0.0
      %1554 = vmatpush.msra.mxu0 0.0
      %1555 = vmatpush.msra.mxu0 0.0
      %1556 = vmatpush.msra.mxu0 0.0
      %1557 = vmatpush.msra.mxu0 %v1540
      %1558 = vmatmul.f32.gmra.mxu0 %v1444
      %v1559 = vpop.f32.mrf.mxu0
      %v1560 = vadd.f32 0.0, %v1559
      %1561 = vmatmul.f32.gmra.mxu0 %v1447
      %v1562 = vpop.f32.mrf.mxu0
      %v1563 = vadd.f32 0.0, %v1562
      %1564 = vmatmul.f32.gmra.mxu0 %v1450
      %v1565 = vpop.f32.mrf.mxu0
      %v1566 = vadd.f32 0.0, %v1565
      %1567 = vmatmul.f32.gmra.mxu0 %v1453
      %v1568 = vpop.f32.mrf.mxu0
      %v1569 = vadd.f32 0.0, %v1568
      %1570 = vmatmul.f32.gmra.mxu0 %v1456
      %v1571 = vpop.f32.mrf.mxu0
      %v1572 = vadd.f32 0.0, %v1571
      %1573 = vmatmul.f32.gmra.mxu0 %v1459
      %v1574 = vpop.f32.mrf.mxu0
      %v1575 = vadd.f32 0.0, %v1574
      %1576 = vmatmul.f32.gmra.mxu0 %v1462
      %v1577 = vpop.f32.mrf.mxu0
      %v1578 = vadd.f32 0.0, %v1577
      %1579 = vmatmul.f32.gmra.mxu0 %v1465
      %v1580 = vpop.f32.mrf.mxu0
      %v1581 = vadd.f32 0.0, %v1580
      %1582 = vmatmul.f32.gmra.mxu0 %v1468
      %v1583 = vpop.f32.mrf.mxu0
      %v1584 = vadd.f32 0.0, %v1583
      %1585 = vmatmul.f32.gmra.mxu0 %v1471
      %v1586 = vpop.f32.mrf.mxu0
      %v1587 = vadd.f32 0.0, %v1586
      %1588 = vmatmul.f32.gmra.mxu0 %v1474
      %v1589 = vpop.f32.mrf.mxu0
      %v1590 = vadd.f32 0.0, %v1589
      %1591 = vmatmul.f32.gmra.mxu0 %v1477
      %v1592 = vpop.f32.mrf.mxu0
      %v1593 = vadd.f32 0.0, %v1592
      %1594 = vmatmul.f32.gmra.mxu0 %v1480
      %v1595 = vpop.f32.mrf.mxu0
      %v1596 = vadd.f32 0.0, %v1595
      %1597 = vmatmul.f32.gmra.mxu0 %v1483
      %v1598 = vpop.f32.mrf.mxu0
      %v1599 = vadd.f32 0.0, %v1598
      %1600 = vmatmul.f32.gmra.mxu0 %v1486
      %v1601 = vpop.f32.mrf.mxu0
      %v1602 = vadd.f32 0.0, %v1601
      %1603 = vmatmul.f32.gmra.mxu0 %v1489
      %v1604 = vpop.f32.mrf.mxu0
      %v1605 = vadd.f32 0.0, %v1604
      %1606 = vmatmul.f32.gmra.mxu0 %v1492
      %v1607 = vpop.f32.mrf.mxu0
      %v1608 = vadd.f32 0.0, %v1607
      %1609 = vmatmul.f32.gmra.mxu0 %v1495
      %v1610 = vpop.f32.mrf.mxu0
      %v1611 = vadd.f32 0.0, %v1610
      %1612 = vmatmul.f32.gmra.mxu0 %v1498
      %v1613 = vpop.f32.mrf.mxu0
      %v1614 = vadd.f32 0.0, %v1613
      %1615 = vmatmul.f32.gmra.mxu0 %v1501
      %v1616 = vpop.f32.mrf.mxu0
      %v1617 = vadd.f32 0.0, %v1616
      %1618 = vmatmul.f32.gmra.mxu0 %v1504
      %v1619 = vpop.f32.mrf.mxu0
      %v1620 = vadd.f32 0.0, %v1619
      %1621 = vmatmul.f32.gmra.mxu0 %v1507
      %v1622 = vpop.f32.mrf.mxu0
      %v1623 = vadd.f32 0.0, %v1622
      %1624 = vmatmul.f32.gmra.mxu0 %v1510
      %v1625 = vpop.f32.mrf.mxu0
      %v1626 = vadd.f32 0.0, %v1625
      %1627 = vmatmul.f32.gmra.mxu0 %v1513
      %v1628 = vpop.f32.mrf.mxu0
      %v1629 = vadd.f32 0.0, %v1628
      %1630 = vmatmul.f32.gmra.mxu0 %v1516
      %v1631 = vpop.f32.mrf.mxu0
      %v1632 = vadd.f32 0.0, %v1631
      %1633 = vmatmul.f32.gmra.mxu0 %v1519
      %v1634 = vpop.f32.mrf.mxu0
      %v1635 = vadd.f32 0.0, %v1634
      %1636 = vmatmul.f32.gmra.mxu0 %v1522
      %v1637 = vpop.f32.mrf.mxu0
      %v1638 = vadd.f32 0.0, %v1637
      %1639 = vmatmul.f32.gmra.mxu0 %v1525
      %v1640 = vpop.f32.mrf.mxu0
      %v1641 = vadd.f32 0.0, %v1640
      %1642 = vmatmul.f32.gmra.mxu0 %v1528
      %v1643 = vpop.f32.mrf.mxu0
      %v1644 = vadd.f32 0.0, %v1643
      %1645 = vmatmul.f32.gmra.mxu0 %v1531
      %v1646 = vpop.f32.mrf.mxu0
      %v1647 = vadd.f32 0.0, %v1646
      %1648 = vmatmul.f32.gmra.mxu0 %v1534
      %v1649 = vpop.f32.mrf.mxu0
      %v1650 = vadd.f32 0.0, %v1649
      %1651 = vmatmul.f32.gmra.mxu0 %v1537
      %v1652 = vpop.f32.mrf.mxu0
      %v1653 = vadd.f32 0.0, %v1652
      %1654 = vdwg.mxu0
      %v1655 = vadd.f32 %v1346, %v1560
      %v1656 = vadd.f32 %v1349, %v1563
      %v1657 = vadd.f32 %v1352, %v1566
      %v1658 = vadd.f32 %v1355, %v1569
      %v1659 = vadd.f32 %v1358, %v1572
      %v1660 = vadd.f32 %v1361, %v1575
      %v1661 = vadd.f32 %v1364, %v1578
      %v1662 = vadd.f32 %v1367, %v1581
      %v1663 = vadd.f32 %v1370, %v1584
      %v1664 = vadd.f32 %v1373, %v1587
      %v1665 = vadd.f32 %v1376, %v1590
      %v1666 = vadd.f32 %v1379, %v1593
      %v1667 = vadd.f32 %v1382, %v1596
      %v1668 = vadd.f32 %v1385, %v1599
      %v1669 = vadd.f32 %v1388, %v1602
      %v1670 = vadd.f32 %v1391, %v1605
      %v1671 = vadd.f32 %v1394, %v1608
      %v1672 = vadd.f32 %v1397, %v1611
      %v1673 = vadd.f32 %v1400, %v1614
      %v1674 = vadd.f32 %v1403, %v1617
      %v1675 = vadd.f32 %v1406, %v1620
      %v1676 = vadd.f32 %v1409, %v1623
      %v1677 = vadd.f32 %v1412, %v1626
      %v1678 = vadd.f32 %v1415, %v1629
      %v1679 = vadd.f32 %v1418, %v1632
      %v1680 = vadd.f32 %v1421, %v1635
      %v1681 = vadd.f32 %v1424, %v1638
      %v1682 = vadd.f32 %v1427, %v1641
      %v1683 = vadd.f32 %v1430, %v1644
      %v1684 = vadd.f32 %v1433, %v1647
      %v1685 = vadd.f32 %v1436, %v1650
      %v1686 = vadd.f32 %v1439, %v1653
      %v1687 = vld [vmem:[#allocation2 + $0x20] sm:$0xff]
      %v1688 = vld [vmem:[#allocation2 + $0x28] sm:$0xff]
      %v1689 = vld [vmem:[#allocation2 + $0x30] sm:$0xff]
      %v1690 = vld [vmem:[#allocation2 + $0x38] sm:$0xff]
      %v1691 = vld [vmem:[#allocation2 + $0x40] sm:$0xff]
      %v1692 = vld [vmem:[#allocation2 + $0x48] sm:$0xff]
      %v1693 = vld [vmem:[#allocation2 + $0x50] sm:$0xff]
      %v1694 = vld [vmem:[#allocation2 + $0x58] sm:$0xff]
      %v1695 = vld [vmem:[#allocation2 + $0x60] sm:$0xff]
      %v1696 = vld [vmem:[#allocation2 + $0x68] sm:$0xff]
      %v1697 = vld [vmem:[#allocation2 + $0x70] sm:$0xff]
      %v1698 = vld [vmem:[#allocation2 + $0x78] sm:$0xff]
      %v1699 = vld [vmem:[#allocation2 + $0x80] sm:$0xff]
      %v1700 = vld [vmem:[#allocation2 + $0x88] sm:$0xff]
      %v1701 = vld [vmem:[#allocation2 + $0x90] sm:$0xff]
      %v1702 = vld [vmem:[#allocation2 + $0x98] sm:$0xff]
      %v1703 = vld [vmem:[#allocation2 + $0xa0] sm:$0xff]
      %v1704 = vld [vmem:[#allocation2 + $0xa8] sm:$0xff]
      %v1705 = vld [vmem:[#allocation2 + $0xb0] sm:$0xff]
      %v1706 = vld [vmem:[#allocation2 + $0xb8] sm:$0xff]
      %v1707 = vld [vmem:[#allocation2 + $0xc0] sm:$0xff]
      %v1708 = vld [vmem:[#allocation2 + $0xc8] sm:$0xff]
      %v1709 = vld [vmem:[#allocation2 + $0xd0] sm:$0xff]
      %v1710 = vld [vmem:[#allocation2 + $0xd8] sm:$0xff]
      %v1711 = vld [vmem:[#allocation2 + $0xe0] sm:$0xff]
      %v1712 = vld [vmem:[#allocation2 + $0xe8] sm:$0xff]
      %v1713 = vld [vmem:[#allocation2 + $0xf0] sm:$0xff]
      %v1714 = vld [vmem:[#allocation2 + $0xf8] sm:$0xff]
      %v1715 = vld [vmem:[#allocation2 + $0x100] sm:$0xff]
      %v1716 = vld [vmem:[#allocation2 + $0x108] sm:$0xff]
      %v1717 = vld [vmem:[#allocation2 + $0x110] sm:$0xff]
      %v1718 = vld [vmem:[#allocation2 + $0x118] sm:$0xff]
      %v1719 = vld [vmem:[#allocation2 + $0x1f] sm:$0xff]
      %v1720 = vld [vmem:[#allocation2 + $0x27] sm:$0xff]
      %v1721 = vld [vmem:[#allocation2 + $0x2f] sm:$0xff]
      %v1722 = vld [vmem:[#allocation2 + $0x37] sm:$0xff]
      %v1723 = vld [vmem:[#allocation2 + $0x3f] sm:$0xff]
      %v1724 = vld [vmem:[#allocation2 + $0x47] sm:$0xff]
      %v1725 = vld [vmem:[#allocation2 + $0x4f] sm:$0xff]
      %v1726 = vld [vmem:[#allocation2 + $0x57] sm:$0xff]
      %v1727 = vld [vmem:[#allocation2 + $0x5f] sm:$0xff]
      %v1728 = vld [vmem:[#allocation2 + $0x67] sm:$0xff]
      %v1729 = vld [vmem:[#allocation2 + $0x6f] sm:$0xff]
      %v1730 = vld [vmem:[#allocation2 + $0x77] sm:$0xff]
      %v1731 = vld [vmem:[#allocation2 + $0x7f] sm:$0xff]
      %v1732 = vld [vmem:[#allocation2 + $0x87] sm:$0xff]
      %v1733 = vld [vmem:[#allocation2 + $0x8f] sm:$0xff]
      %v1734 = vld [vmem:[#allocation2 + $0x97] sm:$0xff]
      %v1735 = vld [vmem:[#allocation2 + $0x9f] sm:$0xff]
      %v1736 = vld [vmem:[#allocation2 + $0xa7] sm:$0xff]
      %v1737 = vld [vmem:[#allocation2 + $0xaf] sm:$0xff]
      %v1738 = vld [vmem:[#allocation2 + $0xb7] sm:$0xff]
      %v1739 = vld [vmem:[#allocation2 + $0xbf] sm:$0xff]
      %v1740 = vld [vmem:[#allocation2 + $0xc7] sm:$0xff]
      %v1741 = vld [vmem:[#allocation2 + $0xcf] sm:$0xff]
      %v1742 = vld [vmem:[#allocation2 + $0xd7] sm:$0xff]
      %v1743 = vld [vmem:[#allocation2 + $0xdf] sm:$0xff]
      %v1744 = vld [vmem:[#allocation2 + $0xe7] sm:$0xff]
      %v1745 = vld [vmem:[#allocation2 + $0xef] sm:$0xff]
      %v1746 = vld [vmem:[#allocation2 + $0xf7] sm:$0xff]
      %v1747 = vld [vmem:[#allocation2 + $0xff] sm:$0xff]
      %v1748 = vld [vmem:[#allocation2 + $0x107] sm:$0xff]
      %v1749 = vld [vmem:[#allocation2 + $0x10f] sm:$0xff]
      %v1750 = vld [vmem:[#allocation2 + $0x117] sm:$0xff]
      %v1751 = vld [vmem:[#allocation2 + $0x21] sm:$0xff]
      %v1752 = vld [vmem:[#allocation2 + $0x29] sm:$0xff]
      %v1753 = vld [vmem:[#allocation2 + $0x31] sm:$0xff]
      %v1754 = vld [vmem:[#allocation2 + $0x39] sm:$0xff]
      %v1755 = vld [vmem:[#allocation2 + $0x41] sm:$0xff]
      %v1756 = vld [vmem:[#allocation2 + $0x49] sm:$0xff]
      %v1757 = vld [vmem:[#allocation2 + $0x51] sm:$0xff]
      %v1758 = vld [vmem:[#allocation2 + $0x59] sm:$0xff]
      %v1759 = vld [vmem:[#allocation2 + $0x61] sm:$0xff]
      %v1760 = vld [vmem:[#allocation2 + $0x69] sm:$0xff]
      %v1761 = vld [vmem:[#allocation2 + $0x71] sm:$0xff]
      %v1762 = vld [vmem:[#allocation2 + $0x79] sm:$0xff]
      %v1763 = vld [vmem:[#allocation2 + $0x81] sm:$0xff]
      %v1764 = vld [vmem:[#allocation2 + $0x89] sm:$0xff]
      %v1765 = vld [vmem:[#allocation2 + $0x91] sm:$0xff]
      %v1766 = vld [vmem:[#allocation2 + $0x99] sm:$0xff]
      %v1767 = vld [vmem:[#allocation2 + $0xa1] sm:$0xff]
      %v1768 = vld [vmem:[#allocation2 + $0xa9] sm:$0xff]
      %v1769 = vld [vmem:[#allocation2 + $0xb1] sm:$0xff]
      %v1770 = vld [vmem:[#allocation2 + $0xb9] sm:$0xff]
      %v1771 = vld [vmem:[#allocation2 + $0xc1] sm:$0xff]
      %v1772 = vld [vmem:[#allocation2 + $0xc9] sm:$0xff]
      %v1773 = vld [vmem:[#allocation2 + $0xd1] sm:$0xff]
      %v1774 = vld [vmem:[#allocation2 + $0xd9] sm:$0xff]
      %v1775 = vld [vmem:[#allocation2 + $0xe1] sm:$0xff]
      %v1776 = vld [vmem:[#allocation2 + $0xe9] sm:$0xff]
      %v1777 = vld [vmem:[#allocation2 + $0xf1] sm:$0xff]
      %v1778 = vld [vmem:[#allocation2 + $0xf9] sm:$0xff]
      %v1779 = vld [vmem:[#allocation2 + $0x101] sm:$0xff]
      %v1780 = vld [vmem:[#allocation2 + $0x109] sm:$0xff]
      %v1781 = vld [vmem:[#allocation2 + $0x111] sm:$0xff]
      %v1782 = vld [vmem:[#allocation2 + $0x119] sm:$0xff]
      %v1783 = vsel %vm853, %v1687, %v1719
      %v1784 = vsel %vm854, %v1688, %v1720
      %v1785 = vsel %vm855, %v1689, %v1721
      %v1786 = vsel %vm856, %v1690, %v1722
      %v1787 = vsel %vm857, %v1691, %v1723
      %v1788 = vsel %vm858, %v1692, %v1724
      %v1789 = vsel %vm859, %v1693, %v1725
      %v1790 = vsel %vm860, %v1694, %v1726
      %v1791 = vsel %vm861, %v1695, %v1727
      %v1792 = vsel %vm862, %v1696, %v1728
      %v1793 = vsel %vm863, %v1697, %v1729
      %v1794 = vsel %vm864, %v1698, %v1730
      %v1795 = vsel %vm865, %v1699, %v1731
      %v1796 = vsel %vm866, %v1700, %v1732
      %v1797 = vsel %vm867, %v1701, %v1733
      %v1798 = vsel %vm868, %v1702, %v1734
      %v1799 = vsel %vm869, %v1703, %v1735
      %v1800 = vsel %vm870, %v1704, %v1736
      %v1801 = vsel %vm871, %v1705, %v1737
      %v1802 = vsel %vm872, %v1706, %v1738
      %v1803 = vsel %vm873, %v1707, %v1739
      %v1804 = vsel %vm874, %v1708, %v1740
      %v1805 = vsel %vm875, %v1709, %v1741
      %v1806 = vsel %vm876, %v1710, %v1742
      %v1807 = vsel %vm877, %v1711, %v1743
      %v1808 = vsel %vm878, %v1712, %v1744
      %v1809 = vsel %vm879, %v1713, %v1745
      %v1810 = vsel %vm880, %v1714, %v1746
      %v1811 = vsel %vm881, %v1715, %v1747
      %v1812 = vsel %vm882, %v1716, %v1748
      %v1813 = vsel %vm883, %v1717, %v1749
      %v1814 = vsel %vm884, %v1718, %v1750
      %v1815 = vsel %vm949, %v1687, %v1751
      %v1816 = vsel %vm950, %v1688, %v1752
      %v1817 = vsel %vm951, %v1689, %v1753
      %v1818 = vsel %vm952, %v1690, %v1754
      %v1819 = vsel %vm953, %v1691, %v1755
      %v1820 = vsel %vm954, %v1692, %v1756
      %v1821 = vsel %vm955, %v1693, %v1757
      %v1822 = vsel %vm956, %v1694, %v1758
      %v1823 = vsel %vm957, %v1695, %v1759
      %v1824 = vsel %vm958, %v1696, %v1760
      %v1825 = vsel %vm959, %v1697, %v1761
      %v1826 = vsel %vm960, %v1698, %v1762
      %v1827 = vsel %vm961, %v1699, %v1763
      %v1828 = vsel %vm962, %v1700, %v1764
      %v1829 = vsel %vm963, %v1701, %v1765
      %v1830 = vsel %vm964, %v1702, %v1766
      %v1831 = vsel %vm965, %v1703, %v1767
      %v1832 = vsel %vm966, %v1704, %v1768
      %v1833 = vsel %vm967, %v1705, %v1769
      %v1834 = vsel %vm968, %v1706, %v1770
      %v1835 = vsel %vm969, %v1707, %v1771
      %v1836 = vsel %vm970, %v1708, %v1772
      %v1837 = vsel %vm971, %v1709, %v1773
      %v1838 = vsel %vm972, %v1710, %v1774
      %v1839 = vsel %vm973, %v1711, %v1775
      %v1840 = vsel %vm974, %v1712, %v1776
      %v1841 = vsel %vm975, %v1713, %v1777
      %v1842 = vsel %vm976, %v1714, %v1778
      %v1843 = vsel %vm977, %v1715, %v1779
      %v1844 = vsel %vm978, %v1716, %v1780
      %v1845 = vsel %vm979, %v1717, %v1781
      %v1846 = vsel %vm980, %v1718, %v1782
      %s1847 = scalar_lea.vmem %s1, 12
      %v1848 = vld [vmem:[%s1847] sm:$0xf]
      %v1850 = vsel %vm684, %v1783, 0
      %v1853 = vsel %vm684, %v1784, 0
      %v1856 = vsel %vm684, %v1785, 0
      %v1859 = vsel %vm684, %v1786, 0
      %v1862 = vsel %vm684, %v1787, 0
      %v1865 = vsel %vm684, %v1788, 0
      %v1868 = vsel %vm684, %v1789, 0
      %v1871 = vsel %vm684, %v1790, 0
      %v1874 = vsel %vm684, %v1791, 0
      %v1877 = vsel %vm684, %v1792, 0
      %v1880 = vsel %vm684, %v1793, 0
      %v1883 = vsel %vm684, %v1794, 0
      %v1886 = vsel %vm684, %v1795, 0
      %v1889 = vsel %vm684, %v1796, 0
      %v1892 = vsel %vm684, %v1797, 0
      %v1895 = vsel %vm684, %v1798, 0
      %v1898 = vsel %vm684, %v1799, 0
      %v1901 = vsel %vm684, %v1800, 0
      %v1904 = vsel %vm684, %v1801, 0
      %v1907 = vsel %vm684, %v1802, 0
      %v1910 = vsel %vm684, %v1803, 0
      %v1913 = vsel %vm684, %v1804, 0
      %v1916 = vsel %vm684, %v1805, 0
      %v1919 = vsel %vm684, %v1806, 0
      %v1922 = vsel %vm684, %v1807, 0
      %v1925 = vsel %vm684, %v1808, 0
      %v1928 = vsel %vm684, %v1809, 0
      %v1931 = vsel %vm684, %v1810, 0
      %v1934 = vsel %vm684, %v1811, 0
      %v1937 = vsel %vm684, %v1812, 0
      %v1940 = vsel %vm684, %v1813, 0
      %v1943 = vsel %vm684, %v1814, 0
      %v1946 = vsel %vm1112, %v1848, 0
      %1948 = vmatpush.msra.mxu0 0.0
      %1949 = vmatpush.msra.mxu0 0.0
      %1950 = vmatpush.msra.mxu0 0.0
      %1951 = vmatpush.msra.mxu0 0.0
      %1952 = vmatpush.msra.mxu0 0.0
      %1953 = vmatpush.msra.mxu0 0.0
      %1954 = vmatpush.msra.mxu0 0.0
      %1955 = vmatpush.msra.mxu0 0.0
      %1956 = vmatpush.msra.mxu0 0.0
      %1957 = vmatpush.msra.mxu0 0.0
      %1958 = vmatpush.msra.mxu0 0.0
      %1959 = vmatpush.msra.mxu0 0.0
      %1960 = vmatpush.msra.mxu0 0.0
      %1961 = vmatpush.msra.mxu0 0.0
      %1962 = vmatpush.msra.mxu0 0.0
      %1963 = vmatpush.msra.mxu0 %v1946
      %1964 = vmatmul.f32.gmra.mxu0 %v1850
      %v1965 = vpop.f32.mrf.mxu0
      %v1966 = vadd.f32 0.0, %v1965
      %1967 = vmatmul.f32.gmra.mxu0 %v1853
      %v1968 = vpop.f32.mrf.mxu0
      %v1969 = vadd.f32 0.0, %v1968
      %1970 = vmatmul.f32.gmra.mxu0 %v1856
      %v1971 = vpop.f32.mrf.mxu0
      %v1972 = vadd.f32 0.0, %v1971
      %1973 = vmatmul.f32.gmra.mxu0 %v1859
      %v1974 = vpop.f32.mrf.mxu0
      %v1975 = vadd.f32 0.0, %v1974
      %1976 = vmatmul.f32.gmra.mxu0 %v1862
      %v1977 = vpop.f32.mrf.mxu0
      %v1978 = vadd.f32 0.0, %v1977
      %1979 = vmatmul.f32.gmra.mxu0 %v1865
      %v1980 = vpop.f32.mrf.mxu0
      %v1981 = vadd.f32 0.0, %v1980
      %1982 = vmatmul.f32.gmra.mxu0 %v1868
      %v1983 = vpop.f32.mrf.mxu0
      %v1984 = vadd.f32 0.0, %v1983
      %1985 = vmatmul.f32.gmra.mxu0 %v1871
      %v1986 = vpop.f32.mrf.mxu0
      %v1987 = vadd.f32 0.0, %v1986
      %1988 = vmatmul.f32.gmra.mxu0 %v1874
      %v1989 = vpop.f32.mrf.mxu0
      %v1990 = vadd.f32 0.0, %v1989
      %1991 = vmatmul.f32.gmra.mxu0 %v1877
      %v1992 = vpop.f32.mrf.mxu0
      %v1993 = vadd.f32 0.0, %v1992
      %1994 = vmatmul.f32.gmra.mxu0 %v1880
      %v1995 = vpop.f32.mrf.mxu0
      %v1996 = vadd.f32 0.0, %v1995
      %1997 = vmatmul.f32.gmra.mxu0 %v1883
      %v1998 = vpop.f32.mrf.mxu0
      %v1999 = vadd.f32 0.0, %v1998
      %2000 = vmatmul.f32.gmra.mxu0 %v1886
      %v2001 = vpop.f32.mrf.mxu0
      %v2002 = vadd.f32 0.0, %v2001
      %2003 = vmatmul.f32.gmra.mxu0 %v1889
      %v2004 = vpop.f32.mrf.mxu0
      %v2005 = vadd.f32 0.0, %v2004
      %2006 = vmatmul.f32.gmra.mxu0 %v1892
      %v2007 = vpop.f32.mrf.mxu0
      %v2008 = vadd.f32 0.0, %v2007
      %2009 = vmatmul.f32.gmra.mxu0 %v1895
      %v2010 = vpop.f32.mrf.mxu0
      %v2011 = vadd.f32 0.0, %v2010
      %2012 = vmatmul.f32.gmra.mxu0 %v1898
      %v2013 = vpop.f32.mrf.mxu0
      %v2014 = vadd.f32 0.0, %v2013
      %2015 = vmatmul.f32.gmra.mxu0 %v1901
      %v2016 = vpop.f32.mrf.mxu0
      %v2017 = vadd.f32 0.0, %v2016
      %2018 = vmatmul.f32.gmra.mxu0 %v1904
      %v2019 = vpop.f32.mrf.mxu0
      %v2020 = vadd.f32 0.0, %v2019
      %2021 = vmatmul.f32.gmra.mxu0 %v1907
      %v2022 = vpop.f32.mrf.mxu0
      %v2023 = vadd.f32 0.0, %v2022
      %2024 = vmatmul.f32.gmra.mxu0 %v1910
      %v2025 = vpop.f32.mrf.mxu0
      %v2026 = vadd.f32 0.0, %v2025
      %2027 = vmatmul.f32.gmra.mxu0 %v1913
      %v2028 = vpop.f32.mrf.mxu0
      %v2029 = vadd.f32 0.0, %v2028
      %2030 = vmatmul.f32.gmra.mxu0 %v1916
      %v2031 = vpop.f32.mrf.mxu0
      %v2032 = vadd.f32 0.0, %v2031
      %2033 = vmatmul.f32.gmra.mxu0 %v1919
      %v2034 = vpop.f32.mrf.mxu0
      %v2035 = vadd.f32 0.0, %v2034
      %2036 = vmatmul.f32.gmra.mxu0 %v1922
      %v2037 = vpop.f32.mrf.mxu0
      %v2038 = vadd.f32 0.0, %v2037
      %2039 = vmatmul.f32.gmra.mxu0 %v1925
      %v2040 = vpop.f32.mrf.mxu0
      %v2041 = vadd.f32 0.0, %v2040
      %2042 = vmatmul.f32.gmra.mxu0 %v1928
      %v2043 = vpop.f32.mrf.mxu0
      %v2044 = vadd.f32 0.0, %v2043
      %2045 = vmatmul.f32.gmra.mxu0 %v1931
      %v2046 = vpop.f32.mrf.mxu0
      %v2047 = vadd.f32 0.0, %v2046
      %2048 = vmatmul.f32.gmra.mxu0 %v1934
      %v2049 = vpop.f32.mrf.mxu0
      %v2050 = vadd.f32 0.0, %v2049
      %2051 = vmatmul.f32.gmra.mxu0 %v1937
      %v2052 = vpop.f32.mrf.mxu0
      %v2053 = vadd.f32 0.0, %v2052
      %2054 = vmatmul.f32.gmra.mxu0 %v1940
      %v2055 = vpop.f32.mrf.mxu0
      %v2056 = vadd.f32 0.0, %v2055
      %2057 = vmatmul.f32.gmra.mxu0 %v1943
      %v2058 = vpop.f32.mrf.mxu0
      %v2059 = vadd.f32 0.0, %v2058
      %2060 = vdwg.mxu0
      %v2061 = vadd.f32 %v1655, %v1966
      %v2062 = vadd.f32 %v1656, %v1969
      %v2063 = vadd.f32 %v1657, %v1972
      %v2064 = vadd.f32 %v1658, %v1975
      %v2065 = vadd.f32 %v1659, %v1978
      %v2066 = vadd.f32 %v1660, %v1981
      %v2067 = vadd.f32 %v1661, %v1984
      %v2068 = vadd.f32 %v1662, %v1987
      %v2069 = vadd.f32 %v1663, %v1990
      %v2070 = vadd.f32 %v1664, %v1993
      %v2071 = vadd.f32 %v1665, %v1996
      %v2072 = vadd.f32 %v1666, %v1999
      %v2073 = vadd.f32 %v1667, %v2002
      %v2074 = vadd.f32 %v1668, %v2005
      %v2075 = vadd.f32 %v1669, %v2008
      %v2076 = vadd.f32 %v1670, %v2011
      %v2077 = vadd.f32 %v1671, %v2014
      %v2078 = vadd.f32 %v1672, %v2017
      %v2079 = vadd.f32 %v1673, %v2020
      %v2080 = vadd.f32 %v1674, %v2023
      %v2081 = vadd.f32 %v1675, %v2026
      %v2082 = vadd.f32 %v1676, %v2029
      %v2083 = vadd.f32 %v1677, %v2032
      %v2084 = vadd.f32 %v1678, %v2035
      %v2085 = vadd.f32 %v1679, %v2038
      %v2086 = vadd.f32 %v1680, %v2041
      %v2087 = vadd.f32 %v1681, %v2044
      %v2088 = vadd.f32 %v1682, %v2047
      %v2089 = vadd.f32 %v1683, %v2050
      %v2090 = vadd.f32 %v1684, %v2053
      %v2091 = vadd.f32 %v1685, %v2056
      %v2092 = vadd.f32 %v1686, %v2059
      %s2093 = scalar_lea.vmem %s1, 16
      %v2094 = vld [vmem:[%s2093] sm:$0xf]
      %v2096 = vsel %vm684, %v1687, 0
      %v2099 = vsel %vm684, %v1688, 0
      %v2102 = vsel %vm684, %v1689, 0
      %v2105 = vsel %vm684, %v1690, 0
      %v2108 = vsel %vm684, %v1691, 0
      %v2111 = vsel %vm684, %v1692, 0
      %v2114 = vsel %vm684, %v1693, 0
      %v2117 = vsel %vm684, %v1694, 0
      %v2120 = vsel %vm684, %v1695, 0
      %v2123 = vsel %vm684, %v1696, 0
      %v2126 = vsel %vm684, %v1697, 0
      %v2129 = vsel %vm684, %v1698, 0
      %v2132 = vsel %vm684, %v1699, 0
      %v2135 = vsel %vm684, %v1700, 0
      %v2138 = vsel %vm684, %v1701, 0
      %v2141 = vsel %vm684, %v1702, 0
      %v2144 = vsel %vm684, %v1703, 0
      %v2147 = vsel %vm684, %v1704, 0
      %v2150 = vsel %vm684, %v1705, 0
      %v2153 = vsel %vm684, %v1706, 0
      %v2156 = vsel %vm684, %v1707, 0
      %v2159 = vsel %vm684, %v1708, 0
      %v2162 = vsel %vm684, %v1709, 0
      %v2165 = vsel %vm684, %v1710, 0
      %v2168 = vsel %vm684, %v1711, 0
      %v2171 = vsel %vm684, %v1712, 0
      %v2174 = vsel %vm684, %v1713, 0
      %v2177 = vsel %vm684, %v1714, 0
      %v2180 = vsel %vm684, %v1715, 0
      %v2183 = vsel %vm684, %v1716, 0
      %v2186 = vsel %vm684, %v1717, 0
      %v2189 = vsel %vm684, %v1718, 0
      %v2192 = vsel %vm1112, %v2094, 0
      %2194 = vmatpush.msra.mxu0 0.0
      %2195 = vmatpush.msra.mxu0 0.0
      %2196 = vmatpush.msra.mxu0 0.0
      %2197 = vmatpush.msra.mxu0 0.0
      %2198 = vmatpush.msra.mxu0 0.0
      %2199 = vmatpush.msra.mxu0 0.0
      %2200 = vmatpush.msra.mxu0 0.0
      %2201 = vmatpush.msra.mxu0 0.0
      %2202 = vmatpush.msra.mxu0 0.0
      %2203 = vmatpush.msra.mxu0 0.0
      %2204 = vmatpush.msra.mxu0 0.0
      %2205 = vmatpush.msra.mxu0 0.0
      %2206 = vmatpush.msra.mxu0 0.0
      %2207 = vmatpush.msra.mxu0 0.0
      %2208 = vmatpush.msra.mxu0 0.0
      %2209 = vmatpush.msra.mxu0 %v2192
      %2210 = vmatmul.f32.gmra.mxu0 %v2096
      %v2211 = vpop.f32.mrf.mxu0
      %v2212 = vadd.f32 0.0, %v2211
      %2213 = vmatmul.f32.gmra.mxu0 %v2099
      %v2214 = vpop.f32.mrf.mxu0
      %v2215 = vadd.f32 0.0, %v2214
      %2216 = vmatmul.f32.gmra.mxu0 %v2102
      %v2217 = vpop.f32.mrf.mxu0
      %v2218 = vadd.f32 0.0, %v2217
      %2219 = vmatmul.f32.gmra.mxu0 %v2105
      %v2220 = vpop.f32.mrf.mxu0
      %v2221 = vadd.f32 0.0, %v2220
      %2222 = vmatmul.f32.gmra.mxu0 %v2108
      %v2223 = vpop.f32.mrf.mxu0
      %v2224 = vadd.f32 0.0, %v2223
      %2225 = vmatmul.f32.gmra.mxu0 %v2111
      %v2226 = vpop.f32.mrf.mxu0
      %v2227 = vadd.f32 0.0, %v2226
      %2228 = vmatmul.f32.gmra.mxu0 %v2114
      %v2229 = vpop.f32.mrf.mxu0
      %v2230 = vadd.f32 0.0, %v2229
      %2231 = vmatmul.f32.gmra.mxu0 %v2117
      %v2232 = vpop.f32.mrf.mxu0
      %v2233 = vadd.f32 0.0, %v2232
      %2234 = vmatmul.f32.gmra.mxu0 %v2120
      %v2235 = vpop.f32.mrf.mxu0
      %v2236 = vadd.f32 0.0, %v2235
      %2237 = vmatmul.f32.gmra.mxu0 %v2123
      %v2238 = vpop.f32.mrf.mxu0
      %v2239 = vadd.f32 0.0, %v2238
      %2240 = vmatmul.f32.gmra.mxu0 %v2126
      %v2241 = vpop.f32.mrf.mxu0
      %v2242 = vadd.f32 0.0, %v2241
      %2243 = vmatmul.f32.gmra.mxu0 %v2129
      %v2244 = vpop.f32.mrf.mxu0
      %v2245 = vadd.f32 0.0, %v2244
      %2246 = vmatmul.f32.gmra.mxu0 %v2132
      %v2247 = vpop.f32.mrf.mxu0
      %v2248 = vadd.f32 0.0, %v2247
      %2249 = vmatmul.f32.gmra.mxu0 %v2135
      %v2250 = vpop.f32.mrf.mxu0
      %v2251 = vadd.f32 0.0, %v2250
      %2252 = vmatmul.f32.gmra.mxu0 %v2138
      %v2253 = vpop.f32.mrf.mxu0
      %v2254 = vadd.f32 0.0, %v2253
      %2255 = vmatmul.f32.gmra.mxu0 %v2141
      %v2256 = vpop.f32.mrf.mxu0
      %v2257 = vadd.f32 0.0, %v2256
      %2258 = vmatmul.f32.gmra.mxu0 %v2144
      %v2259 = vpop.f32.mrf.mxu0
      %v2260 = vadd.f32 0.0, %v2259
      %2261 = vmatmul.f32.gmra.mxu0 %v2147
      %v2262 = vpop.f32.mrf.mxu0
      %v2263 = vadd.f32 0.0, %v2262
      %2264 = vmatmul.f32.gmra.mxu0 %v2150
      %v2265 = vpop.f32.mrf.mxu0
      %v2266 = vadd.f32 0.0, %v2265
      %2267 = vmatmul.f32.gmra.mxu0 %v2153
      %v2268 = vpop.f32.mrf.mxu0
      %v2269 = vadd.f32 0.0, %v2268
      %2270 = vmatmul.f32.gmra.mxu0 %v2156
      %v2271 = vpop.f32.mrf.mxu0
      %v2272 = vadd.f32 0.0, %v2271
      %2273 = vmatmul.f32.gmra.mxu0 %v2159
      %v2274 = vpop.f32.mrf.mxu0
      %v2275 = vadd.f32 0.0, %v2274
      %2276 = vmatmul.f32.gmra.mxu0 %v2162
      %v2277 = vpop.f32.mrf.mxu0
      %v2278 = vadd.f32 0.0, %v2277
      %2279 = vmatmul.f32.gmra.mxu0 %v2165
      %v2280 = vpop.f32.mrf.mxu0
      %v2281 = vadd.f32 0.0, %v2280
      %2282 = vmatmul.f32.gmra.mxu0 %v2168
      %v2283 = vpop.f32.mrf.mxu0
      %v2284 = vadd.f32 0.0, %v2283
      %2285 = vmatmul.f32.gmra.mxu0 %v2171
      %v2286 = vpop.f32.mrf.mxu0
      %v2287 = vadd.f32 0.0, %v2286
      %2288 = vmatmul.f32.gmra.mxu0 %v2174
      %v2289 = vpop.f32.mrf.mxu0
      %v2290 = vadd.f32 0.0, %v2289
      %2291 = vmatmul.f32.gmra.mxu0 %v2177
      %v2292 = vpop.f32.mrf.mxu0
      %v2293 = vadd.f32 0.0, %v2292
      %2294 = vmatmul.f32.gmra.mxu0 %v2180
      %v2295 = vpop.f32.mrf.mxu0
      %v2296 = vadd.f32 0.0, %v2295
      %2297 = vmatmul.f32.gmra.mxu0 %v2183
      %v2298 = vpop.f32.mrf.mxu0
      %v2299 = vadd.f32 0.0, %v2298
      %2300 = vmatmul.f32.gmra.mxu0 %v2186
      %v2301 = vpop.f32.mrf.mxu0
      %v2302 = vadd.f32 0.0, %v2301
      %2303 = vmatmul.f32.gmra.mxu0 %v2189
      %v2304 = vpop.f32.mrf.mxu0
      %v2305 = vadd.f32 0.0, %v2304
      %2306 = vdwg.mxu0
      %v2307 = vadd.f32 %v2061, %v2212
      %v2308 = vadd.f32 %v2062, %v2215
      %v2309 = vadd.f32 %v2063, %v2218
      %v2310 = vadd.f32 %v2064, %v2221
      %v2311 = vadd.f32 %v2065, %v2224
      %v2312 = vadd.f32 %v2066, %v2227
      %v2313 = vadd.f32 %v2067, %v2230
      %v2314 = vadd.f32 %v2068, %v2233
      %v2315 = vadd.f32 %v2069, %v2236
      %v2316 = vadd.f32 %v2070, %v2239
      %v2317 = vadd.f32 %v2071, %v2242
      %v2318 = vadd.f32 %v2072, %v2245
      %v2319 = vadd.f32 %v2073, %v2248
      %v2320 = vadd.f32 %v2074, %v2251
      %v2321 = vadd.f32 %v2075, %v2254
      %v2322 = vadd.f32 %v2076, %v2257
      %v2323 = vadd.f32 %v2077, %v2260
      %v2324 = vadd.f32 %v2078, %v2263
      %v2325 = vadd.f32 %v2079, %v2266
      %v2326 = vadd.f32 %v2080, %v2269
      %v2327 = vadd.f32 %v2081, %v2272
      %v2328 = vadd.f32 %v2082, %v2275
      %v2329 = vadd.f32 %v2083, %v2278
      %v2330 = vadd.f32 %v2084, %v2281
      %v2331 = vadd.f32 %v2085, %v2284
      %v2332 = vadd.f32 %v2086, %v2287
      %v2333 = vadd.f32 %v2087, %v2290
      %v2334 = vadd.f32 %v2088, %v2293
      %v2335 = vadd.f32 %v2089, %v2296
      %v2336 = vadd.f32 %v2090, %v2299
      %v2337 = vadd.f32 %v2091, %v2302
      %v2338 = vadd.f32 %v2092, %v2305
      %s2339 = scalar_lea.vmem %s1, 20
      %v2340 = vld [vmem:[%s2339] sm:$0xf]
      %v2342 = vsel %vm684, %v1815, 0
      %v2345 = vsel %vm684, %v1816, 0
      %v2348 = vsel %vm684, %v1817, 0
      %v2351 = vsel %vm684, %v1818, 0
      %v2354 = vsel %vm684, %v1819, 0
      %v2357 = vsel %vm684, %v1820, 0
      %v2360 = vsel %vm684, %v1821, 0
      %v2363 = vsel %vm684, %v1822, 0
      %v2366 = vsel %vm684, %v1823, 0
      %v2369 = vsel %vm684, %v1824, 0
      %v2372 = vsel %vm684, %v1825, 0
      %v2375 = vsel %vm684, %v1826, 0
      %v2378 = vsel %vm684, %v1827, 0
      %v2381 = vsel %vm684, %v1828, 0
      %v2384 = vsel %vm684, %v1829, 0
      %v2387 = vsel %vm684, %v1830, 0
      %v2390 = vsel %vm684, %v1831, 0
      %v2393 = vsel %vm684, %v1832, 0
      %v2396 = vsel %vm684, %v1833, 0
      %v2399 = vsel %vm684, %v1834, 0
      %v2402 = vsel %vm684, %v1835, 0
      %v2405 = vsel %vm684, %v1836, 0
      %v2408 = vsel %vm684, %v1837, 0
      %v2411 = vsel %vm684, %v1838, 0
      %v2414 = vsel %vm684, %v1839, 0
      %v2417 = vsel %vm684, %v1840, 0
      %v2420 = vsel %vm684, %v1841, 0
      %v2423 = vsel %vm684, %v1842, 0
      %v2426 = vsel %vm684, %v1843, 0
      %v2429 = vsel %vm684, %v1844, 0
      %v2432 = vsel %vm684, %v1845, 0
      %v2435 = vsel %vm684, %v1846, 0
      %v2438 = vsel %vm1112, %v2340, 0
      %2440 = vmatpush.msra.mxu0 0.0
      %2441 = vmatpush.msra.mxu0 0.0
      %2442 = vmatpush.msra.mxu0 0.0
      %2443 = vmatpush.msra.mxu0 0.0
      %2444 = vmatpush.msra.mxu0 0.0
      %2445 = vmatpush.msra.mxu0 0.0
      %2446 = vmatpush.msra.mxu0 0.0
      %2447 = vmatpush.msra.mxu0 0.0
      %2448 = vmatpush.msra.mxu0 0.0
      %2449 = vmatpush.msra.mxu0 0.0
      %2450 = vmatpush.msra.mxu0 0.0
      %2451 = vmatpush.msra.mxu0 0.0
      %2452 = vmatpush.msra.mxu0 0.0
      %2453 = vmatpush.msra.mxu0 0.0
      %2454 = vmatpush.msra.mxu0 0.0
      %2455 = vmatpush.msra.mxu0 %v2438
      %2456 = vmatmul.f32.gmra.mxu0 %v2342
      %v2457 = vpop.f32.mrf.mxu0
      %v2458 = vadd.f32 0.0, %v2457
      %2459 = vmatmul.f32.gmra.mxu0 %v2345
      %v2460 = vpop.f32.mrf.mxu0
      %v2461 = vadd.f32 0.0, %v2460
      %2462 = vmatmul.f32.gmra.mxu0 %v2348
      %v2463 = vpop.f32.mrf.mxu0
      %v2464 = vadd.f32 0.0, %v2463
      %2465 = vmatmul.f32.gmra.mxu0 %v2351
      %v2466 = vpop.f32.mrf.mxu0
      %v2467 = vadd.f32 0.0, %v2466
      %2468 = vmatmul.f32.gmra.mxu0 %v2354
      %v2469 = vpop.f32.mrf.mxu0
      %v2470 = vadd.f32 0.0, %v2469
      %2471 = vmatmul.f32.gmra.mxu0 %v2357
      %v2472 = vpop.f32.mrf.mxu0
      %v2473 = vadd.f32 0.0, %v2472
      %2474 = vmatmul.f32.gmra.mxu0 %v2360
      %v2475 = vpop.f32.mrf.mxu0
      %v2476 = vadd.f32 0.0, %v2475
      %2477 = vmatmul.f32.gmra.mxu0 %v2363
      %v2478 = vpop.f32.mrf.mxu0
      %v2479 = vadd.f32 0.0, %v2478
      %2480 = vmatmul.f32.gmra.mxu0 %v2366
      %v2481 = vpop.f32.mrf.mxu0
      %v2482 = vadd.f32 0.0, %v2481
      %2483 = vmatmul.f32.gmra.mxu0 %v2369
      %v2484 = vpop.f32.mrf.mxu0
      %v2485 = vadd.f32 0.0, %v2484
      %2486 = vmatmul.f32.gmra.mxu0 %v2372
      %v2487 = vpop.f32.mrf.mxu0
      %v2488 = vadd.f32 0.0, %v2487
      %2489 = vmatmul.f32.gmra.mxu0 %v2375
      %v2490 = vpop.f32.mrf.mxu0
      %v2491 = vadd.f32 0.0, %v2490
      %2492 = vmatmul.f32.gmra.mxu0 %v2378
      %v2493 = vpop.f32.mrf.mxu0
      %v2494 = vadd.f32 0.0, %v2493
      %2495 = vmatmul.f32.gmra.mxu0 %v2381
      %v2496 = vpop.f32.mrf.mxu0
      %v2497 = vadd.f32 0.0, %v2496
      %2498 = vmatmul.f32.gmra.mxu0 %v2384
      %v2499 = vpop.f32.mrf.mxu0
      %v2500 = vadd.f32 0.0, %v2499
      %2501 = vmatmul.f32.gmra.mxu0 %v2387
      %v2502 = vpop.f32.mrf.mxu0
      %v2503 = vadd.f32 0.0, %v2502
      %2504 = vmatmul.f32.gmra.mxu0 %v2390
      %v2505 = vpop.f32.mrf.mxu0
      %v2506 = vadd.f32 0.0, %v2505
      %2507 = vmatmul.f32.gmra.mxu0 %v2393
      %v2508 = vpop.f32.mrf.mxu0
      %v2509 = vadd.f32 0.0, %v2508
      %2510 = vmatmul.f32.gmra.mxu0 %v2396
      %v2511 = vpop.f32.mrf.mxu0
      %v2512 = vadd.f32 0.0, %v2511
      %2513 = vmatmul.f32.gmra.mxu0 %v2399
      %v2514 = vpop.f32.mrf.mxu0
      %v2515 = vadd.f32 0.0, %v2514
      %2516 = vmatmul.f32.gmra.mxu0 %v2402
      %v2517 = vpop.f32.mrf.mxu0
      %v2518 = vadd.f32 0.0, %v2517
      %2519 = vmatmul.f32.gmra.mxu0 %v2405
      %v2520 = vpop.f32.mrf.mxu0
      %v2521 = vadd.f32 0.0, %v2520
      %2522 = vmatmul.f32.gmra.mxu0 %v2408
      %v2523 = vpop.f32.mrf.mxu0
      %v2524 = vadd.f32 0.0, %v2523
      %2525 = vmatmul.f32.gmra.mxu0 %v2411
      %v2526 = vpop.f32.mrf.mxu0
      %v2527 = vadd.f32 0.0, %v2526
      %2528 = vmatmul.f32.gmra.mxu0 %v2414
      %v2529 = vpop.f32.mrf.mxu0
      %v2530 = vadd.f32 0.0, %v2529
      %2531 = vmatmul.f32.gmra.mxu0 %v2417
      %v2532 = vpop.f32.mrf.mxu0
      %v2533 = vadd.f32 0.0, %v2532
      %2534 = vmatmul.f32.gmra.mxu0 %v2420
      %v2535 = vpop.f32.mrf.mxu0
      %v2536 = vadd.f32 0.0, %v2535
      %2537 = vmatmul.f32.gmra.mxu0 %v2423
      %v2538 = vpop.f32.mrf.mxu0
      %v2539 = vadd.f32 0.0, %v2538
      %2540 = vmatmul.f32.gmra.mxu0 %v2426
      %v2541 = vpop.f32.mrf.mxu0
      %v2542 = vadd.f32 0.0, %v2541
      %2543 = vmatmul.f32.gmra.mxu0 %v2429
      %v2544 = vpop.f32.mrf.mxu0
      %v2545 = vadd.f32 0.0, %v2544
      %2546 = vmatmul.f32.gmra.mxu0 %v2432
      %v2547 = vpop.f32.mrf.mxu0
      %v2548 = vadd.f32 0.0, %v2547
      %2549 = vmatmul.f32.gmra.mxu0 %v2435
      %v2550 = vpop.f32.mrf.mxu0
      %v2551 = vadd.f32 0.0, %v2550
      %2552 = vdwg.mxu0
      %v2553 = vadd.f32 %v2307, %v2458
      %v2554 = vadd.f32 %v2308, %v2461
      %v2555 = vadd.f32 %v2309, %v2464
      %v2556 = vadd.f32 %v2310, %v2467
      %v2557 = vadd.f32 %v2311, %v2470
      %v2558 = vadd.f32 %v2312, %v2473
      %v2559 = vadd.f32 %v2313, %v2476
      %v2560 = vadd.f32 %v2314, %v2479
      %v2561 = vadd.f32 %v2315, %v2482
      %v2562 = vadd.f32 %v2316, %v2485
      %v2563 = vadd.f32 %v2317, %v2488
      %v2564 = vadd.f32 %v2318, %v2491
      %v2565 = vadd.f32 %v2319, %v2494
      %v2566 = vadd.f32 %v2320, %v2497
      %v2567 = vadd.f32 %v2321, %v2500
      %v2568 = vadd.f32 %v2322, %v2503
      %v2569 = vadd.f32 %v2323, %v2506
      %v2570 = vadd.f32 %v2324, %v2509
      %v2571 = vadd.f32 %v2325, %v2512
      %v2572 = vadd.f32 %v2326, %v2515
      %v2573 = vadd.f32 %v2327, %v2518
      %v2574 = vadd.f32 %v2328, %v2521
      %v2575 = vadd.f32 %v2329, %v2524
      %v2576 = vadd.f32 %v2330, %v2527
      %v2577 = vadd.f32 %v2331, %v2530
      %v2578 = vadd.f32 %v2332, %v2533
      %v2579 = vadd.f32 %v2333, %v2536
      %v2580 = vadd.f32 %v2334, %v2539
      %v2581 = vadd.f32 %v2335, %v2542
      %v2582 = vadd.f32 %v2336, %v2545
      %v2583 = vadd.f32 %v2337, %v2548
      %v2584 = vadd.f32 %v2338, %v2551
      %v2585 = vld [vmem:[#allocation2 + $0x30] sm:$0xff]
      %v2586 = vld [vmem:[#allocation2 + $0x38] sm:$0xff]
      %v2587 = vld [vmem:[#allocation2 + $0x40] sm:$0xff]
      %v2588 = vld [vmem:[#allocation2 + $0x48] sm:$0xff]
      %v2589 = vld [vmem:[#allocation2 + $0x50] sm:$0xff]
      %v2590 = vld [vmem:[#allocation2 + $0x58] sm:$0xff]
      %v2591 = vld [vmem:[#allocation2 + $0x60] sm:$0xff]
      %v2592 = vld [vmem:[#allocation2 + $0x68] sm:$0xff]
      %v2593 = vld [vmem:[#allocation2 + $0x70] sm:$0xff]
      %v2594 = vld [vmem:[#allocation2 + $0x78] sm:$0xff]
      %v2595 = vld [vmem:[#allocation2 + $0x80] sm:$0xff]
      %v2596 = vld [vmem:[#allocation2 + $0x88] sm:$0xff]
      %v2597 = vld [vmem:[#allocation2 + $0x90] sm:$0xff]
      %v2598 = vld [vmem:[#allocation2 + $0x98] sm:$0xff]
      %v2599 = vld [vmem:[#allocation2 + $0xa0] sm:$0xff]
      %v2600 = vld [vmem:[#allocation2 + $0xa8] sm:$0xff]
      %v2601 = vld [vmem:[#allocation2 + $0xb0] sm:$0xff]
      %v2602 = vld [vmem:[#allocation2 + $0xb8] sm:$0xff]
      %v2603 = vld [vmem:[#allocation2 + $0xc0] sm:$0xff]
      %v2604 = vld [vmem:[#allocation2 + $0xc8] sm:$0xff]
      %v2605 = vld [vmem:[#allocation2 + $0xd0] sm:$0xff]
      %v2606 = vld [vmem:[#allocation2 + $0xd8] sm:$0xff]
      %v2607 = vld [vmem:[#allocation2 + $0xe0] sm:$0xff]
      %v2608 = vld [vmem:[#allocation2 + $0xe8] sm:$0xff]
      %v2609 = vld [vmem:[#allocation2 + $0xf0] sm:$0xff]
      %v2610 = vld [vmem:[#allocation2 + $0xf8] sm:$0xff]
      %v2611 = vld [vmem:[#allocation2 + $0x100] sm:$0xff]
      %v2612 = vld [vmem:[#allocation2 + $0x108] sm:$0xff]
      %v2613 = vld [vmem:[#allocation2 + $0x110] sm:$0xff]
      %v2614 = vld [vmem:[#allocation2 + $0x118] sm:$0xff]
      %v2615 = vld [vmem:[#allocation2 + $0x120] sm:$0xff]
      %v2616 = vld [vmem:[#allocation2 + $0x128] sm:$0xff]
      %v2617 = vld [vmem:[#allocation2 + $0x2f] sm:$0xff]
      %v2618 = vld [vmem:[#allocation2 + $0x37] sm:$0xff]
      %v2619 = vld [vmem:[#allocation2 + $0x3f] sm:$0xff]
      %v2620 = vld [vmem:[#allocation2 + $0x47] sm:$0xff]
      %v2621 = vld [vmem:[#allocation2 + $0x4f] sm:$0xff]
      %v2622 = vld [vmem:[#allocation2 + $0x57] sm:$0xff]
      %v2623 = vld [vmem:[#allocation2 + $0x5f] sm:$0xff]
      %v2624 = vld [vmem:[#allocation2 + $0x67] sm:$0xff]
      %v2625 = vld [vmem:[#allocation2 + $0x6f] sm:$0xff]
      %v2626 = vld [vmem:[#allocation2 + $0x77] sm:$0xff]
      %v2627 = vld [vmem:[#allocation2 + $0x7f] sm:$0xff]
      %v2628 = vld [vmem:[#allocation2 + $0x87] sm:$0xff]
      %v2629 = vld [vmem:[#allocation2 + $0x8f] sm:$0xff]
      %v2630 = vld [vmem:[#allocation2 + $0x97] sm:$0xff]
      %v2631 = vld [vmem:[#allocation2 + $0x9f] sm:$0xff]
      %v2632 = vld [vmem:[#allocation2 + $0xa7] sm:$0xff]
      %v2633 = vld [vmem:[#allocation2 + $0xaf] sm:$0xff]
      %v2634 = vld [vmem:[#allocation2 + $0xb7] sm:$0xff]
      %v2635 = vld [vmem:[#allocation2 + $0xbf] sm:$0xff]
      %v2636 = vld [vmem:[#allocation2 + $0xc7] sm:$0xff]
      %v2637 = vld [vmem:[#allocation2 + $0xcf] sm:$0xff]
      %v2638 = vld [vmem:[#allocation2 + $0xd7] sm:$0xff]
      %v2639 = vld [vmem:[#allocation2 + $0xdf] sm:$0xff]
      %v2640 = vld [vmem:[#allocation2 + $0xe7] sm:$0xff]
      %v2641 = vld [vmem:[#allocation2 + $0xef] sm:$0xff]
      %v2642 = vld [vmem:[#allocation2 + $0xf7] sm:$0xff]
      %v2643 = vld [vmem:[#allocation2 + $0xff] sm:$0xff]
      %v2644 = vld [vmem:[#allocation2 + $0x107] sm:$0xff]
      %v2645 = vld [vmem:[#allocation2 + $0x10f] sm:$0xff]
      %v2646 = vld [vmem:[#allocation2 + $0x117] sm:$0xff]
      %v2647 = vld [vmem:[#allocation2 + $0x11f] sm:$0xff]
      %v2648 = vld [vmem:[#allocation2 + $0x127] sm:$0xff]
      %v2649 = vld [vmem:[#allocation2 + $0x31] sm:$0xff]
      %v2650 = vld [vmem:[#allocation2 + $0x39] sm:$0xff]
      %v2651 = vld [vmem:[#allocation2 + $0x41] sm:$0xff]
      %v2652 = vld [vmem:[#allocation2 + $0x49] sm:$0xff]
      %v2653 = vld [vmem:[#allocation2 + $0x51] sm:$0xff]
      %v2654 = vld [vmem:[#allocation2 + $0x59] sm:$0xff]
      %v2655 = vld [vmem:[#allocation2 + $0x61] sm:$0xff]
      %v2656 = vld [vmem:[#allocation2 + $0x69] sm:$0xff]
      %v2657 = vld [vmem:[#allocation2 + $0x71] sm:$0xff]
      %v2658 = vld [vmem:[#allocation2 + $0x79] sm:$0xff]
      %v2659 = vld [vmem:[#allocation2 + $0x81] sm:$0xff]
      %v2660 = vld [vmem:[#allocation2 + $0x89] sm:$0xff]
      %v2661 = vld [vmem:[#allocation2 + $0x91] sm:$0xff]
      %v2662 = vld [vmem:[#allocation2 + $0x99] sm:$0xff]
      %v2663 = vld [vmem:[#allocation2 + $0xa1] sm:$0xff]
      %v2664 = vld [vmem:[#allocation2 + $0xa9] sm:$0xff]
      %v2665 = vld [vmem:[#allocation2 + $0xb1] sm:$0xff]
      %v2666 = vld [vmem:[#allocation2 + $0xb9] sm:$0xff]
      %v2667 = vld [vmem:[#allocation2 + $0xc1] sm:$0xff]
      %v2668 = vld [vmem:[#allocation2 + $0xc9] sm:$0xff]
      %v2669 = vld [vmem:[#allocation2 + $0xd1] sm:$0xff]
      %v2670 = vld [vmem:[#allocation2 + $0xd9] sm:$0xff]
      %v2671 = vld [vmem:[#allocation2 + $0xe1] sm:$0xff]
      %v2672 = vld [vmem:[#allocation2 + $0xe9] sm:$0xff]
      %v2673 = vld [vmem:[#allocation2 + $0xf1] sm:$0xff]
      %v2674 = vld [vmem:[#allocation2 + $0xf9] sm:$0xff]
      %v2675 = vld [vmem:[#allocation2 + $0x101] sm:$0xff]
      %v2676 = vld [vmem:[#allocation2 + $0x109] sm:$0xff]
      %v2677 = vld [vmem:[#allocation2 + $0x111] sm:$0xff]
      %v2678 = vld [vmem:[#allocation2 + $0x119] sm:$0xff]
      %v2679 = vld [vmem:[#allocation2 + $0x121] sm:$0xff]
      %v2680 = vld [vmem:[#allocation2 + $0x129] sm:$0xff]
      %v2681 = vsel %vm853, %v2585, %v2617
      %v2682 = vsel %vm854, %v2586, %v2618
      %v2683 = vsel %vm855, %v2587, %v2619
      %v2684 = vsel %vm856, %v2588, %v2620
      %v2685 = vsel %vm857, %v2589, %v2621
      %v2686 = vsel %vm858, %v2590, %v2622
      %v2687 = vsel %vm859, %v2591, %v2623
      %v2688 = vsel %vm860, %v2592, %v2624
      %v2689 = vsel %vm861, %v2593, %v2625
      %v2690 = vsel %vm862, %v2594, %v2626
      %v2691 = vsel %vm863, %v2595, %v2627
      %v2692 = vsel %vm864, %v2596, %v2628
      %v2693 = vsel %vm865, %v2597, %v2629
      %v2694 = vsel %vm866, %v2598, %v2630
      %v2695 = vsel %vm867, %v2599, %v2631
      %v2696 = vsel %vm868, %v2600, %v2632
      %v2697 = vsel %vm869, %v2601, %v2633
      %v2698 = vsel %vm870, %v2602, %v2634
      %v2699 = vsel %vm871, %v2603, %v2635
      %v2700 = vsel %vm872, %v2604, %v2636
      %v2701 = vsel %vm873, %v2605, %v2637
      %v2702 = vsel %vm874, %v2606, %v2638
      %v2703 = vsel %vm875, %v2607, %v2639
      %v2704 = vsel %vm876, %v2608, %v2640
      %v2705 = vsel %vm877, %v2609, %v2641
      %v2706 = vsel %vm878, %v2610, %v2642
      %v2707 = vsel %vm879, %v2611, %v2643
      %v2708 = vsel %vm880, %v2612, %v2644
      %v2709 = vsel %vm881, %v2613, %v2645
      %v2710 = vsel %vm882, %v2614, %v2646
      %v2711 = vsel %vm883, %v2615, %v2647
      %v2712 = vsel %vm884, %v2616, %v2648
      %v2713 = vsel %vm949, %v2585, %v2649
      %v2714 = vsel %vm950, %v2586, %v2650
      %v2715 = vsel %vm951, %v2587, %v2651
      %v2716 = vsel %vm952, %v2588, %v2652
      %v2717 = vsel %vm953, %v2589, %v2653
      %v2718 = vsel %vm954, %v2590, %v2654
      %v2719 = vsel %vm955, %v2591, %v2655
      %v2720 = vsel %vm956, %v2592, %v2656
      %v2721 = vsel %vm957, %v2593, %v2657
      %v2722 = vsel %vm958, %v2594, %v2658
      %v2723 = vsel %vm959, %v2595, %v2659
      %v2724 = vsel %vm960, %v2596, %v2660
      %v2725 = vsel %vm961, %v2597, %v2661
      %v2726 = vsel %vm962, %v2598, %v2662
      %v2727 = vsel %vm963, %v2599, %v2663
      %v2728 = vsel %vm964, %v2600, %v2664
      %v2729 = vsel %vm965, %v2601, %v2665
      %v2730 = vsel %vm966, %v2602, %v2666
      %v2731 = vsel %vm967, %v2603, %v2667
      %v2732 = vsel %vm968, %v2604, %v2668
      %v2733 = vsel %vm969, %v2605, %v2669
      %v2734 = vsel %vm970, %v2606, %v2670
      %v2735 = vsel %vm971, %v2607, %v2671
      %v2736 = vsel %vm972, %v2608, %v2672
      %v2737 = vsel %vm973, %v2609, %v2673
      %v2738 = vsel %vm974, %v2610, %v2674
      %v2739 = vsel %vm975, %v2611, %v2675
      %v2740 = vsel %vm976, %v2612, %v2676
      %v2741 = vsel %vm977, %v2613, %v2677
      %v2742 = vsel %vm978, %v2614, %v2678
      %v2743 = vsel %vm979, %v2615, %v2679
      %v2744 = vsel %vm980, %v2616, %v2680
      %s2745 = scalar_lea.vmem %s1, 24
      %v2746 = vld [vmem:[%s2745] sm:$0xf]
      %v2748 = vsel %vm684, %v2681, 0
      %v2751 = vsel %vm684, %v2682, 0
      %v2754 = vsel %vm684, %v2683, 0
      %v2757 = vsel %vm684, %v2684, 0
      %v2760 = vsel %vm684, %v2685, 0
      %v2763 = vsel %vm684, %v2686, 0
      %v2766 = vsel %vm684, %v2687, 0
      %v2769 = vsel %vm684, %v2688, 0
      %v2772 = vsel %vm684, %v2689, 0
      %v2775 = vsel %vm684, %v2690, 0
      %v2778 = vsel %vm684, %v2691, 0
      %v2781 = vsel %vm684, %v2692, 0
      %v2784 = vsel %vm684, %v2693, 0
      %v2787 = vsel %vm684, %v2694, 0
      %v2790 = vsel %vm684, %v2695, 0
      %v2793 = vsel %vm684, %v2696, 0
      %v2796 = vsel %vm684, %v2697, 0
      %v2799 = vsel %vm684, %v2698, 0
      %v2802 = vsel %vm684, %v2699, 0
      %v2805 = vsel %vm684, %v2700, 0
      %v2808 = vsel %vm684, %v2701, 0
      %v2811 = vsel %vm684, %v2702, 0
      %v2814 = vsel %vm684, %v2703, 0
      %v2817 = vsel %vm684, %v2704, 0
      %v2820 = vsel %vm684, %v2705, 0
      %v2823 = vsel %vm684, %v2706, 0
      %v2826 = vsel %vm684, %v2707, 0
      %v2829 = vsel %vm684, %v2708, 0
      %v2832 = vsel %vm684, %v2709, 0
      %v2835 = vsel %vm684, %v2710, 0
      %v2838 = vsel %vm684, %v2711, 0
      %v2841 = vsel %vm684, %v2712, 0
      %v2844 = vsel %vm1112, %v2746, 0
      %2846 = vmatpush.msra.mxu0 0.0
      %2847 = vmatpush.msra.mxu0 0.0
      %2848 = vmatpush.msra.mxu0 0.0
      %2849 = vmatpush.msra.mxu0 0.0
      %2850 = vmatpush.msra.mxu0 0.0
      %2851 = vmatpush.msra.mxu0 0.0
      %2852 = vmatpush.msra.mxu0 0.0
      %2853 = vmatpush.msra.mxu0 0.0
      %2854 = vmatpush.msra.mxu0 0.0
      %2855 = vmatpush.msra.mxu0 0.0
      %2856 = vmatpush.msra.mxu0 0.0
      %2857 = vmatpush.msra.mxu0 0.0
      %2858 = vmatpush.msra.mxu0 0.0
      %2859 = vmatpush.msra.mxu0 0.0
      %2860 = vmatpush.msra.mxu0 0.0
      %2861 = vmatpush.msra.mxu0 %v2844
      %2862 = vmatmul.f32.gmra.mxu0 %v2748
      %v2863 = vpop.f32.mrf.mxu0
      %v2864 = vadd.f32 0.0, %v2863
      %2865 = vmatmul.f32.gmra.mxu0 %v2751
      %v2866 = vpop.f32.mrf.mxu0
      %v2867 = vadd.f32 0.0, %v2866
      %2868 = vmatmul.f32.gmra.mxu0 %v2754
      %v2869 = vpop.f32.mrf.mxu0
      %v2870 = vadd.f32 0.0, %v2869
      %2871 = vmatmul.f32.gmra.mxu0 %v2757
      %v2872 = vpop.f32.mrf.mxu0
      %v2873 = vadd.f32 0.0, %v2872
      %2874 = vmatmul.f32.gmra.mxu0 %v2760
      %v2875 = vpop.f32.mrf.mxu0
      %v2876 = vadd.f32 0.0, %v2875
      %2877 = vmatmul.f32.gmra.mxu0 %v2763
      %v2878 = vpop.f32.mrf.mxu0
      %v2879 = vadd.f32 0.0, %v2878
      %2880 = vmatmul.f32.gmra.mxu0 %v2766
      %v2881 = vpop.f32.mrf.mxu0
      %v2882 = vadd.f32 0.0, %v2881
      %2883 = vmatmul.f32.gmra.mxu0 %v2769
      %v2884 = vpop.f32.mrf.mxu0
      %v2885 = vadd.f32 0.0, %v2884
      %2886 = vmatmul.f32.gmra.mxu0 %v2772
      %v2887 = vpop.f32.mrf.mxu0
      %v2888 = vadd.f32 0.0, %v2887
      %2889 = vmatmul.f32.gmra.mxu0 %v2775
      %v2890 = vpop.f32.mrf.mxu0
      %v2891 = vadd.f32 0.0, %v2890
      %2892 = vmatmul.f32.gmra.mxu0 %v2778
      %v2893 = vpop.f32.mrf.mxu0
      %v2894 = vadd.f32 0.0, %v2893
      %2895 = vmatmul.f32.gmra.mxu0 %v2781
      %v2896 = vpop.f32.mrf.mxu0
      %v2897 = vadd.f32 0.0, %v2896
      %2898 = vmatmul.f32.gmra.mxu0 %v2784
      %v2899 = vpop.f32.mrf.mxu0
      %v2900 = vadd.f32 0.0, %v2899
      %2901 = vmatmul.f32.gmra.mxu0 %v2787
      %v2902 = vpop.f32.mrf.mxu0
      %v2903 = vadd.f32 0.0, %v2902
      %2904 = vmatmul.f32.gmra.mxu0 %v2790
      %v2905 = vpop.f32.mrf.mxu0
      %v2906 = vadd.f32 0.0, %v2905
      %2907 = vmatmul.f32.gmra.mxu0 %v2793
      %v2908 = vpop.f32.mrf.mxu0
      %v2909 = vadd.f32 0.0, %v2908
      %2910 = vmatmul.f32.gmra.mxu0 %v2796
      %v2911 = vpop.f32.mrf.mxu0
      %v2912 = vadd.f32 0.0, %v2911
      %2913 = vmatmul.f32.gmra.mxu0 %v2799
      %v2914 = vpop.f32.mrf.mxu0
      %v2915 = vadd.f32 0.0, %v2914
      %2916 = vmatmul.f32.gmra.mxu0 %v2802
      %v2917 = vpop.f32.mrf.mxu0
      %v2918 = vadd.f32 0.0, %v2917
      %2919 = vmatmul.f32.gmra.mxu0 %v2805
      %v2920 = vpop.f32.mrf.mxu0
      %v2921 = vadd.f32 0.0, %v2920
      %2922 = vmatmul.f32.gmra.mxu0 %v2808
      %v2923 = vpop.f32.mrf.mxu0
      %v2924 = vadd.f32 0.0, %v2923
      %2925 = vmatmul.f32.gmra.mxu0 %v2811
      %v2926 = vpop.f32.mrf.mxu0
      %v2927 = vadd.f32 0.0, %v2926
      %2928 = vmatmul.f32.gmra.mxu0 %v2814
      %v2929 = vpop.f32.mrf.mxu0
      %v2930 = vadd.f32 0.0, %v2929
      %2931 = vmatmul.f32.gmra.mxu0 %v2817
      %v2932 = vpop.f32.mrf.mxu0
      %v2933 = vadd.f32 0.0, %v2932
      %2934 = vmatmul.f32.gmra.mxu0 %v2820
      %v2935 = vpop.f32.mrf.mxu0
      %v2936 = vadd.f32 0.0, %v2935
      %2937 = vmatmul.f32.gmra.mxu0 %v2823
      %v2938 = vpop.f32.mrf.mxu0
      %v2939 = vadd.f32 0.0, %v2938
      %2940 = vmatmul.f32.gmra.mxu0 %v2826
      %v2941 = vpop.f32.mrf.mxu0
      %v2942 = vadd.f32 0.0, %v2941
      %2943 = vmatmul.f32.gmra.mxu0 %v2829
      %v2944 = vpop.f32.mrf.mxu0
      %v2945 = vadd.f32 0.0, %v2944
      %2946 = vmatmul.f32.gmra.mxu0 %v2832
      %v2947 = vpop.f32.mrf.mxu0
      %v2948 = vadd.f32 0.0, %v2947
      %2949 = vmatmul.f32.gmra.mxu0 %v2835
      %v2950 = vpop.f32.mrf.mxu0
      %v2951 = vadd.f32 0.0, %v2950
      %2952 = vmatmul.f32.gmra.mxu0 %v2838
      %v2953 = vpop.f32.mrf.mxu0
      %v2954 = vadd.f32 0.0, %v2953
      %2955 = vmatmul.f32.gmra.mxu0 %v2841
      %v2956 = vpop.f32.mrf.mxu0
      %v2957 = vadd.f32 0.0, %v2956
      %2958 = vdwg.mxu0
      %v2959 = vadd.f32 %v2553, %v2864
      %v2960 = vadd.f32 %v2554, %v2867
      %v2961 = vadd.f32 %v2555, %v2870
      %v2962 = vadd.f32 %v2556, %v2873
      %v2963 = vadd.f32 %v2557, %v2876
      %v2964 = vadd.f32 %v2558, %v2879
      %v2965 = vadd.f32 %v2559, %v2882
      %v2966 = vadd.f32 %v2560, %v2885
      %v2967 = vadd.f32 %v2561, %v2888
      %v2968 = vadd.f32 %v2562, %v2891
      %v2969 = vadd.f32 %v2563, %v2894
      %v2970 = vadd.f32 %v2564, %v2897
      %v2971 = vadd.f32 %v2565, %v2900
      %v2972 = vadd.f32 %v2566, %v2903
      %v2973 = vadd.f32 %v2567, %v2906
      %v2974 = vadd.f32 %v2568, %v2909
      %v2975 = vadd.f32 %v2569, %v2912
      %v2976 = vadd.f32 %v2570, %v2915
      %v2977 = vadd.f32 %v2571, %v2918
      %v2978 = vadd.f32 %v2572, %v2921
      %v2979 = vadd.f32 %v2573, %v2924
      %v2980 = vadd.f32 %v2574, %v2927
      %v2981 = vadd.f32 %v2575, %v2930
      %v2982 = vadd.f32 %v2576, %v2933
      %v2983 = vadd.f32 %v2577, %v2936
      %v2984 = vadd.f32 %v2578, %v2939
      %v2985 = vadd.f32 %v2579, %v2942
      %v2986 = vadd.f32 %v2580, %v2945
      %v2987 = vadd.f32 %v2581, %v2948
      %v2988 = vadd.f32 %v2582, %v2951
      %v2989 = vadd.f32 %v2583, %v2954
      %v2990 = vadd.f32 %v2584, %v2957
      %s2991 = scalar_lea.vmem %s1, 28
      %v2992 = vld [vmem:[%s2991] sm:$0xf]
      %v2994 = vsel %vm684, %v2585, 0
      %v2997 = vsel %vm684, %v2586, 0
      %v3000 = vsel %vm684, %v2587, 0
      %v3003 = vsel %vm684, %v2588, 0
      %v3006 = vsel %vm684, %v2589, 0
      %v3009 = vsel %vm684, %v2590, 0
      %v3012 = vsel %vm684, %v2591, 0
      %v3015 = vsel %vm684, %v2592, 0
      %v3018 = vsel %vm684, %v2593, 0
      %v3021 = vsel %vm684, %v2594, 0
      %v3024 = vsel %vm684, %v2595, 0
      %v3027 = vsel %vm684, %v2596, 0
      %v3030 = vsel %vm684, %v2597, 0
      %v3033 = vsel %vm684, %v2598, 0
      %v3036 = vsel %vm684, %v2599, 0
      %v3039 = vsel %vm684, %v2600, 0
      %v3042 = vsel %vm684, %v2601, 0
      %v3045 = vsel %vm684, %v2602, 0
      %v3048 = vsel %vm684, %v2603, 0
      %v3051 = vsel %vm684, %v2604, 0
      %v3054 = vsel %vm684, %v2605, 0
      %v3057 = vsel %vm684, %v2606, 0
      %v3060 = vsel %vm684, %v2607, 0
      %v3063 = vsel %vm684, %v2608, 0
      %v3066 = vsel %vm684, %v2609, 0
      %v3069 = vsel %vm684, %v2610, 0
      %v3072 = vsel %vm684, %v2611, 0
      %v3075 = vsel %vm684, %v2612, 0
      %v3078 = vsel %vm684, %v2613, 0
      %v3081 = vsel %vm684, %v2614, 0
      %v3084 = vsel %vm684, %v2615, 0
      %v3087 = vsel %vm684, %v2616, 0
      %v3090 = vsel %vm1112, %v2992, 0
      %3092 = vmatpush.msra.mxu0 0.0
      %3093 = vmatpush.msra.mxu0 0.0
      %3094 = vmatpush.msra.mxu0 0.0
      %3095 = vmatpush.msra.mxu0 0.0
      %3096 = vmatpush.msra.mxu0 0.0
      %3097 = vmatpush.msra.mxu0 0.0
      %3098 = vmatpush.msra.mxu0 0.0
      %3099 = vmatpush.msra.mxu0 0.0
      %3100 = vmatpush.msra.mxu0 0.0
      %3101 = vmatpush.msra.mxu0 0.0
      %3102 = vmatpush.msra.mxu0 0.0
      %3103 = vmatpush.msra.mxu0 0.0
      %3104 = vmatpush.msra.mxu0 0.0
      %3105 = vmatpush.msra.mxu0 0.0
      %3106 = vmatpush.msra.mxu0 0.0
      %3107 = vmatpush.msra.mxu0 %v3090
      %3108 = vmatmul.f32.gmra.mxu0 %v2994
      %v3109 = vpop.f32.mrf.mxu0
      %v3110 = vadd.f32 0.0, %v3109
      %3111 = vmatmul.f32.gmra.mxu0 %v2997
      %v3112 = vpop.f32.mrf.mxu0
      %v3113 = vadd.f32 0.0, %v3112
      %3114 = vmatmul.f32.gmra.mxu0 %v3000
      %v3115 = vpop.f32.mrf.mxu0
      %v3116 = vadd.f32 0.0, %v3115
      %3117 = vmatmul.f32.gmra.mxu0 %v3003
      %v3118 = vpop.f32.mrf.mxu0
      %v3119 = vadd.f32 0.0, %v3118
      %3120 = vmatmul.f32.gmra.mxu0 %v3006
      %v3121 = vpop.f32.mrf.mxu0
      %v3122 = vadd.f32 0.0, %v3121
      %3123 = vmatmul.f32.gmra.mxu0 %v3009
      %v3124 = vpop.f32.mrf.mxu0
      %v3125 = vadd.f32 0.0, %v3124
      %3126 = vmatmul.f32.gmra.mxu0 %v3012
      %v3127 = vpop.f32.mrf.mxu0
      %v3128 = vadd.f32 0.0, %v3127
      %3129 = vmatmul.f32.gmra.mxu0 %v3015
      %v3130 = vpop.f32.mrf.mxu0
      %v3131 = vadd.f32 0.0, %v3130
      %3132 = vmatmul.f32.gmra.mxu0 %v3018
      %v3133 = vpop.f32.mrf.mxu0
      %v3134 = vadd.f32 0.0, %v3133
      %3135 = vmatmul.f32.gmra.mxu0 %v3021
      %v3136 = vpop.f32.mrf.mxu0
      %v3137 = vadd.f32 0.0, %v3136
      %3138 = vmatmul.f32.gmra.mxu0 %v3024
      %v3139 = vpop.f32.mrf.mxu0
      %v3140 = vadd.f32 0.0, %v3139
      %3141 = vmatmul.f32.gmra.mxu0 %v3027
      %v3142 = vpop.f32.mrf.mxu0
      %v3143 = vadd.f32 0.0, %v3142
      %3144 = vmatmul.f32.gmra.mxu0 %v3030
      %v3145 = vpop.f32.mrf.mxu0
      %v3146 = vadd.f32 0.0, %v3145
      %3147 = vmatmul.f32.gmra.mxu0 %v3033
      %v3148 = vpop.f32.mrf.mxu0
      %v3149 = vadd.f32 0.0, %v3148
      %3150 = vmatmul.f32.gmra.mxu0 %v3036
      %v3151 = vpop.f32.mrf.mxu0
      %v3152 = vadd.f32 0.0, %v3151
      %3153 = vmatmul.f32.gmra.mxu0 %v3039
      %v3154 = vpop.f32.mrf.mxu0
      %v3155 = vadd.f32 0.0, %v3154
      %3156 = vmatmul.f32.gmra.mxu0 %v3042
      %v3157 = vpop.f32.mrf.mxu0
      %v3158 = vadd.f32 0.0, %v3157
      %3159 = vmatmul.f32.gmra.mxu0 %v3045
      %v3160 = vpop.f32.mrf.mxu0
      %v3161 = vadd.f32 0.0, %v3160
      %3162 = vmatmul.f32.gmra.mxu0 %v3048
      %v3163 = vpop.f32.mrf.mxu0
      %v3164 = vadd.f32 0.0, %v3163
      %3165 = vmatmul.f32.gmra.mxu0 %v3051
      %v3166 = vpop.f32.mrf.mxu0
      %v3167 = vadd.f32 0.0, %v3166
      %3168 = vmatmul.f32.gmra.mxu0 %v3054
      %v3169 = vpop.f32.mrf.mxu0
      %v3170 = vadd.f32 0.0, %v3169
      %3171 = vmatmul.f32.gmra.mxu0 %v3057
      %v3172 = vpop.f32.mrf.mxu0
      %v3173 = vadd.f32 0.0, %v3172
      %3174 = vmatmul.f32.gmra.mxu0 %v3060
      %v3175 = vpop.f32.mrf.mxu0
      %v3176 = vadd.f32 0.0, %v3175
      %3177 = vmatmul.f32.gmra.mxu0 %v3063
      %v3178 = vpop.f32.mrf.mxu0
      %v3179 = vadd.f32 0.0, %v3178
      %3180 = vmatmul.f32.gmra.mxu0 %v3066
      %v3181 = vpop.f32.mrf.mxu0
      %v3182 = vadd.f32 0.0, %v3181
      %3183 = vmatmul.f32.gmra.mxu0 %v3069
      %v3184 = vpop.f32.mrf.mxu0
      %v3185 = vadd.f32 0.0, %v3184
      %3186 = vmatmul.f32.gmra.mxu0 %v3072
      %v3187 = vpop.f32.mrf.mxu0
      %v3188 = vadd.f32 0.0, %v3187
      %3189 = vmatmul.f32.gmra.mxu0 %v3075
      %v3190 = vpop.f32.mrf.mxu0
      %v3191 = vadd.f32 0.0, %v3190
      %3192 = vmatmul.f32.gmra.mxu0 %v3078
      %v3193 = vpop.f32.mrf.mxu0
      %v3194 = vadd.f32 0.0, %v3193
      %3195 = vmatmul.f32.gmra.mxu0 %v3081
      %v3196 = vpop.f32.mrf.mxu0
      %v3197 = vadd.f32 0.0, %v3196
      %3198 = vmatmul.f32.gmra.mxu0 %v3084
      %v3199 = vpop.f32.mrf.mxu0
      %v3200 = vadd.f32 0.0, %v3199
      %3201 = vmatmul.f32.gmra.mxu0 %v3087
      %v3202 = vpop.f32.mrf.mxu0
      %v3203 = vadd.f32 0.0, %v3202
      %3204 = vdwg.mxu0
      %v3205 = vadd.f32 %v2959, %v3110
      %v3206 = vadd.f32 %v2960, %v3113
      %v3207 = vadd.f32 %v2961, %v3116
      %v3208 = vadd.f32 %v2962, %v3119
      %v3209 = vadd.f32 %v2963, %v3122
      %v3210 = vadd.f32 %v2964, %v3125
      %v3211 = vadd.f32 %v2965, %v3128
      %v3212 = vadd.f32 %v2966, %v3131
      %v3213 = vadd.f32 %v2967, %v3134
      %v3214 = vadd.f32 %v2968, %v3137
      %v3215 = vadd.f32 %v2969, %v3140
      %v3216 = vadd.f32 %v2970, %v3143
      %v3217 = vadd.f32 %v2971, %v3146
      %v3218 = vadd.f32 %v2972, %v3149
      %v3219 = vadd.f32 %v2973, %v3152
      %v3220 = vadd.f32 %v2974, %v3155
      %v3221 = vadd.f32 %v2975, %v3158
      %v3222 = vadd.f32 %v2976, %v3161
      %v3223 = vadd.f32 %v2977, %v3164
      %v3224 = vadd.f32 %v2978, %v3167
      %v3225 = vadd.f32 %v2979, %v3170
      %v3226 = vadd.f32 %v2980, %v3173
      %v3227 = vadd.f32 %v2981, %v3176
      %v3228 = vadd.f32 %v2982, %v3179
      %v3229 = vadd.f32 %v2983, %v3182
      %v3230 = vadd.f32 %v2984, %v3185
      %v3231 = vadd.f32 %v2985, %v3188
      %v3232 = vadd.f32 %v2986, %v3191
      %v3233 = vadd.f32 %v2987, %v3194
      %v3234 = vadd.f32 %v2988, %v3197
      %v3235 = vadd.f32 %v2989, %v3200
      %v3236 = vadd.f32 %v2990, %v3203
      %s3237 = scalar_lea.vmem %s1, 32
      %v3238 = vld [vmem:[%s3237] sm:$0xf]
      %v3240 = vsel %vm684, %v2713, 0
      %v3243 = vsel %vm684, %v2714, 0
      %v3246 = vsel %vm684, %v2715, 0
      %v3249 = vsel %vm684, %v2716, 0
      %v3252 = vsel %vm684, %v2717, 0
      %v3255 = vsel %vm684, %v2718, 0
      %v3258 = vsel %vm684, %v2719, 0
      %v3261 = vsel %vm684, %v2720, 0
      %v3264 = vsel %vm684, %v2721, 0
      %v3267 = vsel %vm684, %v2722, 0
      %v3270 = vsel %vm684, %v2723, 0
      %v3273 = vsel %vm684, %v2724, 0
      %v3276 = vsel %vm684, %v2725, 0
      %v3279 = vsel %vm684, %v2726, 0
      %v3282 = vsel %vm684, %v2727, 0
      %v3285 = vsel %vm684, %v2728, 0
      %v3288 = vsel %vm684, %v2729, 0
      %v3291 = vsel %vm684, %v2730, 0
      %v3294 = vsel %vm684, %v2731, 0
      %v3297 = vsel %vm684, %v2732, 0
      %v3300 = vsel %vm684, %v2733, 0
      %v3303 = vsel %vm684, %v2734, 0
      %v3306 = vsel %vm684, %v2735, 0
      %v3309 = vsel %vm684, %v2736, 0
      %v3312 = vsel %vm684, %v2737, 0
      %v3315 = vsel %vm684, %v2738, 0
      %v3318 = vsel %vm684, %v2739, 0
      %v3321 = vsel %vm684, %v2740, 0
      %v3324 = vsel %vm684, %v2741, 0
      %v3327 = vsel %vm684, %v2742, 0
      %v3330 = vsel %vm684, %v2743, 0
      %v3333 = vsel %vm684, %v2744, 0
      %v3336 = vsel %vm1112, %v3238, 0
      %3338 = vmatpush.msra.mxu0 0.0
      %3339 = vmatpush.msra.mxu0 0.0
      %3340 = vmatpush.msra.mxu0 0.0
      %3341 = vmatpush.msra.mxu0 0.0
      %3342 = vmatpush.msra.mxu0 0.0
      %3343 = vmatpush.msra.mxu0 0.0
      %3344 = vmatpush.msra.mxu0 0.0
      %3345 = vmatpush.msra.mxu0 0.0
      %3346 = vmatpush.msra.mxu0 0.0
      %3347 = vmatpush.msra.mxu0 0.0
      %3348 = vmatpush.msra.mxu0 0.0
      %3349 = vmatpush.msra.mxu0 0.0
      %3350 = vmatpush.msra.mxu0 0.0
      %3351 = vmatpush.msra.mxu0 0.0
      %3352 = vmatpush.msra.mxu0 0.0
      %3353 = vmatpush.msra.mxu0 %v3336
      %3354 = vmatmul.f32.gmra.mxu0 %v3240
      %v3355 = vpop.f32.mrf.mxu0
      %v3356 = vadd.f32 0.0, %v3355
      %3357 = vmatmul.f32.gmra.mxu0 %v3243
      %v3358 = vpop.f32.mrf.mxu0
      %v3359 = vadd.f32 0.0, %v3358
      %3360 = vmatmul.f32.gmra.mxu0 %v3246
      %v3361 = vpop.f32.mrf.mxu0
      %v3362 = vadd.f32 0.0, %v3361
      %3363 = vmatmul.f32.gmra.mxu0 %v3249
      %v3364 = vpop.f32.mrf.mxu0
      %v3365 = vadd.f32 0.0, %v3364
      %3366 = vmatmul.f32.gmra.mxu0 %v3252
      %v3367 = vpop.f32.mrf.mxu0
      %v3368 = vadd.f32 0.0, %v3367
      %3369 = vmatmul.f32.gmra.mxu0 %v3255
      %v3370 = vpop.f32.mrf.mxu0
      %v3371 = vadd.f32 0.0, %v3370
      %3372 = vmatmul.f32.gmra.mxu0 %v3258
      %v3373 = vpop.f32.mrf.mxu0
      %v3374 = vadd.f32 0.0, %v3373
      %3375 = vmatmul.f32.gmra.mxu0 %v3261
      %v3376 = vpop.f32.mrf.mxu0
      %v3377 = vadd.f32 0.0, %v3376
      %3378 = vmatmul.f32.gmra.mxu0 %v3264
      %v3379 = vpop.f32.mrf.mxu0
      %v3380 = vadd.f32 0.0, %v3379
      %3381 = vmatmul.f32.gmra.mxu0 %v3267
      %v3382 = vpop.f32.mrf.mxu0
      %v3383 = vadd.f32 0.0, %v3382
      %3384 = vmatmul.f32.gmra.mxu0 %v3270
      %v3385 = vpop.f32.mrf.mxu0
      %v3386 = vadd.f32 0.0, %v3385
      %3387 = vmatmul.f32.gmra.mxu0 %v3273
      %v3388 = vpop.f32.mrf.mxu0
      %v3389 = vadd.f32 0.0, %v3388
      %3390 = vmatmul.f32.gmra.mxu0 %v3276
      %v3391 = vpop.f32.mrf.mxu0
      %v3392 = vadd.f32 0.0, %v3391
      %3393 = vmatmul.f32.gmra.mxu0 %v3279
      %v3394 = vpop.f32.mrf.mxu0
      %v3395 = vadd.f32 0.0, %v3394
      %3396 = vmatmul.f32.gmra.mxu0 %v3282
      %v3397 = vpop.f32.mrf.mxu0
      %v3398 = vadd.f32 0.0, %v3397
      %3399 = vmatmul.f32.gmra.mxu0 %v3285
      %v3400 = vpop.f32.mrf.mxu0
      %v3401 = vadd.f32 0.0, %v3400
      %3402 = vmatmul.f32.gmra.mxu0 %v3288
      %v3403 = vpop.f32.mrf.mxu0
      %v3404 = vadd.f32 0.0, %v3403
      %3405 = vmatmul.f32.gmra.mxu0 %v3291
      %v3406 = vpop.f32.mrf.mxu0
      %v3407 = vadd.f32 0.0, %v3406
      %3408 = vmatmul.f32.gmra.mxu0 %v3294
      %v3409 = vpop.f32.mrf.mxu0
      %v3410 = vadd.f32 0.0, %v3409
      %3411 = vmatmul.f32.gmra.mxu0 %v3297
      %v3412 = vpop.f32.mrf.mxu0
      %v3413 = vadd.f32 0.0, %v3412
      %3414 = vmatmul.f32.gmra.mxu0 %v3300
      %v3415 = vpop.f32.mrf.mxu0
      %v3416 = vadd.f32 0.0, %v3415
      %3417 = vmatmul.f32.gmra.mxu0 %v3303
      %v3418 = vpop.f32.mrf.mxu0
      %v3419 = vadd.f32 0.0, %v3418
      %3420 = vmatmul.f32.gmra.mxu0 %v3306
      %v3421 = vpop.f32.mrf.mxu0
      %v3422 = vadd.f32 0.0, %v3421
      %3423 = vmatmul.f32.gmra.mxu0 %v3309
      %v3424 = vpop.f32.mrf.mxu0
      %v3425 = vadd.f32 0.0, %v3424
      %3426 = vmatmul.f32.gmra.mxu0 %v3312
      %v3427 = vpop.f32.mrf.mxu0
      %v3428 = vadd.f32 0.0, %v3427
      %3429 = vmatmul.f32.gmra.mxu0 %v3315
      %v3430 = vpop.f32.mrf.mxu0
      %v3431 = vadd.f32 0.0, %v3430
      %3432 = vmatmul.f32.gmra.mxu0 %v3318
      %v3433 = vpop.f32.mrf.mxu0
      %v3434 = vadd.f32 0.0, %v3433
      %3435 = vmatmul.f32.gmra.mxu0 %v3321
      %v3436 = vpop.f32.mrf.mxu0
      %v3437 = vadd.f32 0.0, %v3436
      %3438 = vmatmul.f32.gmra.mxu0 %v3324
      %v3439 = vpop.f32.mrf.mxu0
      %v3440 = vadd.f32 0.0, %v3439
      %3441 = vmatmul.f32.gmra.mxu0 %v3327
      %v3442 = vpop.f32.mrf.mxu0
      %v3443 = vadd.f32 0.0, %v3442
      %3444 = vmatmul.f32.gmra.mxu0 %v3330
      %v3445 = vpop.f32.mrf.mxu0
      %v3446 = vadd.f32 0.0, %v3445
      %3447 = vmatmul.f32.gmra.mxu0 %v3333
      %v3448 = vpop.f32.mrf.mxu0
      %v3449 = vadd.f32 0.0, %v3448
      %3450 = vdwg.mxu0
      %v3451 = vadd.f32 %v3205, %v3356
      %v3452 = vadd.f32 %v3206, %v3359
      %v3453 = vadd.f32 %v3207, %v3362
      %v3454 = vadd.f32 %v3208, %v3365
      %v3455 = vadd.f32 %v3209, %v3368
      %v3456 = vadd.f32 %v3210, %v3371
      %v3457 = vadd.f32 %v3211, %v3374
      %v3458 = vadd.f32 %v3212, %v3377
      %v3459 = vadd.f32 %v3213, %v3380
      %v3460 = vadd.f32 %v3214, %v3383
      %v3461 = vadd.f32 %v3215, %v3386
      %v3462 = vadd.f32 %v3216, %v3389
      %v3463 = vadd.f32 %v3217, %v3392
      %v3464 = vadd.f32 %v3218, %v3395
      %v3465 = vadd.f32 %v3219, %v3398
      %v3466 = vadd.f32 %v3220, %v3401
      %v3467 = vadd.f32 %v3221, %v3404
      %v3468 = vadd.f32 %v3222, %v3407
      %v3469 = vadd.f32 %v3223, %v3410
      %v3470 = vadd.f32 %v3224, %v3413
      %v3471 = vadd.f32 %v3225, %v3416
      %v3472 = vadd.f32 %v3226, %v3419
      %v3473 = vadd.f32 %v3227, %v3422
      %v3474 = vadd.f32 %v3228, %v3425
      %v3475 = vadd.f32 %v3229, %v3428
      %v3476 = vadd.f32 %v3230, %v3431
      %v3477 = vadd.f32 %v3231, %v3434
      %v3478 = vadd.f32 %v3232, %v3437
      %v3479 = vadd.f32 %v3233, %v3440
      %v3480 = vadd.f32 %v3234, %v3443
      %v3481 = vadd.f32 %v3235, %v3446
      %v3482 = vadd.f32 %v3236, %v3449
      %v3483 = vsel %vm684, %v3451, 0.0
      %v3484 = vsel %vm684, %v3452, 0.0
      %v3485 = vadd.f32 %v3483, %v3484
      %v3486 = vsel %vm684, %v3453, 0.0
      %v3487 = vadd.f32 %v3485, %v3486
      %v3488 = vsel %vm684, %v3454, 0.0
      %v3489 = vadd.f32 %v3487, %v3488
      %v3490 = vsel %vm684, %v3455, 0.0
      %v3491 = vadd.f32 %v3489, %v3490
      %v3492 = vsel %vm684, %v3456, 0.0
      %v3493 = vadd.f32 %v3491, %v3492
      %v3494 = vsel %vm684, %v3457, 0.0
      %v3495 = vadd.f32 %v3493, %v3494
      %v3496 = vsel %vm684, %v3458, 0.0
      %v3497 = vadd.f32 %v3495, %v3496
      %v3498 = vsel %vm684, %v3459, 0.0
      %v3499 = vadd.f32 %v3497, %v3498
      %v3500 = vsel %vm684, %v3460, 0.0
      %v3501 = vadd.f32 %v3499, %v3500
      %v3502 = vsel %vm684, %v3461, 0.0
      %v3503 = vadd.f32 %v3501, %v3502
      %v3504 = vsel %vm684, %v3462, 0.0
      %v3505 = vadd.f32 %v3503, %v3504
      %v3506 = vsel %vm684, %v3463, 0.0
      %v3507 = vadd.f32 %v3505, %v3506
      %v3508 = vsel %vm684, %v3464, 0.0
      %v3509 = vadd.f32 %v3507, %v3508
      %v3510 = vsel %vm684, %v3465, 0.0
      %v3511 = vadd.f32 %v3509, %v3510
      %v3512 = vsel %vm684, %v3466, 0.0
      %v3513 = vadd.f32 %v3511, %v3512
      %v3514 = vsel %vm684, %v3467, 0.0
      %v3515 = vadd.f32 %v3513, %v3514
      %v3516 = vsel %vm684, %v3468, 0.0
      %v3517 = vadd.f32 %v3515, %v3516
      %v3518 = vsel %vm684, %v3469, 0.0
      %v3519 = vadd.f32 %v3517, %v3518
      %v3520 = vsel %vm684, %v3470, 0.0
      %v3521 = vadd.f32 %v3519, %v3520
      %v3522 = vsel %vm684, %v3471, 0.0
      %v3523 = vadd.f32 %v3521, %v3522
      %v3524 = vsel %vm684, %v3472, 0.0
      %v3525 = vadd.f32 %v3523, %v3524
      %v3526 = vsel %vm684, %v3473, 0.0
      %v3527 = vadd.f32 %v3525, %v3526
      %v3528 = vsel %vm684, %v3474, 0.0
      %v3529 = vadd.f32 %v3527, %v3528
      %v3530 = vsel %vm684, %v3475, 0.0
      %v3531 = vadd.f32 %v3529, %v3530
      %v3532 = vsel %vm684, %v3476, 0.0
      %v3533 = vadd.f32 %v3531, %v3532
      %v3534 = vsel %vm684, %v3477, 0.0
      %v3535 = vadd.f32 %v3533, %v3534
      %v3536 = vsel %vm684, %v3478, 0.0
      %v3537 = vadd.f32 %v3535, %v3536
      %v3538 = vsel %vm684, %v3479, 0.0
      %v3539 = vadd.f32 %v3537, %v3538
      %v3540 = vsel %vm684, %v3480, 0.0
      %v3541 = vadd.f32 %v3539, %v3540
      %v3542 = vsel %vm684, %v3481, 0.0
      %v3543 = vadd.f32 %v3541, %v3542
      %v3544 = vsel %vm684, %v3482, 0.0
      %v3545 = vadd.f32 %v3543, %v3544
      %v3546 = vrot.slane %v3545, 4
      %v3547 = vadd.f32 %v3545, %v3546
      %v3548 = vrot.slane %v3547, 2
      %v3549 = vadd.f32 %v3547, %v3548
      %v3550 = vrot.slane %v3549, 1
      %v3551 = vadd.f32 %v3549, %v3550
      %v3552 = vmul.f32 %v3551, 0.00390625
      %v3553 = vsub.f32 %v3451, %v3552
      %v3554 = vsub.f32 %v3452, %v3552
      %v3555 = vsub.f32 %v3453, %v3552
      %v3556 = vsub.f32 %v3454, %v3552
      %v3557 = vsub.f32 %v3455, %v3552
      %v3558 = vsub.f32 %v3456, %v3552
      %v3559 = vsub.f32 %v3457, %v3552
      %v3560 = vsub.f32 %v3458, %v3552
      %v3561 = vsub.f32 %v3459, %v3552
      %v3562 = vsub.f32 %v3460, %v3552
      %v3563 = vsub.f32 %v3461, %v3552
      %v3564 = vsub.f32 %v3462, %v3552
      %v3565 = vsub.f32 %v3463, %v3552
      %v3566 = vsub.f32 %v3464, %v3552
      %v3567 = vsub.f32 %v3465, %v3552
      %v3568 = vsub.f32 %v3466, %v3552
      %v3569 = vsub.f32 %v3467, %v3552
      %v3570 = vsub.f32 %v3468, %v3552
      %v3571 = vsub.f32 %v3469, %v3552
      %v3572 = vsub.f32 %v3470, %v3552
      %v3573 = vsub.f32 %v3471, %v3552
      %v3574 = vsub.f32 %v3472, %v3552
      %v3575 = vsub.f32 %v3473, %v3552
      %v3576 = vsub.f32 %v3474, %v3552
      %v3577 = vsub.f32 %v3475, %v3552
      %v3578 = vsub.f32 %v3476, %v3552
      %v3579 = vsub.f32 %v3477, %v3552
      %v3580 = vsub.f32 %v3478, %v3552
      %v3581 = vsub.f32 %v3479, %v3552
      %v3582 = vsub.f32 %v3480, %v3552
      %v3583 = vsub.f32 %v3481, %v3552
      %v3584 = vsub.f32 %v3482, %v3552
      %v3585 = vmul.f32 %v3553, %v3553
      %v3586 = vmul.f32 %v3554, %v3554
      %v3587 = vmul.f32 %v3555, %v3555
      %v3588 = vmul.f32 %v3556, %v3556
      %v3589 = vmul.f32 %v3557, %v3557
      %v3590 = vmul.f32 %v3558, %v3558
      %v3591 = vmul.f32 %v3559, %v3559
      %v3592 = vmul.f32 %v3560, %v3560
      %v3593 = vmul.f32 %v3561, %v3561
      %v3594 = vmul.f32 %v3562, %v3562
      %v3595 = vmul.f32 %v3563, %v3563
      %v3596 = vmul.f32 %v3564, %v3564
      %v3597 = vmul.f32 %v3565, %v3565
      %v3598 = vmul.f32 %v3566, %v3566
      %v3599 = vmul.f32 %v3567, %v3567
      %v3600 = vmul.f32 %v3568, %v3568
      %v3601 = vmul.f32 %v3569, %v3569
      %v3602 = vmul.f32 %v3570, %v3570
      %v3603 = vmul.f32 %v3571, %v3571
      %v3604 = vmul.f32 %v3572, %v3572
      %v3605 = vmul.f32 %v3573, %v3573
      %v3606 = vmul.f32 %v3574, %v3574
      %v3607 = vmul.f32 %v3575, %v3575
      %v3608 = vmul.f32 %v3576, %v3576
      %v3609 = vmul.f32 %v3577, %v3577
      %v3610 = vmul.f32 %v3578, %v3578
      %v3611 = vmul.f32 %v3579, %v3579
      %v3612 = vmul.f32 %v3580, %v3580
      %v3613 = vmul.f32 %v3581, %v3581
      %v3614 = vmul.f32 %v3582, %v3582
      %v3615 = vmul.f32 %v3583, %v3583
      %v3616 = vmul.f32 %v3584, %v3584
      %v3617 = vsel %vm684, %v3585, 0.0
      %v3618 = vsel %vm684, %v3586, 0.0
      %v3619 = vadd.f32 %v3617, %v3618
      %v3620 = vsel %vm684, %v3587, 0.0
      %v3621 = vadd.f32 %v3619, %v3620
      %v3622 = vsel %vm684, %v3588, 0.0
      %v3623 = vadd.f32 %v3621, %v3622
      %v3624 = vsel %vm684, %v3589, 0.0
      %v3625 = vadd.f32 %v3623, %v3624
      %v3626 = vsel %vm684, %v3590, 0.0
      %v3627 = vadd.f32 %v3625, %v3626
      %v3628 = vsel %vm684, %v3591, 0.0
      %v3629 = vadd.f32 %v3627, %v3628
      %v3630 = vsel %vm684, %v3592, 0.0
      %v3631 = vadd.f32 %v3629, %v3630
      %v3632 = vsel %vm684, %v3593, 0.0
      %v3633 = vadd.f32 %v3631, %v3632
      %v3634 = vsel %vm684, %v3594, 0.0
      %v3635 = vadd.f32 %v3633, %v3634
      %v3636 = vsel %vm684, %v3595, 0.0
      %v3637 = vadd.f32 %v3635, %v3636
      %v3638 = vsel %vm684, %v3596, 0.0
      %v3639 = vadd.f32 %v3637, %v3638
      %v3640 = vsel %vm684, %v3597, 0.0
      %v3641 = vadd.f32 %v3639, %v3640
      %v3642 = vsel %vm684, %v3598, 0.0
      %v3643 = vadd.f32 %v3641, %v3642
      %v3644 = vsel %vm684, %v3599, 0.0
      %v3645 = vadd.f32 %v3643, %v3644
      %v3646 = vsel %vm684, %v3600, 0.0
      %v3647 = vadd.f32 %v3645, %v3646
      %v3648 = vsel %vm684, %v3601, 0.0
      %v3649 = vadd.f32 %v3647, %v3648
      %v3650 = vsel %vm684, %v3602, 0.0
      %v3651 = vadd.f32 %v3649, %v3650
      %v3652 = vsel %vm684, %v3603, 0.0
      %v3653 = vadd.f32 %v3651, %v3652
      %v3654 = vsel %vm684, %v3604, 0.0
      %v3655 = vadd.f32 %v3653, %v3654
      %v3656 = vsel %vm684, %v3605, 0.0
      %v3657 = vadd.f32 %v3655, %v3656
      %v3658 = vsel %vm684, %v3606, 0.0
      %v3659 = vadd.f32 %v3657, %v3658
      %v3660 = vsel %vm684, %v3607, 0.0
      %v3661 = vadd.f32 %v3659, %v3660
      %v3662 = vsel %vm684, %v3608, 0.0
      %v3663 = vadd.f32 %v3661, %v3662
      %v3664 = vsel %vm684, %v3609, 0.0
      %v3665 = vadd.f32 %v3663, %v3664
      %v3666 = vsel %vm684, %v3610, 0.0
      %v3667 = vadd.f32 %v3665, %v3666
      %v3668 = vsel %vm684, %v3611, 0.0
      %v3669 = vadd.f32 %v3667, %v3668
      %v3670 = vsel %vm684, %v3612, 0.0
      %v3671 = vadd.f32 %v3669, %v3670
      %v3672 = vsel %vm684, %v3613, 0.0
      %v3673 = vadd.f32 %v3671, %v3672
      %v3674 = vsel %vm684, %v3614, 0.0
      %v3675 = vadd.f32 %v3673, %v3674
      %v3676 = vsel %vm684, %v3615, 0.0
      %v3677 = vadd.f32 %v3675, %v3676
      %v3678 = vsel %vm684, %v3616, 0.0
      %v3679 = vadd.f32 %v3677, %v3678
      %v3680 = vrot.slane %v3679, 4
      %v3681 = vadd.f32 %v3679, %v3680
      %v3682 = vrot.slane %v3681, 2
      %v3683 = vadd.f32 %v3681, %v3682
      %v3684 = vrot.slane %v3683, 1
      %v3685 = vadd.f32 %v3683, %v3684
      %v3686 = vmul.f32 %v3685, 0.00390625
      %v3687 = vadd.f32 %v3686, 1e-05
      %v3688 = vrsqrt.pop %v3687
      %v3689 = vmul.f32 %v3688, %v3687
      %v3690 = vmul.f32 %v3689, %v3688
      %v3691 = vmul.f32 0.5, %v3690
      %v3692 = vsub.f32 1.5, %v3691
      %v3693 = vmul.f32 %v3688, %v3692
      %vm3694 = vweird.f32 %v3687
      %vm3695 = vweird.f32 %v3688
      %vm3696 = vmor %vm3694, %vm3695
      %v3697 = vsel %vm3696, %v3688, %v3693
      %v3698 = vmul.f32 %v3553, %v3697
      %v3699 = vmul.f32 %v3554, %v3697
      %v3700 = vmul.f32 %v3555, %v3697
      %v3701 = vmul.f32 %v3556, %v3697
      %v3702 = vmul.f32 %v3557, %v3697
      %v3703 = vmul.f32 %v3558, %v3697
      %v3704 = vmul.f32 %v3559, %v3697
      %v3705 = vmul.f32 %v3560, %v3697
      %v3706 = vmul.f32 %v3561, %v3697
      %v3707 = vmul.f32 %v3562, %v3697
      %v3708 = vmul.f32 %v3563, %v3697
      %v3709 = vmul.f32 %v3564, %v3697
      %v3710 = vmul.f32 %v3565, %v3697
      %v3711 = vmul.f32 %v3566, %v3697
      %v3712 = vmul.f32 %v3567, %v3697
      %v3713 = vmul.f32 %v3568, %v3697
      %v3714 = vmul.f32 %v3569, %v3697
      %v3715 = vmul.f32 %v3570, %v3697
      %v3716 = vmul.f32 %v3571, %v3697
      %v3717 = vmul.f32 %v3572, %v3697
      %v3718 = vmul.f32 %v3573, %v3697
      %v3719 = vmul.f32 %v3574, %v3697
      %v3720 = vmul.f32 %v3575, %v3697
      %v3721 = vmul.f32 %v3576, %v3697
      %v3722 = vmul.f32 %v3577, %v3697
      %v3723 = vmul.f32 %v3578, %v3697
      %v3724 = vmul.f32 %v3579, %v3697
      %v3725 = vmul.f32 %v3580, %v3697
      %v3726 = vmul.f32 %v3581, %v3697
      %v3727 = vmul.f32 %v3582, %v3697
      %v3728 = vmul.f32 %v3583, %v3697
      %v3729 = vmul.f32 %v3584, %v3697
      %v3730 = vmax.f32 %v3698, 0.0
      %v3731 = vmax.f32 %v3699, 0.0
      %v3732 = vmax.f32 %v3700, 0.0
      %v3733 = vmax.f32 %v3701, 0.0
      %v3734 = vmax.f32 %v3702, 0.0
      %v3735 = vmax.f32 %v3703, 0.0
      %v3736 = vmax.f32 %v3704, 0.0
      %v3737 = vmax.f32 %v3705, 0.0
      %v3738 = vmax.f32 %v3706, 0.0
      %v3739 = vmax.f32 %v3707, 0.0
      %v3740 = vmax.f32 %v3708, 0.0
      %v3741 = vmax.f32 %v3709, 0.0
      %v3742 = vmax.f32 %v3710, 0.0
      %v3743 = vmax.f32 %v3711, 0.0
      %v3744 = vmax.f32 %v3712, 0.0
      %v3745 = vmax.f32 %v3713, 0.0
      %v3746 = vmax.f32 %v3714, 0.0
      %v3747 = vmax.f32 %v3715, 0.0
      %v3748 = vmax.f32 %v3716, 0.0
      %v3749 = vmax.f32 %v3717, 0.0
      %v3750 = vmax.f32 %v3718, 0.0
      %v3751 = vmax.f32 %v3719, 0.0
      %v3752 = vmax.f32 %v3720, 0.0
      %v3753 = vmax.f32 %v3721, 0.0
      %v3754 = vmax.f32 %v3722, 0.0
      %v3755 = vmax.f32 %v3723, 0.0
      %v3756 = vmax.f32 %v3724, 0.0
      %v3757 = vmax.f32 %v3725, 0.0
      %v3758 = vmax.f32 %v3726, 0.0
      %v3759 = vmax.f32 %v3727, 0.0
      %v3760 = vmax.f32 %v3728, 0.0
      %v3761 = vmax.f32 %v3729, 0.0
      %3762 = vst.msk [vmem:[#allocation2] sm:$0xff] %vm684, %v3730
      %3763 = vst.msk [vmem:[#allocation2 + $0x8] sm:$0xff] %vm684, %v3731
      %3764 = vst.msk [vmem:[#allocation2 + $0x10] sm:$0xff] %vm684, %v3730
      %3765 = vst.msk [vmem:[#allocation2 + $0x18] sm:$0xff] %vm684, %v3731
      %3766 = vst.msk [vmem:[#allocation2 + $0x20] sm:$0xff] %vm684, %v3730
      %3767 = vst.msk [vmem:[#allocation2 + $0x28] sm:$0xff] %vm684, %v3731
      %3768 = vst.msk [vmem:[#allocation2 + $0x30] sm:$0xff] %vm684, %v3732
      %3769 = vst.msk [vmem:[#allocation2 + $0x38] sm:$0xff] %vm684, %v3733
      %3770 = vst.msk [vmem:[#allocation2 + $0x40] sm:$0xff] %vm684, %v3734
      %3771 = vst.msk [vmem:[#allocation2 + $0x48] sm:$0xff] %vm684, %v3735
      %3772 = vst.msk [vmem:[#allocation2 + $0x50] sm:$0xff] %vm684, %v3736
      %3773 = vst.msk [vmem:[#allocation2 + $0x58] sm:$0xff] %vm684, %v3737
      %3774 = vst.msk [vmem:[#allocation2 + $0x60] sm:$0xff] %vm684, %v3738
      %3775 = vst.msk [vmem:[#allocation2 + $0x68] sm:$0xff] %vm684, %v3739
      %3776 = vst.msk [vmem:[#allocation2 + $0x70] sm:$0xff] %vm684, %v3740
      %3777 = vst.msk [vmem:[#allocation2 + $0x78] sm:$0xff] %vm684, %v3741
      %3778 = vst.msk [vmem:[#allocation2 + $0x80] sm:$0xff] %vm684, %v3742
      %3779 = vst.msk [vmem:[#allocation2 + $0x88] sm:$0xff] %vm684, %v3743
      %3780 = vst.msk [vmem:[#allocation2 + $0x90] sm:$0xff] %vm684, %v3744
      %3781 = vst.msk [vmem:[#allocation2 + $0x98] sm:$0xff] %vm684, %v3745
      %3782 = vst.msk [vmem:[#allocation2 + $0xa0] sm:$0xff] %vm684, %v3746
      %3783 = vst.msk [vmem:[#allocation2 + $0xa8] sm:$0xff] %vm684, %v3747
      %3784 = vst.msk [vmem:[#allocation2 + $0xb0] sm:$0xff] %vm684, %v3748
      %3785 = vst.msk [vmem:[#allocation2 + $0xb8] sm:$0xff] %vm684, %v3749
      %3786 = vst.msk [vmem:[#allocation2 + $0xc0] sm:$0xff] %vm684, %v3750
      %3787 = vst.msk [vmem:[#allocation2 + $0xc8] sm:$0xff] %vm684, %v3751
      %3788 = vst.msk [vmem:[#allocation2 + $0xd0] sm:$0xff] %vm684, %v3752
      %3789 = vst.msk [vmem:[#allocation2 + $0xd8] sm:$0xff] %vm684, %v3753
      %3790 = vst.msk [vmem:[#allocation2 + $0xe0] sm:$0xff] %vm684, %v3754
      %3791 = vst.msk [vmem:[#allocation2 + $0xe8] sm:$0xff] %vm684, %v3755
      %3792 = vst.msk [vmem:[#allocation2 + $0xf0] sm:$0xff] %vm684, %v3756
      %3793 = vst.msk [vmem:[#allocation2 + $0xf8] sm:$0xff] %vm684, %v3757
      %3794 = vst.msk [vmem:[#allocation2 + $0x100] sm:$0xff] %vm684, %v3758
      %3795 = vst.msk [vmem:[#allocation2 + $0x108] sm:$0xff] %vm684, %v3759
      %3796 = vst.msk [vmem:[#allocation2 + $0x110] sm:$0xff] %vm684, %v3760
      %3797 = vst.msk [vmem:[#allocation2 + $0x118] sm:$0xff] %vm684, %v3761
      %3798 = vst.msk [vmem:[#allocation2 + $0x120] sm:$0xff] %vm684, %v3760
      %3799 = vst.msk [vmem:[#allocation2 + $0x128] sm:$0xff] %vm684, %v3761
      %3800 = vst.msk [vmem:[#allocation2 + $0x130] sm:$0xff] %vm684, %v3760
      %3801 = vst.msk [vmem:[#allocation2 + $0x138] sm:$0xff] %vm684, %v3761
      %v3802 = vld [vmem:[#allocation2 + $0x10] sm:$0xff]
      %v3803 = vld [vmem:[#allocation2 + $0x18] sm:$0xff]
      %v3804 = vld [vmem:[#allocation2 + $0x20] sm:$0xff]
      %v3805 = vld [vmem:[#allocation2 + $0x28] sm:$0xff]
      %v3806 = vld [vmem:[#allocation2 + $0x30] sm:$0xff]
      %v3807 = vld [vmem:[#allocation2 + $0x38] sm:$0xff]
      %v3808 = vld [vmem:[#allocation2 + $0x40] sm:$0xff]
      %v3809 = vld [vmem:[#allocation2 + $0x48] sm:$0xff]
      %v3810 = vld [vmem:[#allocation2 + $0x50] sm:$0xff]
      %v3811 = vld [vmem:[#allocation2 + $0x58] sm:$0xff]
      %v3812 = vld [vmem:[#allocation2 + $0x60] sm:$0xff]
      %v3813 = vld [vmem:[#allocation2 + $0x68] sm:$0xff]
      %v3814 = vld [vmem:[#allocation2 + $0x70] sm:$0xff]
      %v3815 = vld [vmem:[#allocation2 + $0x78] sm:$0xff]
      %v3816 = vld [vmem:[#allocation2 + $0x80] sm:$0xff]
      %v3817 = vld [vmem:[#allocation2 + $0x88] sm:$0xff]
      %v3818 = vld [vmem:[#allocation2 + $0x90] sm:$0xff]
      %v3819 = vld [vmem:[#allocation2 + $0x98] sm:$0xff]
      %v3820 = vld [vmem:[#allocation2 + $0xa0] sm:$0xff]
      %v3821 = vld [vmem:[#allocation2 + $0xa8] sm:$0xff]
      %v3822 = vld [vmem:[#allocation2 + $0xb0] sm:$0xff]
      %v3823 = vld [vmem:[#allocation2 + $0xb8] sm:$0xff]
      %v3824 = vld [vmem:[#allocation2 + $0xc0] sm:$0xff]
      %v3825 = vld [vmem:[#allocation2 + $0xc8] sm:$0xff]
      %v3826 = vld [vmem:[#allocation2 + $0xd0] sm:$0xff]
      %v3827 = vld [vmem:[#allocation2 + $0xd8] sm:$0xff]
      %v3828 = vld [vmem:[#allocation2 + $0xe0] sm:$0xff]
      %v3829 = vld [vmem:[#allocation2 + $0xe8] sm:$0xff]
      %v3830 = vld [vmem:[#allocation2 + $0xf0] sm:$0xff]
      %v3831 = vld [vmem:[#allocation2 + $0xf8] sm:$0xff]
      %v3832 = vld [vmem:[#allocation2 + $0x100] sm:$0xff]
      %v3833 = vld [vmem:[#allocation2 + $0x108] sm:$0xff]
      %v3834 = vld [vmem:[#allocation2 + $0xf] sm:$0xff]
      %v3835 = vld [vmem:[#allocation2 + $0x17] sm:$0xff]
      %v3836 = vld [vmem:[#allocation2 + $0x1f] sm:$0xff]
      %v3837 = vld [vmem:[#allocation2 + $0x27] sm:$0xff]
      %v3838 = vld [vmem:[#allocation2 + $0x2f] sm:$0xff]
      %v3839 = vld [vmem:[#allocation2 + $0x37] sm:$0xff]
      %v3840 = vld [vmem:[#allocation2 + $0x3f] sm:$0xff]
      %v3841 = vld [vmem:[#allocation2 + $0x47] sm:$0xff]
      %v3842 = vld [vmem:[#allocation2 + $0x4f] sm:$0xff]
      %v3843 = vld [vmem:[#allocation2 + $0x57] sm:$0xff]
      %v3844 = vld [vmem:[#allocation2 + $0x5f] sm:$0xff]
      %v3845 = vld [vmem:[#allocation2 + $0x67] sm:$0xff]
      %v3846 = vld [vmem:[#allocation2 + $0x6f] sm:$0xff]
      %v3847 = vld [vmem:[#allocation2 + $0x77] sm:$0xff]
      %v3848 = vld [vmem:[#allocation2 + $0x7f] sm:$0xff]
      %v3849 = vld [vmem:[#allocation2 + $0x87] sm:$0xff]
      %v3850 = vld [vmem:[#allocation2 + $0x8f] sm:$0xff]
      %v3851 = vld [vmem:[#allocation2 + $0x97] sm:$0xff]
      %v3852 = vld [vmem:[#allocation2 + $0x9f] sm:$0xff]
      %v3853 = vld [vmem:[#allocation2 + $0xa7] sm:$0xff]
      %v3854 = vld [vmem:[#allocation2 + $0xaf] sm:$0xff]
      %v3855 = vld [vmem:[#allocation2 + $0xb7] sm:$0xff]
      %v3856 = vld [vmem:[#allocation2 + $0xbf] sm:$0xff]
      %v3857 = vld [vmem:[#allocation2 + $0xc7] sm:$0xff]
      %v3858 = vld [vmem:[#allocation2 + $0xcf] sm:$0xff]
      %v3859 = vld [vmem:[#allocation2 + $0xd7] sm:$0xff]
      %v3860 = vld [vmem:[#allocation2 + $0xdf] sm:$0xff]
      %v3861 = vld [vmem:[#allocation2 + $0xe7] sm:$0xff]
      %v3862 = vld [vmem:[#allocation2 + $0xef] sm:$0xff]
      %v3863 = vld [vmem:[#allocation2 + $0xf7] sm:$0xff]
      %v3864 = vld [vmem:[#allocation2 + $0xff] sm:$0xff]
      %v3865 = vld [vmem:[#allocation2 + $0x107] sm:$0xff]
      %v3866 = vld [vmem:[#allocation2 + $0x11] sm:$0xff]
      %v3867 = vld [vmem:[#allocation2 + $0x19] sm:$0xff]
      %v3868 = vld [vmem:[#allocation2 + $0x21] sm:$0xff]
      %v3869 = vld [vmem:[#allocation2 + $0x29] sm:$0xff]
      %v3870 = vld [vmem:[#allocation2 + $0x31] sm:$0xff]
      %v3871 = vld [vmem:[#allocation2 + $0x39] sm:$0xff]
      %v3872 = vld [vmem:[#allocation2 + $0x41] sm:$0xff]
      %v3873 = vld [vmem:[#allocation2 + $0x49] sm:$0xff]
      %v3874 = vld [vmem:[#allocation2 + $0x51] sm:$0xff]
      %v3875 = vld [vmem:[#allocation2 + $0x59] sm:$0xff]
      %v3876 = vld [vmem:[#allocation2 + $0x61] sm:$0xff]
      %v3877 = vld [vmem:[#allocation2 + $0x69] sm:$0xff]
      %v3878 = vld [vmem:[#allocation2 + $0x71] sm:$0xff]
      %v3879 = vld [vmem:[#allocation2 + $0x79] sm:$0xff]
      %v3880 = vld [vmem:[#allocation2 + $0x81] sm:$0xff]
      %v3881 = vld [vmem:[#allocation2 + $0x89] sm:$0xff]
      %v3882 = vld [vmem:[#allocation2 + $0x91] sm:$0xff]
      %v3883 = vld [vmem:[#allocation2 + $0x99] sm:$0xff]
      %v3884 = vld [vmem:[#allocation2 + $0xa1] sm:$0xff]
      %v3885 = vld [vmem:[#allocation2 + $0xa9] sm:$0xff]
      %v3886 = vld [vmem:[#allocation2 + $0xb1] sm:$0xff]
      %v3887 = vld [vmem:[#allocation2 + $0xb9] sm:$0xff]
      %v3888 = vld [vmem:[#allocation2 + $0xc1] sm:$0xff]
      %v3889 = vld [vmem:[#allocation2 + $0xc9] sm:$0xff]
      %v3890 = vld [vmem:[#allocation2 + $0xd1] sm:$0xff]
      %v3891 = vld [vmem:[#allocation2 + $0xd9] sm:$0xff]
      %v3892 = vld [vmem:[#allocation2 + $0xe1] sm:$0xff]
      %v3893 = vld [vmem:[#allocation2 + $0xe9] sm:$0xff]
      %v3894 = vld [vmem:[#allocation2 + $0xf1] sm:$0xff]
      %v3895 = vld [vmem:[#allocation2 + $0xf9] sm:$0xff]
      %v3896 = vld [vmem:[#allocation2 + $0x101] sm:$0xff]
      %v3897 = vld [vmem:[#allocation2 + $0x109] sm:$0xff]
      %v3898 = vsel %vm853, %v3802, %v3834
      %v3899 = vsel %vm854, %v3803, %v3835
      %v3900 = vsel %vm855, %v3804, %v3836
      %v3901 = vsel %vm856, %v3805, %v3837
      %v3902 = vsel %vm857, %v3806, %v3838
      %v3903 = vsel %vm858, %v3807, %v3839
      %v3904 = vsel %vm859, %v3808, %v3840
      %v3905 = vsel %vm860, %v3809, %v3841
      %v3906 = vsel %vm861, %v3810, %v3842
      %v3907 = vsel %vm862, %v3811, %v3843
      %v3908 = vsel %vm863, %v3812, %v3844
      %v3909 = vsel %vm864, %v3813, %v3845
      %v3910 = vsel %vm865, %v3814, %v3846
      %v3911 = vsel %vm866, %v3815, %v3847
      %v3912 = vsel %vm867, %v3816, %v3848
      %v3913 = vsel %vm868, %v3817, %v3849
      %v3914 = vsel %vm869, %v3818, %v3850
      %v3915 = vsel %vm870, %v3819, %v3851
      %v3916 = vsel %vm871, %v3820, %v3852
      %v3917 = vsel %vm872, %v3821, %v3853
      %v3918 = vsel %vm873, %v3822, %v3854
      %v3919 = vsel %vm874, %v3823, %v3855
      %v3920 = vsel %vm875, %v3824, %v3856
      %v3921 = vsel %vm876, %v3825, %v3857
      %v3922 = vsel %vm877, %v3826, %v3858
      %v3923 = vsel %vm878, %v3827, %v3859
      %v3924 = vsel %vm879, %v3828, %v3860
      %v3925 = vsel %vm880, %v3829, %v3861
      %v3926 = vsel %vm881, %v3830, %v3862
      %v3927 = vsel %vm882, %v3831, %v3863
      %v3928 = vsel %vm883, %v3832, %v3864
      %v3929 = vsel %vm884, %v3833, %v3865
      %v3930 = vsel %vm949, %v3802, %v3866
      %v3931 = vsel %vm950, %v3803, %v3867
      %v3932 = vsel %vm951, %v3804, %v3868
      %v3933 = vsel %vm952, %v3805, %v3869
      %v3934 = vsel %vm953, %v3806, %v3870
      %v3935 = vsel %vm954, %v3807, %v3871
      %v3936 = vsel %vm955, %v3808, %v3872
      %v3937 = vsel %vm956, %v3809, %v3873
      %v3938 = vsel %vm957, %v3810, %v3874
      %v3939 = vsel %vm958, %v3811, %v3875
      %v3940 = vsel %vm959, %v3812, %v3876
      %v3941 = vsel %vm960, %v3813, %v3877
      %v3942 = vsel %vm961, %v3814, %v3878
      %v3943 = vsel %vm962, %v3815, %v3879
      %v3944 = vsel %vm963, %v3816, %v3880
      %v3945 = vsel %vm964, %v3817, %v3881
      %v3946 = vsel %vm965, %v3818, %v3882
      %v3947 = vsel %vm966, %v3819, %v3883
      %v3948 = vsel %vm967, %v3820, %v3884
      %v3949 = vsel %vm968, %v3821, %v3885
      %v3950 = vsel %vm969, %v3822, %v3886
      %v3951 = vsel %vm970, %v3823, %v3887
      %v3952 = vsel %vm971, %v3824, %v3888
      %v3953 = vsel %vm972, %v3825, %v3889
      %v3954 = vsel %vm973, %v3826, %v3890
      %v3955 = vsel %vm974, %v3827, %v3891
      %v3956 = vsel %vm975, %v3828, %v3892
      %v3957 = vsel %vm976, %v3829, %v3893
      %v3958 = vsel %vm977, %v3830, %v3894
      %v3959 = vsel %vm978, %v3831, %v3895
      %v3960 = vsel %vm979, %v3832, %v3896
      %v3961 = vsel %vm980, %v3833, %v3897
      %v3962 = vld [vmem:[%s2] sm:$0xf]
      %s3963 = scalar_lea.vmem %s2, 4
      %v3964 = vld [vmem:[%s3963] sm:$0xf]
      %v3966 = vsel %vm684, %v3802, 0
      %v3969 = vsel %vm684, %v3803, 0
      %v3972 = vsel %vm684, %v3804, 0
      %v3975 = vsel %vm684, %v3805, 0
      %v3978 = vsel %vm684, %v3806, 0
      %v3981 = vsel %vm684, %v3807, 0
      %v3984 = vsel %vm684, %v3808, 0
      %v3987 = vsel %vm684, %v3809, 0
      %v3990 = vsel %vm684, %v3810, 0
      %v3993 = vsel %vm684, %v3811, 0
      %v3996 = vsel %vm684, %v3812, 0
      %v3999 = vsel %vm684, %v3813, 0
      %v4002 = vsel %vm684, %v3814, 0
      %v4005 = vsel %vm684, %v3815, 0
      %v4008 = vsel %vm684, %v3816, 0
      %v4011 = vsel %vm684, %v3817, 0
      %v4014 = vsel %vm684, %v3818, 0
      %v4017 = vsel %vm684, %v3819, 0
      %v4020 = vsel %vm684, %v3820, 0
      %v4023 = vsel %vm684, %v3821, 0
      %v4026 = vsel %vm684, %v3822, 0
      %v4029 = vsel %vm684, %v3823, 0
      %v4032 = vsel %vm684, %v3824, 0
      %v4035 = vsel %vm684, %v3825, 0
      %v4038 = vsel %vm684, %v3826, 0
      %v4041 = vsel %vm684, %v3827, 0
      %v4044 = vsel %vm684, %v3828, 0
      %v4047 = vsel %vm684, %v3829, 0
      %v4050 = vsel %vm684, %v3830, 0
      %v4053 = vsel %vm684, %v3831, 0
      %v4056 = vsel %vm684, %v3832, 0
      %v4059 = vsel %vm684, %v3833, 0
      %v4062 = vsel %vm1112, %v3964, 0
      %4064 = vmatpush.msra.mxu0 0.0
      %4065 = vmatpush.msra.mxu0 0.0
      %4066 = vmatpush.msra.mxu0 0.0
      %4067 = vmatpush.msra.mxu0 0.0
      %4068 = vmatpush.msra.mxu0 0.0
      %4069 = vmatpush.msra.mxu0 0.0
      %4070 = vmatpush.msra.mxu0 0.0
      %4071 = vmatpush.msra.mxu0 0.0
      %4072 = vmatpush.msra.mxu0 0.0
      %4073 = vmatpush.msra.mxu0 0.0
      %4074 = vmatpush.msra.mxu0 0.0
      %4075 = vmatpush.msra.mxu0 0.0
      %4076 = vmatpush.msra.mxu0 0.0
      %4077 = vmatpush.msra.mxu0 0.0
      %4078 = vmatpush.msra.mxu0 0.0
      %4079 = vmatpush.msra.mxu0 %v4062
      %4080 = vmatmul.f32.gmra.mxu0 %v3966
      %v4081 = vpop.f32.mrf.mxu0
      %v4082 = vadd.f32 0.0, %v4081
      %4083 = vmatmul.f32.gmra.mxu0 %v3969
      %v4084 = vpop.f32.mrf.mxu0
      %v4085 = vadd.f32 0.0, %v4084
      %4086 = vmatmul.f32.gmra.mxu0 %v3972
      %v4087 = vpop.f32.mrf.mxu0
      %v4088 = vadd.f32 0.0, %v4087
      %4089 = vmatmul.f32.gmra.mxu0 %v3975
      %v4090 = vpop.f32.mrf.mxu0
      %v4091 = vadd.f32 0.0, %v4090
      %4092 = vmatmul.f32.gmra.mxu0 %v3978
      %v4093 = vpop.f32.mrf.mxu0
      %v4094 = vadd.f32 0.0, %v4093
      %4095 = vmatmul.f32.gmra.mxu0 %v3981
      %v4096 = vpop.f32.mrf.mxu0
      %v4097 = vadd.f32 0.0, %v4096
      %4098 = vmatmul.f32.gmra.mxu0 %v3984
      %v4099 = vpop.f32.mrf.mxu0
      %v4100 = vadd.f32 0.0, %v4099
      %4101 = vmatmul.f32.gmra.mxu0 %v3987
      %v4102 = vpop.f32.mrf.mxu0
      %v4103 = vadd.f32 0.0, %v4102
      %4104 = vmatmul.f32.gmra.mxu0 %v3990
      %v4105 = vpop.f32.mrf.mxu0
      %v4106 = vadd.f32 0.0, %v4105
      %4107 = vmatmul.f32.gmra.mxu0 %v3993
      %v4108 = vpop.f32.mrf.mxu0
      %v4109 = vadd.f32 0.0, %v4108
      %4110 = vmatmul.f32.gmra.mxu0 %v3996
      %v4111 = vpop.f32.mrf.mxu0
      %v4112 = vadd.f32 0.0, %v4111
      %4113 = vmatmul.f32.gmra.mxu0 %v3999
      %v4114 = vpop.f32.mrf.mxu0
      %v4115 = vadd.f32 0.0, %v4114
      %4116 = vmatmul.f32.gmra.mxu0 %v4002
      %v4117 = vpop.f32.mrf.mxu0
      %v4118 = vadd.f32 0.0, %v4117
      %4119 = vmatmul.f32.gmra.mxu0 %v4005
      %v4120 = vpop.f32.mrf.mxu0
      %v4121 = vadd.f32 0.0, %v4120
      %4122 = vmatmul.f32.gmra.mxu0 %v4008
      %v4123 = vpop.f32.mrf.mxu0
      %v4124 = vadd.f32 0.0, %v4123
      %4125 = vmatmul.f32.gmra.mxu0 %v4011
      %v4126 = vpop.f32.mrf.mxu0
      %v4127 = vadd.f32 0.0, %v4126
      %4128 = vmatmul.f32.gmra.mxu0 %v4014
      %v4129 = vpop.f32.mrf.mxu0
      %v4130 = vadd.f32 0.0, %v4129
      %4131 = vmatmul.f32.gmra.mxu0 %v4017
      %v4132 = vpop.f32.mrf.mxu0
      %v4133 = vadd.f32 0.0, %v4132
      %4134 = vmatmul.f32.gmra.mxu0 %v4020
      %v4135 = vpop.f32.mrf.mxu0
      %v4136 = vadd.f32 0.0, %v4135
      %4137 = vmatmul.f32.gmra.mxu0 %v4023
      %v4138 = vpop.f32.mrf.mxu0
      %v4139 = vadd.f32 0.0, %v4138
      %4140 = vmatmul.f32.gmra.mxu0 %v4026
      %v4141 = vpop.f32.mrf.mxu0
      %v4142 = vadd.f32 0.0, %v4141
      %4143 = vmatmul.f32.gmra.mxu0 %v4029
      %v4144 = vpop.f32.mrf.mxu0
      %v4145 = vadd.f32 0.0, %v4144
      %4146 = vmatmul.f32.gmra.mxu0 %v4032
      %v4147 = vpop.f32.mrf.mxu0
      %v4148 = vadd.f32 0.0, %v4147
      %4149 = vmatmul.f32.gmra.mxu0 %v4035
      %v4150 = vpop.f32.mrf.mxu0
      %v4151 = vadd.f32 0.0, %v4150
      %4152 = vmatmul.f32.gmra.mxu0 %v4038
      %v4153 = vpop.f32.mrf.mxu0
      %v4154 = vadd.f32 0.0, %v4153
      %4155 = vmatmul.f32.gmra.mxu0 %v4041
      %v4156 = vpop.f32.mrf.mxu0
      %v4157 = vadd.f32 0.0, %v4156
      %4158 = vmatmul.f32.gmra.mxu0 %v4044
      %v4159 = vpop.f32.mrf.mxu0
      %v4160 = vadd.f32 0.0, %v4159
      %4161 = vmatmul.f32.gmra.mxu0 %v4047
      %v4162 = vpop.f32.mrf.mxu0
      %v4163 = vadd.f32 0.0, %v4162
      %4164 = vmatmul.f32.gmra.mxu0 %v4050
      %v4165 = vpop.f32.mrf.mxu0
      %v4166 = vadd.f32 0.0, %v4165
      %4167 = vmatmul.f32.gmra.mxu0 %v4053
      %v4168 = vpop.f32.mrf.mxu0
      %v4169 = vadd.f32 0.0, %v4168
      %4170 = vmatmul.f32.gmra.mxu0 %v4056
      %v4171 = vpop.f32.mrf.mxu0
      %v4172 = vadd.f32 0.0, %v4171
      %4173 = vmatmul.f32.gmra.mxu0 %v4059
      %v4174 = vpop.f32.mrf.mxu0
      %v4175 = vadd.f32 0.0, %v4174
      %4176 = vdwg.mxu0
      %v4178 = vsel %vm684, %v3898, 0
      %v4181 = vsel %vm684, %v3899, 0
      %v4184 = vsel %vm684, %v3900, 0
      %v4187 = vsel %vm684, %v3901, 0
      %v4190 = vsel %vm684, %v3902, 0
      %v4193 = vsel %vm684, %v3903, 0
      %v4196 = vsel %vm684, %v3904, 0
      %v4199 = vsel %vm684, %v3905, 0
      %v4202 = vsel %vm684, %v3906, 0
      %v4205 = vsel %vm684, %v3907, 0
      %v4208 = vsel %vm684, %v3908, 0
      %v4211 = vsel %vm684, %v3909, 0
      %v4214 = vsel %vm684, %v3910, 0
      %v4217 = vsel %vm684, %v3911, 0
      %v4220 = vsel %vm684, %v3912, 0
      %v4223 = vsel %vm684, %v3913, 0
      %v4226 = vsel %vm684, %v3914, 0
      %v4229 = vsel %vm684, %v3915, 0
      %v4232 = vsel %vm684, %v3916, 0
      %v4235 = vsel %vm684, %v3917, 0
      %v4238 = vsel %vm684, %v3918, 0
      %v4241 = vsel %vm684, %v3919, 0
      %v4244 = vsel %vm684, %v3920, 0
      %v4247 = vsel %vm684, %v3921, 0
      %v4250 = vsel %vm684, %v3922, 0
      %v4253 = vsel %vm684, %v3923, 0
      %v4256 = vsel %vm684, %v3924, 0
      %v4259 = vsel %vm684, %v3925, 0
      %v4262 = vsel %vm684, %v3926, 0
      %v4265 = vsel %vm684, %v3927, 0
      %v4268 = vsel %vm684, %v3928, 0
      %v4271 = vsel %vm684, %v3929, 0
      %v4274 = vsel %vm1112, %v3962, 0
      %4276 = vmatpush.msra.mxu0 0.0
      %4277 = vmatpush.msra.mxu0 0.0
      %4278 = vmatpush.msra.mxu0 0.0
      %4279 = vmatpush.msra.mxu0 0.0
      %4280 = vmatpush.msra.mxu0 0.0
      %4281 = vmatpush.msra.mxu0 0.0
      %4282 = vmatpush.msra.mxu0 0.0
      %4283 = vmatpush.msra.mxu0 0.0
      %4284 = vmatpush.msra.mxu0 0.0
      %4285 = vmatpush.msra.mxu0 0.0
      %4286 = vmatpush.msra.mxu0 0.0
      %4287 = vmatpush.msra.mxu0 0.0
      %4288 = vmatpush.msra.mxu0 0.0
      %4289 = vmatpush.msra.mxu0 0.0
      %4290 = vmatpush.msra.mxu0 0.0
      %4291 = vmatpush.msra.mxu0 %v4274
      %4292 = vmatmul.f32.gmra.mxu0 %v4178
      %v4293 = vpop.f32.mrf.mxu0
      %v4294 = vadd.f32 %v4082, %v4293
      %4295 = vmatmul.f32.gmra.mxu0 %v4181
      %v4296 = vpop.f32.mrf.mxu0
      %v4297 = vadd.f32 %v4085, %v4296
      %4298 = vmatmul.f32.gmra.mxu0 %v4184
      %v4299 = vpop.f32.mrf.mxu0
      %v4300 = vadd.f32 %v4088, %v4299
      %4301 = vmatmul.f32.gmra.mxu0 %v4187
      %v4302 = vpop.f32.mrf.mxu0
      %v4303 = vadd.f32 %v4091, %v4302
      %4304 = vmatmul.f32.gmra.mxu0 %v4190
      %v4305 = vpop.f32.mrf.mxu0
      %v4306 = vadd.f32 %v4094, %v4305
      %4307 = vmatmul.f32.gmra.mxu0 %v4193
      %v4308 = vpop.f32.mrf.mxu0
      %v4309 = vadd.f32 %v4097, %v4308
      %4310 = vmatmul.f32.gmra.mxu0 %v4196
      %v4311 = vpop.f32.mrf.mxu0
      %v4312 = vadd.f32 %v4100, %v4311
      %4313 = vmatmul.f32.gmra.mxu0 %v4199
      %v4314 = vpop.f32.mrf.mxu0
      %v4315 = vadd.f32 %v4103, %v4314
      %4316 = vmatmul.f32.gmra.mxu0 %v4202
      %v4317 = vpop.f32.mrf.mxu0
      %v4318 = vadd.f32 %v4106, %v4317
      %4319 = vmatmul.f32.gmra.mxu0 %v4205
      %v4320 = vpop.f32.mrf.mxu0
      %v4321 = vadd.f32 %v4109, %v4320
      %4322 = vmatmul.f32.gmra.mxu0 %v4208
      %v4323 = vpop.f32.mrf.mxu0
      %v4324 = vadd.f32 %v4112, %v4323
      %4325 = vmatmul.f32.gmra.mxu0 %v4211
      %v4326 = vpop.f32.mrf.mxu0
      %v4327 = vadd.f32 %v4115, %v4326
      %4328 = vmatmul.f32.gmra.mxu0 %v4214
      %v4329 = vpop.f32.mrf.mxu0
      %v4330 = vadd.f32 %v4118, %v4329
      %4331 = vmatmul.f32.gmra.mxu0 %v4217
      %v4332 = vpop.f32.mrf.mxu0
      %v4333 = vadd.f32 %v4121, %v4332
      %4334 = vmatmul.f32.gmra.mxu0 %v4220
      %v4335 = vpop.f32.mrf.mxu0
      %v4336 = vadd.f32 %v4124, %v4335
      %4337 = vmatmul.f32.gmra.mxu0 %v4223
      %v4338 = vpop.f32.mrf.mxu0
      %v4339 = vadd.f32 %v4127, %v4338
      %4340 = vmatmul.f32.gmra.mxu0 %v4226
      %v4341 = vpop.f32.mrf.mxu0
      %v4342 = vadd.f32 %v4130, %v4341
      %4343 = vmatmul.f32.gmra.mxu0 %v4229
      %v4344 = vpop.f32.mrf.mxu0
      %v4345 = vadd.f32 %v4133, %v4344
      %4346 = vmatmul.f32.gmra.mxu0 %v4232
      %v4347 = vpop.f32.mrf.mxu0
      %v4348 = vadd.f32 %v4136, %v4347
      %4349 = vmatmul.f32.gmra.mxu0 %v4235
      %v4350 = vpop.f32.mrf.mxu0
      %v4351 = vadd.f32 %v4139, %v4350
      %4352 = vmatmul.f32.gmra.mxu0 %v4238
      %v4353 = vpop.f32.mrf.mxu0
      %v4354 = vadd.f32 %v4142, %v4353
      %4355 = vmatmul.f32.gmra.mxu0 %v4241
      %v4356 = vpop.f32.mrf.mxu0
      %v4357 = vadd.f32 %v4145, %v4356
      %4358 = vmatmul.f32.gmra.mxu0 %v4244
      %v4359 = vpop.f32.mrf.mxu0
      %v4360 = vadd.f32 %v4148, %v4359
      %4361 = vmatmul.f32.gmra.mxu0 %v4247
      %v4362 = vpop.f32.mrf.mxu0
      %v4363 = vadd.f32 %v4151, %v4362
      %4364 = vmatmul.f32.gmra.mxu0 %v4250
      %v4365 = vpop.f32.mrf.mxu0
      %v4366 = vadd.f32 %v4154, %v4365
      %4367 = vmatmul.f32.gmra.mxu0 %v4253
      %v4368 = vpop.f32.mrf.mxu0
      %v4369 = vadd.f32 %v4157, %v4368
      %4370 = vmatmul.f32.gmra.mxu0 %v4256
      %v4371 = vpop.f32.mrf.mxu0
      %v4372 = vadd.f32 %v4160, %v4371
      %4373 = vmatmul.f32.gmra.mxu0 %v4259
      %v4374 = vpop.f32.mrf.mxu0
      %v4375 = vadd.f32 %v4163, %v4374
      %4376 = vmatmul.f32.gmra.mxu0 %v4262
      %v4377 = vpop.f32.mrf.mxu0
      %v4378 = vadd.f32 %v4166, %v4377
      %4379 = vmatmul.f32.gmra.mxu0 %v4265
      %v4380 = vpop.f32.mrf.mxu0
      %v4381 = vadd.f32 %v4169, %v4380
      %4382 = vmatmul.f32.gmra.mxu0 %v4268
      %v4383 = vpop.f32.mrf.mxu0
      %v4384 = vadd.f32 %v4172, %v4383
      %4385 = vmatmul.f32.gmra.mxu0 %v4271
      %v4386 = vpop.f32.mrf.mxu0
      %v4387 = vadd.f32 %v4175, %v4386
      %4388 = vdwg.mxu0
      %s4389 = scalar_lea.vmem %s2, 8
      %v4390 = vld [vmem:[%s4389] sm:$0xf]
      %v4392 = vsel %vm684, %v3930, 0
      %v4395 = vsel %vm684, %v3931, 0
      %v4398 = vsel %vm684, %v3932, 0
      %v4401 = vsel %vm684, %v3933, 0
      %v4404 = vsel %vm684, %v3934, 0
      %v4407 = vsel %vm684, %v3935, 0
      %v4410 = vsel %vm684, %v3936, 0
      %v4413 = vsel %vm684, %v3937, 0
      %v4416 = vsel %vm684, %v3938, 0
      %v4419 = vsel %vm684, %v3939, 0
      %v4422 = vsel %vm684, %v3940, 0
      %v4425 = vsel %vm684, %v3941, 0
      %v4428 = vsel %vm684, %v3942, 0
      %v4431 = vsel %vm684, %v3943, 0
      %v4434 = vsel %vm684, %v3944, 0
      %v4437 = vsel %vm684, %v3945, 0
      %v4440 = vsel %vm684, %v3946, 0
      %v4443 = vsel %vm684, %v3947, 0
      %v4446 = vsel %vm684, %v3948, 0
      %v4449 = vsel %vm684, %v3949, 0
      %v4452 = vsel %vm684, %v3950, 0
      %v4455 = vsel %vm684, %v3951, 0
      %v4458 = vsel %vm684, %v3952, 0
      %v4461 = vsel %vm684, %v3953, 0
      %v4464 = vsel %vm684, %v3954, 0
      %v4467 = vsel %vm684, %v3955, 0
      %v4470 = vsel %vm684, %v3956, 0
      %v4473 = vsel %vm684, %v3957, 0
      %v4476 = vsel %vm684, %v3958, 0
      %v4479 = vsel %vm684, %v3959, 0
      %v4482 = vsel %vm684, %v3960, 0
      %v4485 = vsel %vm684, %v3961, 0
      %v4488 = vsel %vm1112, %v4390, 0
      %4490 = vmatpush.msra.mxu0 0.0
      %4491 = vmatpush.msra.mxu0 0.0
      %4492 = vmatpush.msra.mxu0 0.0
      %4493 = vmatpush.msra.mxu0 0.0
      %4494 = vmatpush.msra.mxu0 0.0
      %4495 = vmatpush.msra.mxu0 0.0
      %4496 = vmatpush.msra.mxu0 0.0
      %4497 = vmatpush.msra.mxu0 0.0
      %4498 = vmatpush.msra.mxu0 0.0
      %4499 = vmatpush.msra.mxu0 0.0
      %4500 = vmatpush.msra.mxu0 0.0
      %4501 = vmatpush.msra.mxu0 0.0
      %4502 = vmatpush.msra.mxu0 0.0
      %4503 = vmatpush.msra.mxu0 0.0
      %4504 = vmatpush.msra.mxu0 0.0
      %4505 = vmatpush.msra.mxu0 %v4488
      %4506 = vmatmul.f32.gmra.mxu0 %v4392
      %v4507 = vpop.f32.mrf.mxu0
      %v4508 = vadd.f32 0.0, %v4507
      %4509 = vmatmul.f32.gmra.mxu0 %v4395
      %v4510 = vpop.f32.mrf.mxu0
      %v4511 = vadd.f32 0.0, %v4510
      %4512 = vmatmul.f32.gmra.mxu0 %v4398
      %v4513 = vpop.f32.mrf.mxu0
      %v4514 = vadd.f32 0.0, %v4513
      %4515 = vmatmul.f32.gmra.mxu0 %v4401
      %v4516 = vpop.f32.mrf.mxu0
      %v4517 = vadd.f32 0.0, %v4516
      %4518 = vmatmul.f32.gmra.mxu0 %v4404
      %v4519 = vpop.f32.mrf.mxu0
      %v4520 = vadd.f32 0.0, %v4519
      %4521 = vmatmul.f32.gmra.mxu0 %v4407
      %v4522 = vpop.f32.mrf.mxu0
      %v4523 = vadd.f32 0.0, %v4522
      %4524 = vmatmul.f32.gmra.mxu0 %v4410
      %v4525 = vpop.f32.mrf.mxu0
      %v4526 = vadd.f32 0.0, %v4525
      %4527 = vmatmul.f32.gmra.mxu0 %v4413
      %v4528 = vpop.f32.mrf.mxu0
      %v4529 = vadd.f32 0.0, %v4528
      %4530 = vmatmul.f32.gmra.mxu0 %v4416
      %v4531 = vpop.f32.mrf.mxu0
      %v4532 = vadd.f32 0.0, %v4531
      %4533 = vmatmul.f32.gmra.mxu0 %v4419
      %v4534 = vpop.f32.mrf.mxu0
      %v4535 = vadd.f32 0.0, %v4534
      %4536 = vmatmul.f32.gmra.mxu0 %v4422
      %v4537 = vpop.f32.mrf.mxu0
      %v4538 = vadd.f32 0.0, %v4537
      %4539 = vmatmul.f32.gmra.mxu0 %v4425
      %v4540 = vpop.f32.mrf.mxu0
      %v4541 = vadd.f32 0.0, %v4540
      %4542 = vmatmul.f32.gmra.mxu0 %v4428
      %v4543 = vpop.f32.mrf.mxu0
      %v4544 = vadd.f32 0.0, %v4543
      %4545 = vmatmul.f32.gmra.mxu0 %v4431
      %v4546 = vpop.f32.mrf.mxu0
      %v4547 = vadd.f32 0.0, %v4546
      %4548 = vmatmul.f32.gmra.mxu0 %v4434
      %v4549 = vpop.f32.mrf.mxu0
      %v4550 = vadd.f32 0.0, %v4549
      %4551 = vmatmul.f32.gmra.mxu0 %v4437
      %v4552 = vpop.f32.mrf.mxu0
      %v4553 = vadd.f32 0.0, %v4552
      %4554 = vmatmul.f32.gmra.mxu0 %v4440
      %v4555 = vpop.f32.mrf.mxu0
      %v4556 = vadd.f32 0.0, %v4555
      %4557 = vmatmul.f32.gmra.mxu0 %v4443
      %v4558 = vpop.f32.mrf.mxu0
      %v4559 = vadd.f32 0.0, %v4558
      %4560 = vmatmul.f32.gmra.mxu0 %v4446
      %v4561 = vpop.f32.mrf.mxu0
      %v4562 = vadd.f32 0.0, %v4561
      %4563 = vmatmul.f32.gmra.mxu0 %v4449
      %v4564 = vpop.f32.mrf.mxu0
      %v4565 = vadd.f32 0.0, %v4564
      %4566 = vmatmul.f32.gmra.mxu0 %v4452
      %v4567 = vpop.f32.mrf.mxu0
      %v4568 = vadd.f32 0.0, %v4567
      %4569 = vmatmul.f32.gmra.mxu0 %v4455
      %v4570 = vpop.f32.mrf.mxu0
      %v4571 = vadd.f32 0.0, %v4570
      %4572 = vmatmul.f32.gmra.mxu0 %v4458
      %v4573 = vpop.f32.mrf.mxu0
      %v4574 = vadd.f32 0.0, %v4573
      %4575 = vmatmul.f32.gmra.mxu0 %v4461
      %v4576 = vpop.f32.mrf.mxu0
      %v4577 = vadd.f32 0.0, %v4576
      %4578 = vmatmul.f32.gmra.mxu0 %v4464
      %v4579 = vpop.f32.mrf.mxu0
      %v4580 = vadd.f32 0.0, %v4579
      %4581 = vmatmul.f32.gmra.mxu0 %v4467
      %v4582 = vpop.f32.mrf.mxu0
      %v4583 = vadd.f32 0.0, %v4582
      %4584 = vmatmul.f32.gmra.mxu0 %v4470
      %v4585 = vpop.f32.mrf.mxu0
      %v4586 = vadd.f32 0.0, %v4585
      %4587 = vmatmul.f32.gmra.mxu0 %v4473
      %v4588 = vpop.f32.mrf.mxu0
      %v4589 = vadd.f32 0.0, %v4588
      %4590 = vmatmul.f32.gmra.mxu0 %v4476
      %v4591 = vpop.f32.mrf.mxu0
      %v4592 = vadd.f32 0.0, %v4591
      %4593 = vmatmul.f32.gmra.mxu0 %v4479
      %v4594 = vpop.f32.mrf.mxu0
      %v4595 = vadd.f32 0.0, %v4594
      %4596 = vmatmul.f32.gmra.mxu0 %v4482
      %v4597 = vpop.f32.mrf.mxu0
      %v4598 = vadd.f32 0.0, %v4597
      %4599 = vmatmul.f32.gmra.mxu0 %v4485
      %v4600 = vpop.f32.mrf.mxu0
      %v4601 = vadd.f32 0.0, %v4600
      %4602 = vdwg.mxu0
      %v4603 = vadd.f32 %v4294, %v4508
      %v4604 = vadd.f32 %v4297, %v4511
      %v4605 = vadd.f32 %v4300, %v4514
      %v4606 = vadd.f32 %v4303, %v4517
      %v4607 = vadd.f32 %v4306, %v4520
      %v4608 = vadd.f32 %v4309, %v4523
      %v4609 = vadd.f32 %v4312, %v4526
      %v4610 = vadd.f32 %v4315, %v4529
      %v4611 = vadd.f32 %v4318, %v4532
      %v4612 = vadd.f32 %v4321, %v4535
      %v4613 = vadd.f32 %v4324, %v4538
      %v4614 = vadd.f32 %v4327, %v4541
      %v4615 = vadd.f32 %v4330, %v4544
      %v4616 = vadd.f32 %v4333, %v4547
      %v4617 = vadd.f32 %v4336, %v4550
      %v4618 = vadd.f32 %v4339, %v4553
      %v4619 = vadd.f32 %v4342, %v4556
      %v4620 = vadd.f32 %v4345, %v4559
      %v4621 = vadd.f32 %v4348, %v4562
      %v4622 = vadd.f32 %v4351, %v4565
      %v4623 = vadd.f32 %v4354, %v4568
      %v4624 = vadd.f32 %v4357, %v4571
      %v4625 = vadd.f32 %v4360, %v4574
      %v4626 = vadd.f32 %v4363, %v4577
      %v4627 = vadd.f32 %v4366, %v4580
      %v4628 = vadd.f32 %v4369, %v4583
      %v4629 = vadd.f32 %v4372, %v4586
      %v4630 = vadd.f32 %v4375, %v4589
      %v4631 = vadd.f32 %v4378, %v4592
      %v4632 = vadd.f32 %v4381, %v4595
      %v4633 = vadd.f32 %v4384, %v4598
      %v4634 = vadd.f32 %v4387, %v4601
      %v4635 = vld [vmem:[#allocation2 + $0x20] sm:$0xff]
      %v4636 = vld [vmem:[#allocation2 + $0x28] sm:$0xff]
      %v4637 = vld [vmem:[#allocation2 + $0x30] sm:$0xff]
      %v4638 = vld [vmem:[#allocation2 + $0x38] sm:$0xff]
      %v4639 = vld [vmem:[#allocation2 + $0x40] sm:$0xff]
      %v4640 = vld [vmem:[#allocation2 + $0x48] sm:$0xff]
      %v4641 = vld [vmem:[#allocation2 + $0x50] sm:$0xff]
      %v4642 = vld [vmem:[#allocation2 + $0x58] sm:$0xff]
      %v4643 = vld [vmem:[#allocation2 + $0x60] sm:$0xff]
      %v4644 = vld [vmem:[#allocation2 + $0x68] sm:$0xff]
      %v4645 = vld [vmem:[#allocation2 + $0x70] sm:$0xff]
      %v4646 = vld [vmem:[#allocation2 + $0x78] sm:$0xff]
      %v4647 = vld [vmem:[#allocation2 + $0x80] sm:$0xff]
      %v4648 = vld [vmem:[#allocation2 + $0x88] sm:$0xff]
      %v4649 = vld [vmem:[#allocation2 + $0x90] sm:$0xff]
      %v4650 = vld [vmem:[#allocation2 + $0x98] sm:$0xff]
      %v4651 = vld [vmem:[#allocation2 + $0xa0] sm:$0xff]
      %v4652 = vld [vmem:[#allocation2 + $0xa8] sm:$0xff]
      %v4653 = vld [vmem:[#allocation2 + $0xb0] sm:$0xff]
      %v4654 = vld [vmem:[#allocation2 + $0xb8] sm:$0xff]
      %v4655 = vld [vmem:[#allocation2 + $0xc0] sm:$0xff]
      %v4656 = vld [vmem:[#allocation2 + $0xc8] sm:$0xff]
      %v4657 = vld [vmem:[#allocation2 + $0xd0] sm:$0xff]
      %v4658 = vld [vmem:[#allocation2 + $0xd8] sm:$0xff]
      %v4659 = vld [vmem:[#allocation2 + $0xe0] sm:$0xff]
      %v4660 = vld [vmem:[#allocation2 + $0xe8] sm:$0xff]
      %v4661 = vld [vmem:[#allocation2 + $0xf0] sm:$0xff]
      %v4662 = vld [vmem:[#allocation2 + $0xf8] sm:$0xff]
      %v4663 = vld [vmem:[#allocation2 + $0x100] sm:$0xff]
      %v4664 = vld [vmem:[#allocation2 + $0x108] sm:$0xff]
      %v4665 = vld [vmem:[#allocation2 + $0x110] sm:$0xff]
      %v4666 = vld [vmem:[#allocation2 + $0x118] sm:$0xff]
      %v4667 = vld [vmem:[#allocation2 + $0x1f] sm:$0xff]
      %v4668 = vld [vmem:[#allocation2 + $0x27] sm:$0xff]
      %v4669 = vld [vmem:[#allocation2 + $0x2f] sm:$0xff]
      %v4670 = vld [vmem:[#allocation2 + $0x37] sm:$0xff]
      %v4671 = vld [vmem:[#allocation2 + $0x3f] sm:$0xff]
      %v4672 = vld [vmem:[#allocation2 + $0x47] sm:$0xff]
      %v4673 = vld [vmem:[#allocation2 + $0x4f] sm:$0xff]
      %v4674 = vld [vmem:[#allocation2 + $0x57] sm:$0xff]
      %v4675 = vld [vmem:[#allocation2 + $0x5f] sm:$0xff]
      %v4676 = vld [vmem:[#allocation2 + $0x67] sm:$0xff]
      %v4677 = vld [vmem:[#allocation2 + $0x6f] sm:$0xff]
      %v4678 = vld [vmem:[#allocation2 + $0x77] sm:$0xff]
      %v4679 = vld [vmem:[#allocation2 + $0x7f] sm:$0xff]
      %v4680 = vld [vmem:[#allocation2 + $0x87] sm:$0xff]
      %v4681 = vld [vmem:[#allocation2 + $0x8f] sm:$0xff]
      %v4682 = vld [vmem:[#allocation2 + $0x97] sm:$0xff]
      %v4683 = vld [vmem:[#allocation2 + $0x9f] sm:$0xff]
      %v4684 = vld [vmem:[#allocation2 + $0xa7] sm:$0xff]
      %v4685 = vld [vmem:[#allocation2 + $0xaf] sm:$0xff]
      %v4686 = vld [vmem:[#allocation2 + $0xb7] sm:$0xff]
      %v4687 = vld [vmem:[#allocation2 + $0xbf] sm:$0xff]
      %v4688 = vld [vmem:[#allocation2 + $0xc7] sm:$0xff]
      %v4689 = vld [vmem:[#allocation2 + $0xcf] sm:$0xff]
      %v4690 = vld [vmem:[#allocation2 + $0xd7] sm:$0xff]
      %v4691 = vld [vmem:[#allocation2 + $0xdf] sm:$0xff]
      %v4692 = vld [vmem:[#allocation2 + $0xe7] sm:$0xff]
      %v4693 = vld [vmem:[#allocation2 + $0xef] sm:$0xff]
      %v4694 = vld [vmem:[#allocation2 + $0xf7] sm:$0xff]
      %v4695 = vld [vmem:[#allocation2 + $0xff] sm:$0xff]
      %v4696 = vld [vmem:[#allocation2 + $0x107] sm:$0xff]
      %v4697 = vld [vmem:[#allocation2 + $0x10f] sm:$0xff]
      %v4698 = vld [vmem:[#allocation2 + $0x117] sm:$0xff]
      %v4699 = vld [vmem:[#allocation2 + $0x21] sm:$0xff]
      %v4700 = vld [vmem:[#allocation2 + $0x29] sm:$0xff]
      %v4701 = vld [vmem:[#allocation2 + $0x31] sm:$0xff]
      %v4702 = vld [vmem:[#allocation2 + $0x39] sm:$0xff]
      %v4703 = vld [vmem:[#allocation2 + $0x41] sm:$0xff]
      %v4704 = vld [vmem:[#allocation2 + $0x49] sm:$0xff]
      %v4705 = vld [vmem:[#allocation2 + $0x51] sm:$0xff]
      %v4706 = vld [vmem:[#allocation2 + $0x59] sm:$0xff]
      %v4707 = vld [vmem:[#allocation2 + $0x61] sm:$0xff]
      %v4708 = vld [vmem:[#allocation2 + $0x69] sm:$0xff]
      %v4709 = vld [vmem:[#allocation2 + $0x71] sm:$0xff]
      %v4710 = vld [vmem:[#allocation2 + $0x79] sm:$0xff]
      %v4711 = vld [vmem:[#allocation2 + $0x81] sm:$0xff]
      %v4712 = vld [vmem:[#allocation2 + $0x89] sm:$0xff]
      %v4713 = vld [vmem:[#allocation2 + $0x91] sm:$0xff]
      %v4714 = vld [vmem:[#allocation2 + $0x99] sm:$0xff]
      %v4715 = vld [vmem:[#allocation2 + $0xa1] sm:$0xff]
      %v4716 = vld [vmem:[#allocation2 + $0xa9] sm:$0xff]
      %v4717 = vld [vmem:[#allocation2 + $0xb1] sm:$0xff]
      %v4718 = vld [vmem:[#allocation2 + $0xb9] sm:$0xff]
      %v4719 = vld [vmem:[#allocation2 + $0xc1] sm:$0xff]
      %v4720 = vld [vmem:[#allocation2 + $0xc9] sm:$0xff]
      %v4721 = vld [vmem:[#allocation2 + $0xd1] sm:$0xff]
      %v4722 = vld [vmem:[#allocation2 + $0xd9] sm:$0xff]
      %v4723 = vld [vmem:[#allocation2 + $0xe1] sm:$0xff]
      %v4724 = vld [vmem:[#allocation2 + $0xe9] sm:$0xff]
      %v4725 = vld [vmem:[#allocation2 + $0xf1] sm:$0xff]
      %v4726 = vld [vmem:[#allocation2 + $0xf9] sm:$0xff]
      %v4727 = vld [vmem:[#allocation2 + $0x101] sm:$0xff]
      %v4728 = vld [vmem:[#allocation2 + $0x109] sm:$0xff]
      %v4729 = vld [vmem:[#allocation2 + $0x111] sm:$0xff]
      %v4730 = vld [vmem:[#allocation2 + $0x119] sm:$0xff]
      %v4731 = vsel %vm853, %v4635, %v4667
      %v4732 = vsel %vm854, %v4636, %v4668
      %v4733 = vsel %vm855, %v4637, %v4669
      %v4734 = vsel %vm856, %v4638, %v4670
      %v4735 = vsel %vm857, %v4639, %v4671
      %v4736 = vsel %vm858, %v4640, %v4672
      %v4737 = vsel %vm859, %v4641, %v4673
      %v4738 = vsel %vm860, %v4642, %v4674
      %v4739 = vsel %vm861, %v4643, %v4675
      %v4740 = vsel %vm862, %v4644, %v4676
      %v4741 = vsel %vm863, %v4645, %v4677
      %v4742 = vsel %vm864, %v4646, %v4678
      %v4743 = vsel %vm865, %v4647, %v4679
      %v4744 = vsel %vm866, %v4648, %v4680
      %v4745 = vsel %vm867, %v4649, %v4681
      %v4746 = vsel %vm868, %v4650, %v4682
      %v4747 = vsel %vm869, %v4651, %v4683
      %v4748 = vsel %vm870, %v4652, %v4684
      %v4749 = vsel %vm871, %v4653, %v4685
      %v4750 = vsel %vm872, %v4654, %v4686
      %v4751 = vsel %vm873, %v4655, %v4687
      %v4752 = vsel %vm874, %v4656, %v4688
      %v4753 = vsel %vm875, %v4657, %v4689
      %v4754 = vsel %vm876, %v4658, %v4690
      %v4755 = vsel %vm877, %v4659, %v4691
      %v4756 = vsel %vm878, %v4660, %v4692
      %v4757 = vsel %vm879, %v4661, %v4693
      %v4758 = vsel %vm880, %v4662, %v4694
      %v4759 = vsel %vm881, %v4663, %v4695
      %v4760 = vsel %vm882, %v4664, %v4696
      %v4761 = vsel %vm883, %v4665, %v4697
      %v4762 = vsel %vm884, %v4666, %v4698
      %v4763 = vsel %vm949, %v4635, %v4699
      %v4764 = vsel %vm950, %v4636, %v4700
      %v4765 = vsel %vm951, %v4637, %v4701
      %v4766 = vsel %vm952, %v4638, %v4702
      %v4767 = vsel %vm953, %v4639, %v4703
      %v4768 = vsel %vm954, %v4640, %v4704
      %v4769 = vsel %vm955, %v4641, %v4705
      %v4770 = vsel %vm956, %v4642, %v4706
      %v4771 = vsel %vm957, %v4643, %v4707
      %v4772 = vsel %vm958, %v4644, %v4708
      %v4773 = vsel %vm959, %v4645, %v4709
      %v4774 = vsel %vm960, %v4646, %v4710
      %v4775 = vsel %vm961, %v4647, %v4711
      %v4776 = vsel %vm962, %v4648, %v4712
      %v4777 = vsel %vm963, %v4649, %v4713
      %v4778 = vsel %vm964, %v4650, %v4714
      %v4779 = vsel %vm965, %v4651, %v4715
      %v4780 = vsel %vm966, %v4652, %v4716
      %v4781 = vsel %vm967, %v4653, %v4717
      %v4782 = vsel %vm968, %v4654, %v4718
      %v4783 = vsel %vm969, %v4655, %v4719
      %v4784 = vsel %vm970, %v4656, %v4720
      %v4785 = vsel %vm971, %v4657, %v4721
      %v4786 = vsel %vm972, %v4658, %v4722
      %v4787 = vsel %vm973, %v4659, %v4723
      %v4788 = vsel %vm974, %v4660, %v4724
      %v4789 = vsel %vm975, %v4661, %v4725
      %v4790 = vsel %vm976, %v4662, %v4726
      %v4791 = vsel %vm977, %v4663, %v4727
      %v4792 = vsel %vm978, %v4664, %v4728
      %v4793 = vsel %vm979, %v4665, %v4729
      %v4794 = vsel %vm980, %v4666, %v4730
      %s4795 = scalar_lea.vmem %s2, 12
      %v4796 = vld [vmem:[%s4795] sm:$0xf]
      %v4798 = vsel %vm684, %v4731, 0
      %v4801 = vsel %vm684, %v4732, 0
      %v4804 = vsel %vm684, %v4733, 0
      %v4807 = vsel %vm684, %v4734, 0
      %v4810 = vsel %vm684, %v4735, 0
      %v4813 = vsel %vm684, %v4736, 0
      %v4816 = vsel %vm684, %v4737, 0
      %v4819 = vsel %vm684, %v4738, 0
      %v4822 = vsel %vm684, %v4739, 0
      %v4825 = vsel %vm684, %v4740, 0
      %v4828 = vsel %vm684, %v4741, 0
      %v4831 = vsel %vm684, %v4742, 0
      %v4834 = vsel %vm684, %v4743, 0
      %v4837 = vsel %vm684, %v4744, 0
      %v4840 = vsel %vm684, %v4745, 0
      %v4843 = vsel %vm684, %v4746, 0
      %v4846 = vsel %vm684, %v4747, 0
      %v4849 = vsel %vm684, %v4748, 0
      %v4852 = vsel %vm684, %v4749, 0
      %v4855 = vsel %vm684, %v4750, 0
      %v4858 = vsel %vm684, %v4751, 0
      %v4861 = vsel %vm684, %v4752, 0
      %v4864 = vsel %vm684, %v4753, 0
      %v4867 = vsel %vm684, %v4754, 0
      %v4870 = vsel %vm684, %v4755, 0
      %v4873 = vsel %vm684, %v4756, 0
      %v4876 = vsel %vm684, %v4757, 0
      %v4879 = vsel %vm684, %v4758, 0
      %v4882 = vsel %vm684, %v4759, 0
      %v4885 = vsel %vm684, %v4760, 0
      %v4888 = vsel %vm684, %v4761, 0
      %v4891 = vsel %vm684, %v4762, 0
      %v4894 = vsel %vm1112, %v4796, 0
      %4896 = vmatpush.msra.mxu0 0.0
      %4897 = vmatpush.msra.mxu0 0.0
      %4898 = vmatpush.msra.mxu0 0.0
      %4899 = vmatpush.msra.mxu0 0.0
      %4900 = vmatpush.msra.mxu0 0.0
      %4901 = vmatpush.msra.mxu0 0.0
      %4902 = vmatpush.msra.mxu0 0.0
      %4903 = vmatpush.msra.mxu0 0.0
      %4904 = vmatpush.msra.mxu0 0.0
      %4905 = vmatpush.msra.mxu0 0.0
      %4906 = vmatpush.msra.mxu0 0.0
      %4907 = vmatpush.msra.mxu0 0.0
      %4908 = vmatpush.msra.mxu0 0.0
      %4909 = vmatpush.msra.mxu0 0.0
      %4910 = vmatpush.msra.mxu0 0.0
      %4911 = vmatpush.msra.mxu0 %v4894
      %4912 = vmatmul.f32.gmra.mxu0 %v4798
      %v4913 = vpop.f32.mrf.mxu0
      %v4914 = vadd.f32 0.0, %v4913
      %4915 = vmatmul.f32.gmra.mxu0 %v4801
      %v4916 = vpop.f32.mrf.mxu0
      %v4917 = vadd.f32 0.0, %v4916
      %4918 = vmatmul.f32.gmra.mxu0 %v4804
      %v4919 = vpop.f32.mrf.mxu0
      %v4920 = vadd.f32 0.0, %v4919
      %4921 = vmatmul.f32.gmra.mxu0 %v4807
      %v4922 = vpop.f32.mrf.mxu0
      %v4923 = vadd.f32 0.0, %v4922
      %4924 = vmatmul.f32.gmra.mxu0 %v4810
      %v4925 = vpop.f32.mrf.mxu0
      %v4926 = vadd.f32 0.0, %v4925
      %4927 = vmatmul.f32.gmra.mxu0 %v4813
      %v4928 = vpop.f32.mrf.mxu0
      %v4929 = vadd.f32 0.0, %v4928
      %4930 = vmatmul.f32.gmra.mxu0 %v4816
      %v4931 = vpop.f32.mrf.mxu0
      %v4932 = vadd.f32 0.0, %v4931
      %4933 = vmatmul.f32.gmra.mxu0 %v4819
      %v4934 = vpop.f32.mrf.mxu0
      %v4935 = vadd.f32 0.0, %v4934
      %4936 = vmatmul.f32.gmra.mxu0 %v4822
      %v4937 = vpop.f32.mrf.mxu0
      %v4938 = vadd.f32 0.0, %v4937
      %4939 = vmatmul.f32.gmra.mxu0 %v4825
      %v4940 = vpop.f32.mrf.mxu0
      %v4941 = vadd.f32 0.0, %v4940
      %4942 = vmatmul.f32.gmra.mxu0 %v4828
      %v4943 = vpop.f32.mrf.mxu0
      %v4944 = vadd.f32 0.0, %v4943
      %4945 = vmatmul.f32.gmra.mxu0 %v4831
      %v4946 = vpop.f32.mrf.mxu0
      %v4947 = vadd.f32 0.0, %v4946
      %4948 = vmatmul.f32.gmra.mxu0 %v4834
      %v4949 = vpop.f32.mrf.mxu0
      %v4950 = vadd.f32 0.0, %v4949
      %4951 = vmatmul.f32.gmra.mxu0 %v4837
      %v4952 = vpop.f32.mrf.mxu0
      %v4953 = vadd.f32 0.0, %v4952
      %4954 = vmatmul.f32.gmra.mxu0 %v4840
      %v4955 = vpop.f32.mrf.mxu0
      %v4956 = vadd.f32 0.0, %v4955
      %4957 = vmatmul.f32.gmra.mxu0 %v4843
      %v4958 = vpop.f32.mrf.mxu0
      %v4959 = vadd.f32 0.0, %v4958
      %4960 = vmatmul.f32.gmra.mxu0 %v4846
      %v4961 = vpop.f32.mrf.mxu0
      %v4962 = vadd.f32 0.0, %v4961
      %4963 = vmatmul.f32.gmra.mxu0 %v4849
      %v4964 = vpop.f32.mrf.mxu0
      %v4965 = vadd.f32 0.0, %v4964
      %4966 = vmatmul.f32.gmra.mxu0 %v4852
      %v4967 = vpop.f32.mrf.mxu0
      %v4968 = vadd.f32 0.0, %v4967
      %4969 = vmatmul.f32.gmra.mxu0 %v4855
      %v4970 = vpop.f32.mrf.mxu0
      %v4971 = vadd.f32 0.0, %v4970
      %4972 = vmatmul.f32.gmra.mxu0 %v4858
      %v4973 = vpop.f32.mrf.mxu0
      %v4974 = vadd.f32 0.0, %v4973
      %4975 = vmatmul.f32.gmra.mxu0 %v4861
      %v4976 = vpop.f32.mrf.mxu0
      %v4977 = vadd.f32 0.0, %v4976
      %4978 = vmatmul.f32.gmra.mxu0 %v4864
      %v4979 = vpop.f32.mrf.mxu0
      %v4980 = vadd.f32 0.0, %v4979
      %4981 = vmatmul.f32.gmra.mxu0 %v4867
      %v4982 = vpop.f32.mrf.mxu0
      %v4983 = vadd.f32 0.0, %v4982
      %4984 = vmatmul.f32.gmra.mxu0 %v4870
      %v4985 = vpop.f32.mrf.mxu0
      %v4986 = vadd.f32 0.0, %v4985
      %4987 = vmatmul.f32.gmra.mxu0 %v4873
      %v4988 = vpop.f32.mrf.mxu0
      %v4989 = vadd.f32 0.0, %v4988
      %4990 = vmatmul.f32.gmra.mxu0 %v4876
      %v4991 = vpop.f32.mrf.mxu0
      %v4992 = vadd.f32 0.0, %v4991
      %4993 = vmatmul.f32.gmra.mxu0 %v4879
      %v4994 = vpop.f32.mrf.mxu0
      %v4995 = vadd.f32 0.0, %v4994
      %4996 = vmatmul.f32.gmra.mxu0 %v4882
      %v4997 = vpop.f32.mrf.mxu0
      %v4998 = vadd.f32 0.0, %v4997
      %4999 = vmatmul.f32.gmra.mxu0 %v4885
      %v5000 = vpop.f32.mrf.mxu0
      %v5001 = vadd.f32 0.0, %v5000
      %5002 = vmatmul.f32.gmra.mxu0 %v4888
      %v5003 = vpop.f32.mrf.mxu0
      %v5004 = vadd.f32 0.0, %v5003
      %5005 = vmatmul.f32.gmra.mxu0 %v4891
      %v5006 = vpop.f32.mrf.mxu0
      %v5007 = vadd.f32 0.0, %v5006
      %5008 = vdwg.mxu0
      %v5009 = vadd.f32 %v4603, %v4914
      %v5010 = vadd.f32 %v4604, %v4917
      %v5011 = vadd.f32 %v4605, %v4920
      %v5012 = vadd.f32 %v4606, %v4923
      %v5013 = vadd.f32 %v4607, %v4926
      %v5014 = vadd.f32 %v4608, %v4929
      %v5015 = vadd.f32 %v4609, %v4932
      %v5016 = vadd.f32 %v4610, %v4935
      %v5017 = vadd.f32 %v4611, %v4938
      %v5018 = vadd.f32 %v4612, %v4941
      %v5019 = vadd.f32 %v4613, %v4944
      %v5020 = vadd.f32 %v4614, %v4947
      %v5021 = vadd.f32 %v4615, %v4950
      %v5022 = vadd.f32 %v4616, %v4953
      %v5023 = vadd.f32 %v4617, %v4956
      %v5024 = vadd.f32 %v4618, %v4959
      %v5025 = vadd.f32 %v4619, %v4962
      %v5026 = vadd.f32 %v4620, %v4965
      %v5027 = vadd.f32 %v4621, %v4968
      %v5028 = vadd.f32 %v4622, %v4971
      %v5029 = vadd.f32 %v4623, %v4974
      %v5030 = vadd.f32 %v4624, %v4977
      %v5031 = vadd.f32 %v4625, %v4980
      %v5032 = vadd.f32 %v4626, %v4983
      %v5033 = vadd.f32 %v4627, %v4986
      %v5034 = vadd.f32 %v4628, %v4989
      %v5035 = vadd.f32 %v4629, %v4992
      %v5036 = vadd.f32 %v4630, %v4995
      %v5037 = vadd.f32 %v4631, %v4998
      %v5038 = vadd.f32 %v4632, %v5001
      %v5039 = vadd.f32 %v4633, %v5004
      %v5040 = vadd.f32 %v4634, %v5007
      %s5041 = scalar_lea.vmem %s2, 16
      %v5042 = vld [vmem:[%s5041] sm:$0xf]
      %v5044 = vsel %vm684, %v4635, 0
      %v5047 = vsel %vm684, %v4636, 0
      %v5050 = vsel %vm684, %v4637, 0
      %v5053 = vsel %vm684, %v4638, 0
      %v5056 = vsel %vm684, %v4639, 0
      %v5059 = vsel %vm684, %v4640, 0
      %v5062 = vsel %vm684, %v4641, 0
      %v5065 = vsel %vm684, %v4642, 0
      %v5068 = vsel %vm684, %v4643, 0
      %v5071 = vsel %vm684, %v4644, 0
      %v5074 = vsel %vm684, %v4645, 0
      %v5077 = vsel %vm684, %v4646, 0
      %v5080 = vsel %vm684, %v4647, 0
      %v5083 = vsel %vm684, %v4648, 0
      %v5086 = vsel %vm684, %v4649, 0
      %v5089 = vsel %vm684, %v4650, 0
      %v5092 = vsel %vm684, %v4651, 0
      %v5095 = vsel %vm684, %v4652, 0
      %v5098 = vsel %vm684, %v4653, 0
      %v5101 = vsel %vm684, %v4654, 0
      %v5104 = vsel %vm684, %v4655, 0
      %v5107 = vsel %vm684, %v4656, 0
      %v5110 = vsel %vm684, %v4657, 0
      %v5113 = vsel %vm684, %v4658, 0
      %v5116 = vsel %vm684, %v4659, 0
      %v5119 = vsel %vm684, %v4660, 0
      %v5122 = vsel %vm684, %v4661, 0
      %v5125 = vsel %vm684, %v4662, 0
      %v5128 = vsel %vm684, %v4663, 0
      %v5131 = vsel %vm684, %v4664, 0
      %v5134 = vsel %vm684, %v4665, 0
      %v5137 = vsel %vm684, %v4666, 0
      %v5140 = vsel %vm1112, %v5042, 0
      %5142 = vmatpush.msra.mxu0 0.0
      %5143 = vmatpush.msra.mxu0 0.0
      %5144 = vmatpush.msra.mxu0 0.0
      %5145 = vmatpush.msra.mxu0 0.0
      %5146 = vmatpush.msra.mxu0 0.0
      %5147 = vmatpush.msra.mxu0 0.0
      %5148 = vmatpush.msra.mxu0 0.0
      %5149 = vmatpush.msra.mxu0 0.0
      %5150 = vmatpush.msra.mxu0 0.0
      %5151 = vmatpush.msra.mxu0 0.0
      %5152 = vmatpush.msra.mxu0 0.0
      %5153 = vmatpush.msra.mxu0 0.0
      %5154 = vmatpush.msra.mxu0 0.0
      %5155 = vmatpush.msra.mxu0 0.0
      %5156 = vmatpush.msra.mxu0 0.0
      %5157 = vmatpush.msra.mxu0 %v5140
      %5158 = vmatmul.f32.gmra.mxu0 %v5044
      %v5159 = vpop.f32.mrf.mxu0
      %v5160 = vadd.f32 0.0, %v5159
      %5161 = vmatmul.f32.gmra.mxu0 %v5047
      %v5162 = vpop.f32.mrf.mxu0
      %v5163 = vadd.f32 0.0, %v5162
      %5164 = vmatmul.f32.gmra.mxu0 %v5050
      %v5165 = vpop.f32.mrf.mxu0
      %v5166 = vadd.f32 0.0, %v5165
      %5167 = vmatmul.f32.gmra.mxu0 %v5053
      %v5168 = vpop.f32.mrf.mxu0
      %v5169 = vadd.f32 0.0, %v5168
      %5170 = vmatmul.f32.gmra.mxu0 %v5056
      %v5171 = vpop.f32.mrf.mxu0
      %v5172 = vadd.f32 0.0, %v5171
      %5173 = vmatmul.f32.gmra.mxu0 %v5059
      %v5174 = vpop.f32.mrf.mxu0
      %v5175 = vadd.f32 0.0, %v5174
      %5176 = vmatmul.f32.gmra.mxu0 %v5062
      %v5177 = vpop.f32.mrf.mxu0
      %v5178 = vadd.f32 0.0, %v5177
      %5179 = vmatmul.f32.gmra.mxu0 %v5065
      %v5180 = vpop.f32.mrf.mxu0
      %v5181 = vadd.f32 0.0, %v5180
      %5182 = vmatmul.f32.gmra.mxu0 %v5068
      %v5183 = vpop.f32.mrf.mxu0
      %v5184 = vadd.f32 0.0, %v5183
      %5185 = vmatmul.f32.gmra.mxu0 %v5071
      %v5186 = vpop.f32.mrf.mxu0
      %v5187 = vadd.f32 0.0, %v5186
      %5188 = vmatmul.f32.gmra.mxu0 %v5074
      %v5189 = vpop.f32.mrf.mxu0
      %v5190 = vadd.f32 0.0, %v5189
      %5191 = vmatmul.f32.gmra.mxu0 %v5077
      %v5192 = vpop.f32.mrf.mxu0
      %v5193 = vadd.f32 0.0, %v5192
      %5194 = vmatmul.f32.gmra.mxu0 %v5080
      %v5195 = vpop.f32.mrf.mxu0
      %v5196 = vadd.f32 0.0, %v5195
      %5197 = vmatmul.f32.gmra.mxu0 %v5083
      %v5198 = vpop.f32.mrf.mxu0
      %v5199 = vadd.f32 0.0, %v5198
      %5200 = vmatmul.f32.gmra.mxu0 %v5086
      %v5201 = vpop.f32.mrf.mxu0
      %v5202 = vadd.f32 0.0, %v5201
      %5203 = vmatmul.f32.gmra.mxu0 %v5089
      %v5204 = vpop.f32.mrf.mxu0
      %v5205 = vadd.f32 0.0, %v5204
      %5206 = vmatmul.f32.gmra.mxu0 %v5092
      %v5207 = vpop.f32.mrf.mxu0
      %v5208 = vadd.f32 0.0, %v5207
      %5209 = vmatmul.f32.gmra.mxu0 %v5095
      %v5210 = vpop.f32.mrf.mxu0
      %v5211 = vadd.f32 0.0, %v5210
      %5212 = vmatmul.f32.gmra.mxu0 %v5098
      %v5213 = vpop.f32.mrf.mxu0
      %v5214 = vadd.f32 0.0, %v5213
      %5215 = vmatmul.f32.gmra.mxu0 %v5101
      %v5216 = vpop.f32.mrf.mxu0
      %v5217 = vadd.f32 0.0, %v5216
      %5218 = vmatmul.f32.gmra.mxu0 %v5104
      %v5219 = vpop.f32.mrf.mxu0
      %v5220 = vadd.f32 0.0, %v5219
      %5221 = vmatmul.f32.gmra.mxu0 %v5107
      %v5222 = vpop.f32.mrf.mxu0
      %v5223 = vadd.f32 0.0, %v5222
      %5224 = vmatmul.f32.gmra.mxu0 %v5110
      %v5225 = vpop.f32.mrf.mxu0
      %v5226 = vadd.f32 0.0, %v5225
      %5227 = vmatmul.f32.gmra.mxu0 %v5113
      %v5228 = vpop.f32.mrf.mxu0
      %v5229 = vadd.f32 0.0, %v5228
      %5230 = vmatmul.f32.gmra.mxu0 %v5116
      %v5231 = vpop.f32.mrf.mxu0
      %v5232 = vadd.f32 0.0, %v5231
      %5233 = vmatmul.f32.gmra.mxu0 %v5119
      %v5234 = vpop.f32.mrf.mxu0
      %v5235 = vadd.f32 0.0, %v5234
      %5236 = vmatmul.f32.gmra.mxu0 %v5122
      %v5237 = vpop.f32.mrf.mxu0
      %v5238 = vadd.f32 0.0, %v5237
      %5239 = vmatmul.f32.gmra.mxu0 %v5125
      %v5240 = vpop.f32.mrf.mxu0
      %v5241 = vadd.f32 0.0, %v5240
      %5242 = vmatmul.f32.gmra.mxu0 %v5128
      %v5243 = vpop.f32.mrf.mxu0
      %v5244 = vadd.f32 0.0, %v5243
      %5245 = vmatmul.f32.gmra.mxu0 %v5131
      %v5246 = vpop.f32.mrf.mxu0
      %v5247 = vadd.f32 0.0, %v5246
      %5248 = vmatmul.f32.gmra.mxu0 %v5134
      %v5249 = vpop.f32.mrf.mxu0
      %v5250 = vadd.f32 0.0, %v5249
      %5251 = vmatmul.f32.gmra.mxu0 %v5137
      %v5252 = vpop.f32.mrf.mxu0
      %v5253 = vadd.f32 0.0, %v5252
      %5254 = vdwg.mxu0
      %v5255 = vadd.f32 %v5009, %v5160
      %v5256 = vadd.f32 %v5010, %v5163
      %v5257 = vadd.f32 %v5011, %v5166
      %v5258 = vadd.f32 %v5012, %v5169
      %v5259 = vadd.f32 %v5013, %v5172
      %v5260 = vadd.f32 %v5014, %v5175
      %v5261 = vadd.f32 %v5015, %v5178
      %v5262 = vadd.f32 %v5016, %v5181
      %v5263 = vadd.f32 %v5017, %v5184
      %v5264 = vadd.f32 %v5018, %v5187
      %v5265 = vadd.f32 %v5019, %v5190
      %v5266 = vadd.f32 %v5020, %v5193
      %v5267 = vadd.f32 %v5021, %v5196
      %v5268 = vadd.f32 %v5022, %v5199
      %v5269 = vadd.f32 %v5023, %v5202
      %v5270 = vadd.f32 %v5024, %v5205
      %v5271 = vadd.f32 %v5025, %v5208
      %v5272 = vadd.f32 %v5026, %v5211
      %v5273 = vadd.f32 %v5027, %v5214
      %v5274 = vadd.f32 %v5028, %v5217
      %v5275 = vadd.f32 %v5029, %v5220
      %v5276 = vadd.f32 %v5030, %v5223
      %v5277 = vadd.f32 %v5031, %v5226
      %v5278 = vadd.f32 %v5032, %v5229
      %v5279 = vadd.f32 %v5033, %v5232
      %v5280 = vadd.f32 %v5034, %v5235
      %v5281 = vadd.f32 %v5035, %v5238
      %v5282 = vadd.f32 %v5036, %v5241
      %v5283 = vadd.f32 %v5037, %v5244
      %v5284 = vadd.f32 %v5038, %v5247
      %v5285 = vadd.f32 %v5039, %v5250
      %v5286 = vadd.f32 %v5040, %v5253
      %s5287 = scalar_lea.vmem %s2, 20
      %v5288 = vld [vmem:[%s5287] sm:$0xf]
      %v5290 = vsel %vm684, %v4763, 0
      %v5293 = vsel %vm684, %v4764, 0
      %v5296 = vsel %vm684, %v4765, 0
      %v5299 = vsel %vm684, %v4766, 0
      %v5302 = vsel %vm684, %v4767, 0
      %v5305 = vsel %vm684, %v4768, 0
      %v5308 = vsel %vm684, %v4769, 0
      %v5311 = vsel %vm684, %v4770, 0
      %v5314 = vsel %vm684, %v4771, 0
      %v5317 = vsel %vm684, %v4772, 0
      %v5320 = vsel %vm684, %v4773, 0
      %v5323 = vsel %vm684, %v4774, 0
      %v5326 = vsel %vm684, %v4775, 0
      %v5329 = vsel %vm684, %v4776, 0
      %v5332 = vsel %vm684, %v4777, 0
      %v5335 = vsel %vm684, %v4778, 0
      %v5338 = vsel %vm684, %v4779, 0
      %v5341 = vsel %vm684, %v4780, 0
      %v5344 = vsel %vm684, %v4781, 0
      %v5347 = vsel %vm684, %v4782, 0
      %v5350 = vsel %vm684, %v4783, 0
      %v5353 = vsel %vm684, %v4784, 0
      %v5356 = vsel %vm684, %v4785, 0
      %v5359 = vsel %vm684, %v4786, 0
      %v5362 = vsel %vm684, %v4787, 0
      %v5365 = vsel %vm684, %v4788, 0
      %v5368 = vsel %vm684, %v4789, 0
      %v5371 = vsel %vm684, %v4790, 0
      %v5374 = vsel %vm684, %v4791, 0
      %v5377 = vsel %vm684, %v4792, 0
      %v5380 = vsel %vm684, %v4793, 0
      %v5383 = vsel %vm684, %v4794, 0
      %v5386 = vsel %vm1112, %v5288, 0
      %5388 = vmatpush.msra.mxu0 0.0
      %5389 = vmatpush.msra.mxu0 0.0
      %5390 = vmatpush.msra.mxu0 0.0
      %5391 = vmatpush.msra.mxu0 0.0
      %5392 = vmatpush.msra.mxu0 0.0
      %5393 = vmatpush.msra.mxu0 0.0
      %5394 = vmatpush.msra.mxu0 0.0
      %5395 = vmatpush.msra.mxu0 0.0
      %5396 = vmatpush.msra.mxu0 0.0
      %5397 = vmatpush.msra.mxu0 0.0
      %5398 = vmatpush.msra.mxu0 0.0
      %5399 = vmatpush.msra.mxu0 0.0
      %5400 = vmatpush.msra.mxu0 0.0
      %5401 = vmatpush.msra.mxu0 0.0
      %5402 = vmatpush.msra.mxu0 0.0
      %5403 = vmatpush.msra.mxu0 %v5386
      %5404 = vmatmul.f32.gmra.mxu0 %v5290
      %v5405 = vpop.f32.mrf.mxu0
      %v5406 = vadd.f32 0.0, %v5405
      %5407 = vmatmul.f32.gmra.mxu0 %v5293
      %v5408 = vpop.f32.mrf.mxu0
      %v5409 = vadd.f32 0.0, %v5408
      %5410 = vmatmul.f32.gmra.mxu0 %v5296
      %v5411 = vpop.f32.mrf.mxu0
      %v5412 = vadd.f32 0.0, %v5411
      %5413 = vmatmul.f32.gmra.mxu0 %v5299
      %v5414 = vpop.f32.mrf.mxu0
      %v5415 = vadd.f32 0.0, %v5414
      %5416 = vmatmul.f32.gmra.mxu0 %v5302
      %v5417 = vpop.f32.mrf.mxu0
      %v5418 = vadd.f32 0.0, %v5417
      %5419 = vmatmul.f32.gmra.mxu0 %v5305
      %v5420 = vpop.f32.mrf.mxu0
      %v5421 = vadd.f32 0.0, %v5420
      %5422 = vmatmul.f32.gmra.mxu0 %v5308
      %v5423 = vpop.f32.mrf.mxu0
      %v5424 = vadd.f32 0.0, %v5423
      %5425 = vmatmul.f32.gmra.mxu0 %v5311
      %v5426 = vpop.f32.mrf.mxu0
      %v5427 = vadd.f32 0.0, %v5426
      %5428 = vmatmul.f32.gmra.mxu0 %v5314
      %v5429 = vpop.f32.mrf.mxu0
      %v5430 = vadd.f32 0.0, %v5429
      %5431 = vmatmul.f32.gmra.mxu0 %v5317
      %v5432 = vpop.f32.mrf.mxu0
      %v5433 = vadd.f32 0.0, %v5432
      %5434 = vmatmul.f32.gmra.mxu0 %v5320
      %v5435 = vpop.f32.mrf.mxu0
      %v5436 = vadd.f32 0.0, %v5435
      %5437 = vmatmul.f32.gmra.mxu0 %v5323
      %v5438 = vpop.f32.mrf.mxu0
      %v5439 = vadd.f32 0.0, %v5438
      %5440 = vmatmul.f32.gmra.mxu0 %v5326
      %v5441 = vpop.f32.mrf.mxu0
      %v5442 = vadd.f32 0.0, %v5441
      %5443 = vmatmul.f32.gmra.mxu0 %v5329
      %v5444 = vpop.f32.mrf.mxu0
      %v5445 = vadd.f32 0.0, %v5444
      %5446 = vmatmul.f32.gmra.mxu0 %v5332
      %v5447 = vpop.f32.mrf.mxu0
      %v5448 = vadd.f32 0.0, %v5447
      %5449 = vmatmul.f32.gmra.mxu0 %v5335
      %v5450 = vpop.f32.mrf.mxu0
      %v5451 = vadd.f32 0.0, %v5450
      %5452 = vmatmul.f32.gmra.mxu0 %v5338
      %v5453 = vpop.f32.mrf.mxu0
      %v5454 = vadd.f32 0.0, %v5453
      %5455 = vmatmul.f32.gmra.mxu0 %v5341
      %v5456 = vpop.f32.mrf.mxu0
      %v5457 = vadd.f32 0.0, %v5456
      %5458 = vmatmul.f32.gmra.mxu0 %v5344
      %v5459 = vpop.f32.mrf.mxu0
      %v5460 = vadd.f32 0.0, %v5459
      %5461 = vmatmul.f32.gmra.mxu0 %v5347
      %v5462 = vpop.f32.mrf.mxu0
      %v5463 = vadd.f32 0.0, %v5462
      %5464 = vmatmul.f32.gmra.mxu0 %v5350
      %v5465 = vpop.f32.mrf.mxu0
      %v5466 = vadd.f32 0.0, %v5465
      %5467 = vmatmul.f32.gmra.mxu0 %v5353
      %v5468 = vpop.f32.mrf.mxu0
      %v5469 = vadd.f32 0.0, %v5468
      %5470 = vmatmul.f32.gmra.mxu0 %v5356
      %v5471 = vpop.f32.mrf.mxu0
      %v5472 = vadd.f32 0.0, %v5471
      %5473 = vmatmul.f32.gmra.mxu0 %v5359
      %v5474 = vpop.f32.mrf.mxu0
      %v5475 = vadd.f32 0.0, %v5474
      %5476 = vmatmul.f32.gmra.mxu0 %v5362
      %v5477 = vpop.f32.mrf.mxu0
      %v5478 = vadd.f32 0.0, %v5477
      %5479 = vmatmul.f32.gmra.mxu0 %v5365
      %v5480 = vpop.f32.mrf.mxu0
      %v5481 = vadd.f32 0.0, %v5480
      %5482 = vmatmul.f32.gmra.mxu0 %v5368
      %v5483 = vpop.f32.mrf.mxu0
      %v5484 = vadd.f32 0.0, %v5483
      %5485 = vmatmul.f32.gmra.mxu0 %v5371
      %v5486 = vpop.f32.mrf.mxu0
      %v5487 = vadd.f32 0.0, %v5486
      %5488 = vmatmul.f32.gmra.mxu0 %v5374
      %v5489 = vpop.f32.mrf.mxu0
      %v5490 = vadd.f32 0.0, %v5489
      %5491 = vmatmul.f32.gmra.mxu0 %v5377
      %v5492 = vpop.f32.mrf.mxu0
      %v5493 = vadd.f32 0.0, %v5492
      %5494 = vmatmul.f32.gmra.mxu0 %v5380
      %v5495 = vpop.f32.mrf.mxu0
      %v5496 = vadd.f32 0.0, %v5495
      %5497 = vmatmul.f32.gmra.mxu0 %v5383
      %v5498 = vpop.f32.mrf.mxu0
      %v5499 = vadd.f32 0.0, %v5498
      %5500 = vdwg.mxu0
      %v5501 = vadd.f32 %v5255, %v5406
      %v5502 = vadd.f32 %v5256, %v5409
      %v5503 = vadd.f32 %v5257, %v5412
      %v5504 = vadd.f32 %v5258, %v5415
      %v5505 = vadd.f32 %v5259, %v5418
      %v5506 = vadd.f32 %v5260, %v5421
      %v5507 = vadd.f32 %v5261, %v5424
      %v5508 = vadd.f32 %v5262, %v5427
      %v5509 = vadd.f32 %v5263, %v5430
      %v5510 = vadd.f32 %v5264, %v5433
      %v5511 = vadd.f32 %v5265, %v5436
      %v5512 = vadd.f32 %v5266, %v5439
      %v5513 = vadd.f32 %v5267, %v5442
      %v5514 = vadd.f32 %v5268, %v5445
      %v5515 = vadd.f32 %v5269, %v5448
      %v5516 = vadd.f32 %v5270, %v5451
      %v5517 = vadd.f32 %v5271, %v5454
      %v5518 = vadd.f32 %v5272, %v5457
      %v5519 = vadd.f32 %v5273, %v5460
      %v5520 = vadd.f32 %v5274, %v5463
      %v5521 = vadd.f32 %v5275, %v5466
      %v5522 = vadd.f32 %v5276, %v5469
      %v5523 = vadd.f32 %v5277, %v5472
      %v5524 = vadd.f32 %v5278, %v5475
      %v5525 = vadd.f32 %v5279, %v5478
      %v5526 = vadd.f32 %v5280, %v5481
      %v5527 = vadd.f32 %v5281, %v5484
      %v5528 = vadd.f32 %v5282, %v5487
      %v5529 = vadd.f32 %v5283, %v5490
      %v5530 = vadd.f32 %v5284, %v5493
      %v5531 = vadd.f32 %v5285, %v5496
      %v5532 = vadd.f32 %v5286, %v5499
      %v5533 = vld [vmem:[#allocation2 + $0x30] sm:$0xff]
      %v5534 = vld [vmem:[#allocation2 + $0x38] sm:$0xff]
      %v5535 = vld [vmem:[#allocation2 + $0x40] sm:$0xff]
      %v5536 = vld [vmem:[#allocation2 + $0x48] sm:$0xff]
      %v5537 = vld [vmem:[#allocation2 + $0x50] sm:$0xff]
      %v5538 = vld [vmem:[#allocation2 + $0x58] sm:$0xff]
      %v5539 = vld [vmem:[#allocation2 + $0x60] sm:$0xff]
      %v5540 = vld [vmem:[#allocation2 + $0x68] sm:$0xff]
      %v5541 = vld [vmem:[#allocation2 + $0x70] sm:$0xff]
      %v5542 = vld [vmem:[#allocation2 + $0x78] sm:$0xff]
      %v5543 = vld [vmem:[#allocation2 + $0x80] sm:$0xff]
      %v5544 = vld [vmem:[#allocation2 + $0x88] sm:$0xff]
      %v5545 = vld [vmem:[#allocation2 + $0x90] sm:$0xff]
      %v5546 = vld [vmem:[#allocation2 + $0x98] sm:$0xff]
      %v5547 = vld [vmem:[#allocation2 + $0xa0] sm:$0xff]
      %v5548 = vld [vmem:[#allocation2 + $0xa8] sm:$0xff]
      %v5549 = vld [vmem:[#allocation2 + $0xb0] sm:$0xff]
      %v5550 = vld [vmem:[#allocation2 + $0xb8] sm:$0xff]
      %v5551 = vld [vmem:[#allocation2 + $0xc0] sm:$0xff]
      %v5552 = vld [vmem:[#allocation2 + $0xc8] sm:$0xff]
      %v5553 = vld [vmem:[#allocation2 + $0xd0] sm:$0xff]
      %v5554 = vld [vmem:[#allocation2 + $0xd8] sm:$0xff]
      %v5555 = vld [vmem:[#allocation2 + $0xe0] sm:$0xff]
      %v5556 = vld [vmem:[#allocation2 + $0xe8] sm:$0xff]
      %v5557 = vld [vmem:[#allocation2 + $0xf0] sm:$0xff]
      %v5558 = vld [vmem:[#allocation2 + $0xf8] sm:$0xff]
      %v5559 = vld [vmem:[#allocation2 + $0x100] sm:$0xff]
      %v5560 = vld [vmem:[#allocation2 + $0x108] sm:$0xff]
      %v5561 = vld [vmem:[#allocation2 + $0x110] sm:$0xff]
      %v5562 = vld [vmem:[#allocation2 + $0x118] sm:$0xff]
      %v5563 = vld [vmem:[#allocation2 + $0x120] sm:$0xff]
      %v5564 = vld [vmem:[#allocation2 + $0x128] sm:$0xff]
      %v5565 = vld [vmem:[#allocation2 + $0x2f] sm:$0xff]
      %v5566 = vld [vmem:[#allocation2 + $0x37] sm:$0xff]
      %v5567 = vld [vmem:[#allocation2 + $0x3f] sm:$0xff]
      %v5568 = vld [vmem:[#allocation2 + $0x47] sm:$0xff]
      %v5569 = vld [vmem:[#allocation2 + $0x4f] sm:$0xff]
      %v5570 = vld [vmem:[#allocation2 + $0x57] sm:$0xff]
      %v5571 = vld [vmem:[#allocation2 + $0x5f] sm:$0xff]
      %v5572 = vld [vmem:[#allocation2 + $0x67] sm:$0xff]
      %v5573 = vld [vmem:[#allocation2 + $0x6f] sm:$0xff]
      %v5574 = vld [vmem:[#allocation2 + $0x77] sm:$0xff]
      %v5575 = vld [vmem:[#allocation2 + $0x7f] sm:$0xff]
      %v5576 = vld [vmem:[#allocation2 + $0x87] sm:$0xff]
      %v5577 = vld [vmem:[#allocation2 + $0x8f] sm:$0xff]
      %v5578 = vld [vmem:[#allocation2 + $0x97] sm:$0xff]
      %v5579 = vld [vmem:[#allocation2 + $0x9f] sm:$0xff]
      %v5580 = vld [vmem:[#allocation2 + $0xa7] sm:$0xff]
      %v5581 = vld [vmem:[#allocation2 + $0xaf] sm:$0xff]
      %v5582 = vld [vmem:[#allocation2 + $0xb7] sm:$0xff]
      %v5583 = vld [vmem:[#allocation2 + $0xbf] sm:$0xff]
      %v5584 = vld [vmem:[#allocation2 + $0xc7] sm:$0xff]
      %v5585 = vld [vmem:[#allocation2 + $0xcf] sm:$0xff]
      %v5586 = vld [vmem:[#allocation2 + $0xd7] sm:$0xff]
      %v5587 = vld [vmem:[#allocation2 + $0xdf] sm:$0xff]
      %v5588 = vld [vmem:[#allocation2 + $0xe7] sm:$0xff]
      %v5589 = vld [vmem:[#allocation2 + $0xef] sm:$0xff]
      %v5590 = vld [vmem:[#allocation2 + $0xf7] sm:$0xff]
      %v5591 = vld [vmem:[#allocation2 + $0xff] sm:$0xff]
      %v5592 = vld [vmem:[#allocation2 + $0x107] sm:$0xff]
      %v5593 = vld [vmem:[#allocation2 + $0x10f] sm:$0xff]
      %v5594 = vld [vmem:[#allocation2 + $0x117] sm:$0xff]
      %v5595 = vld [vmem:[#allocation2 + $0x11f] sm:$0xff]
      %v5596 = vld [vmem:[#allocation2 + $0x127] sm:$0xff]
      %v5597 = vld [vmem:[#allocation2 + $0x31] sm:$0xff]
      %v5598 = vld [vmem:[#allocation2 + $0x39] sm:$0xff]
      %v5599 = vld [vmem:[#allocation2 + $0x41] sm:$0xff]
      %v5600 = vld [vmem:[#allocation2 + $0x49] sm:$0xff]
      %v5601 = vld [vmem:[#allocation2 + $0x51] sm:$0xff]
      %v5602 = vld [vmem:[#allocation2 + $0x59] sm:$0xff]
      %v5603 = vld [vmem:[#allocation2 + $0x61] sm:$0xff]
      %v5604 = vld [vmem:[#allocation2 + $0x69] sm:$0xff]
      %v5605 = vld [vmem:[#allocation2 + $0x71] sm:$0xff]
      %v5606 = vld [vmem:[#allocation2 + $0x79] sm:$0xff]
      %v5607 = vld [vmem:[#allocation2 + $0x81] sm:$0xff]
      %v5608 = vld [vmem:[#allocation2 + $0x89] sm:$0xff]
      %v5609 = vld [vmem:[#allocation2 + $0x91] sm:$0xff]
      %v5610 = vld [vmem:[#allocation2 + $0x99] sm:$0xff]
      %v5611 = vld [vmem:[#allocation2 + $0xa1] sm:$0xff]
      %v5612 = vld [vmem:[#allocation2 + $0xa9] sm:$0xff]
      %v5613 = vld [vmem:[#allocation2 + $0xb1] sm:$0xff]
      %v5614 = vld [vmem:[#allocation2 + $0xb9] sm:$0xff]
      %v5615 = vld [vmem:[#allocation2 + $0xc1] sm:$0xff]
      %v5616 = vld [vmem:[#allocation2 + $0xc9] sm:$0xff]
      %v5617 = vld [vmem:[#allocation2 + $0xd1] sm:$0xff]
      %v5618 = vld [vmem:[#allocation2 + $0xd9] sm:$0xff]
      %v5619 = vld [vmem:[#allocation2 + $0xe1] sm:$0xff]
      %v5620 = vld [vmem:[#allocation2 + $0xe9] sm:$0xff]
      %v5621 = vld [vmem:[#allocation2 + $0xf1] sm:$0xff]
      %v5622 = vld [vmem:[#allocation2 + $0xf9] sm:$0xff]
      %v5623 = vld [vmem:[#allocation2 + $0x101] sm:$0xff]
      %v5624 = vld [vmem:[#allocation2 + $0x109] sm:$0xff]
      %v5625 = vld [vmem:[#allocation2 + $0x111] sm:$0xff]
      %v5626 = vld [vmem:[#allocation2 + $0x119] sm:$0xff]
      %v5627 = vld [vmem:[#allocation2 + $0x121] sm:$0xff]
      %v5628 = vld [vmem:[#allocation2 + $0x129] sm:$0xff]
      %v5629 = vsel %vm853, %v5533, %v5565
      %v5630 = vsel %vm854, %v5534, %v5566
      %v5631 = vsel %vm855, %v5535, %v5567
      %v5632 = vsel %vm856, %v5536, %v5568
      %v5633 = vsel %vm857, %v5537, %v5569
      %v5634 = vsel %vm858, %v5538, %v5570
      %v5635 = vsel %vm859, %v5539, %v5571
      %v5636 = vsel %vm860, %v5540, %v5572
      %v5637 = vsel %vm861, %v5541, %v5573
      %v5638 = vsel %vm862, %v5542, %v5574
      %v5639 = vsel %vm863, %v5543, %v5575
      %v5640 = vsel %vm864, %v5544, %v5576
      %v5641 = vsel %vm865, %v5545, %v5577
      %v5642 = vsel %vm866, %v5546, %v5578
      %v5643 = vsel %vm867, %v5547, %v5579
      %v5644 = vsel %vm868, %v5548, %v5580
      %v5645 = vsel %vm869, %v5549, %v5581
      %v5646 = vsel %vm870, %v5550, %v5582
      %v5647 = vsel %vm871, %v5551, %v5583
      %v5648 = vsel %vm872, %v5552, %v5584
      %v5649 = vsel %vm873, %v5553, %v5585
      %v5650 = vsel %vm874, %v5554, %v5586
      %v5651 = vsel %vm875, %v5555, %v5587
      %v5652 = vsel %vm876, %v5556, %v5588
      %v5653 = vsel %vm877, %v5557, %v5589
      %v5654 = vsel %vm878, %v5558, %v5590
      %v5655 = vsel %vm879, %v5559, %v5591
      %v5656 = vsel %vm880, %v5560, %v5592
      %v5657 = vsel %vm881, %v5561, %v5593
      %v5658 = vsel %vm882, %v5562, %v5594
      %v5659 = vsel %vm883, %v5563, %v5595
      %v5660 = vsel %vm884, %v5564, %v5596
      %v5661 = vsel %vm949, %v5533, %v5597
      %v5662 = vsel %vm950, %v5534, %v5598
      %v5663 = vsel %vm951, %v5535, %v5599
      %v5664 = vsel %vm952, %v5536, %v5600
      %v5665 = vsel %vm953, %v5537, %v5601
      %v5666 = vsel %vm954, %v5538, %v5602
      %v5667 = vsel %vm955, %v5539, %v5603
      %v5668 = vsel %vm956, %v5540, %v5604
      %v5669 = vsel %vm957, %v5541, %v5605
      %v5670 = vsel %vm958, %v5542, %v5606
      %v5671 = vsel %vm959, %v5543, %v5607
      %v5672 = vsel %vm960, %v5544, %v5608
      %v5673 = vsel %vm961, %v5545, %v5609
      %v5674 = vsel %vm962, %v5546, %v5610
      %v5675 = vsel %vm963, %v5547, %v5611
      %v5676 = vsel %vm964, %v5548, %v5612
      %v5677 = vsel %vm965, %v5549, %v5613
      %v5678 = vsel %vm966, %v5550, %v5614
      %v5679 = vsel %vm967, %v5551, %v5615
      %v5680 = vsel %vm968, %v5552, %v5616
      %v5681 = vsel %vm969, %v5553, %v5617
      %v5682 = vsel %vm970, %v5554, %v5618
      %v5683 = vsel %vm971, %v5555, %v5619
      %v5684 = vsel %vm972, %v5556, %v5620
      %v5685 = vsel %vm973, %v5557, %v5621
      %v5686 = vsel %vm974, %v5558, %v5622
      %v5687 = vsel %vm975, %v5559, %v5623
      %v5688 = vsel %vm976, %v5560, %v5624
      %v5689 = vsel %vm977, %v5561, %v5625
      %v5690 = vsel %vm978, %v5562, %v5626
      %v5691 = vsel %vm979, %v5563, %v5627
      %v5692 = vsel %vm980, %v5564, %v5628
      %s5693 = scalar_lea.vmem %s2, 24
      %v5694 = vld [vmem:[%s5693] sm:$0xf]
      %v5696 = vsel %vm684, %v5629, 0
      %v5699 = vsel %vm684, %v5630, 0
      %v5702 = vsel %vm684, %v5631, 0
      %v5705 = vsel %vm684, %v5632, 0
      %v5708 = vsel %vm684, %v5633, 0
      %v5711 = vsel %vm684, %v5634, 0
      %v5714 = vsel %vm684, %v5635, 0
      %v5717 = vsel %vm684, %v5636, 0
      %v5720 = vsel %vm684, %v5637, 0
      %v5723 = vsel %vm684, %v5638, 0
      %v5726 = vsel %vm684, %v5639, 0
      %v5729 = vsel %vm684, %v5640, 0
      %v5732 = vsel %vm684, %v5641, 0
      %v5735 = vsel %vm684, %v5642, 0
      %v5738 = vsel %vm684, %v5643, 0
      %v5741 = vsel %vm684, %v5644, 0
      %v5744 = vsel %vm684, %v5645, 0
      %v5747 = vsel %vm684, %v5646, 0
      %v5750 = vsel %vm684, %v5647, 0
      %v5753 = vsel %vm684, %v5648, 0
      %v5756 = vsel %vm684, %v5649, 0
      %v5759 = vsel %vm684, %v5650, 0
      %v5762 = vsel %vm684, %v5651, 0
      %v5765 = vsel %vm684, %v5652, 0
      %v5768 = vsel %vm684, %v5653, 0
      %v5771 = vsel %vm684, %v5654, 0
      %v5774 = vsel %vm684, %v5655, 0
      %v5777 = vsel %vm684, %v5656, 0
      %v5780 = vsel %vm684, %v5657, 0
      %v5783 = vsel %vm684, %v5658, 0
      %v5786 = vsel %vm684, %v5659, 0
      %v5789 = vsel %vm684, %v5660, 0
      %v5792 = vsel %vm1112, %v5694, 0
      %5794 = vmatpush.msra.mxu0 0.0
      %5795 = vmatpush.msra.mxu0 0.0
      %5796 = vmatpush.msra.mxu0 0.0
      %5797 = vmatpush.msra.mxu0 0.0
      %5798 = vmatpush.msra.mxu0 0.0
      %5799 = vmatpush.msra.mxu0 0.0
      %5800 = vmatpush.msra.mxu0 0.0
      %5801 = vmatpush.msra.mxu0 0.0
      %5802 = vmatpush.msra.mxu0 0.0
      %5803 = vmatpush.msra.mxu0 0.0
      %5804 = vmatpush.msra.mxu0 0.0
      %5805 = vmatpush.msra.mxu0 0.0
      %5806 = vmatpush.msra.mxu0 0.0
      %5807 = vmatpush.msra.mxu0 0.0
      %5808 = vmatpush.msra.mxu0 0.0
      %5809 = vmatpush.msra.mxu0 %v5792
      %5810 = vmatmul.f32.gmra.mxu0 %v5696
      %v5811 = vpop.f32.mrf.mxu0
      %v5812 = vadd.f32 0.0, %v5811
      %5813 = vmatmul.f32.gmra.mxu0 %v5699
      %v5814 = vpop.f32.mrf.mxu0
      %v5815 = vadd.f32 0.0, %v5814
      %5816 = vmatmul.f32.gmra.mxu0 %v5702
      %v5817 = vpop.f32.mrf.mxu0
      %v5818 = vadd.f32 0.0, %v5817
      %5819 = vmatmul.f32.gmra.mxu0 %v5705
      %v5820 = vpop.f32.mrf.mxu0
      %v5821 = vadd.f32 0.0, %v5820
      %5822 = vmatmul.f32.gmra.mxu0 %v5708
      %v5823 = vpop.f32.mrf.mxu0
      %v5824 = vadd.f32 0.0, %v5823
      %5825 = vmatmul.f32.gmra.mxu0 %v5711
      %v5826 = vpop.f32.mrf.mxu0
      %v5827 = vadd.f32 0.0, %v5826
      %5828 = vmatmul.f32.gmra.mxu0 %v5714
      %v5829 = vpop.f32.mrf.mxu0
      %v5830 = vadd.f32 0.0, %v5829
      %5831 = vmatmul.f32.gmra.mxu0 %v5717
      %v5832 = vpop.f32.mrf.mxu0
      %v5833 = vadd.f32 0.0, %v5832
      %5834 = vmatmul.f32.gmra.mxu0 %v5720
      %v5835 = vpop.f32.mrf.mxu0
      %v5836 = vadd.f32 0.0, %v5835
      %5837 = vmatmul.f32.gmra.mxu0 %v5723
      %v5838 = vpop.f32.mrf.mxu0
      %v5839 = vadd.f32 0.0, %v5838
      %5840 = vmatmul.f32.gmra.mxu0 %v5726
      %v5841 = vpop.f32.mrf.mxu0
      %v5842 = vadd.f32 0.0, %v5841
      %5843 = vmatmul.f32.gmra.mxu0 %v5729
      %v5844 = vpop.f32.mrf.mxu0
      %v5845 = vadd.f32 0.0, %v5844
      %5846 = vmatmul.f32.gmra.mxu0 %v5732
      %v5847 = vpop.f32.mrf.mxu0
      %v5848 = vadd.f32 0.0, %v5847
      %5849 = vmatmul.f32.gmra.mxu0 %v5735
      %v5850 = vpop.f32.mrf.mxu0
      %v5851 = vadd.f32 0.0, %v5850
      %5852 = vmatmul.f32.gmra.mxu0 %v5738
      %v5853 = vpop.f32.mrf.mxu0
      %v5854 = vadd.f32 0.0, %v5853
      %5855 = vmatmul.f32.gmra.mxu0 %v5741
      %v5856 = vpop.f32.mrf.mxu0
      %v5857 = vadd.f32 0.0, %v5856
      %5858 = vmatmul.f32.gmra.mxu0 %v5744
      %v5859 = vpop.f32.mrf.mxu0
      %v5860 = vadd.f32 0.0, %v5859
      %5861 = vmatmul.f32.gmra.mxu0 %v5747
      %v5862 = vpop.f32.mrf.mxu0
      %v5863 = vadd.f32 0.0, %v5862
      %5864 = vmatmul.f32.gmra.mxu0 %v5750
      %v5865 = vpop.f32.mrf.mxu0
      %v5866 = vadd.f32 0.0, %v5865
      %5867 = vmatmul.f32.gmra.mxu0 %v5753
      %v5868 = vpop.f32.mrf.mxu0
      %v5869 = vadd.f32 0.0, %v5868
      %5870 = vmatmul.f32.gmra.mxu0 %v5756
      %v5871 = vpop.f32.mrf.mxu0
      %v5872 = vadd.f32 0.0, %v5871
      %5873 = vmatmul.f32.gmra.mxu0 %v5759
      %v5874 = vpop.f32.mrf.mxu0
      %v5875 = vadd.f32 0.0, %v5874
      %5876 = vmatmul.f32.gmra.mxu0 %v5762
      %v5877 = vpop.f32.mrf.mxu0
      %v5878 = vadd.f32 0.0, %v5877
      %5879 = vmatmul.f32.gmra.mxu0 %v5765
      %v5880 = vpop.f32.mrf.mxu0
      %v5881 = vadd.f32 0.0, %v5880
      %5882 = vmatmul.f32.gmra.mxu0 %v5768
      %v5883 = vpop.f32.mrf.mxu0
      %v5884 = vadd.f32 0.0, %v5883
      %5885 = vmatmul.f32.gmra.mxu0 %v5771
      %v5886 = vpop.f32.mrf.mxu0
      %v5887 = vadd.f32 0.0, %v5886
      %5888 = vmatmul.f32.gmra.mxu0 %v5774
      %v5889 = vpop.f32.mrf.mxu0
      %v5890 = vadd.f32 0.0, %v5889
      %5891 = vmatmul.f32.gmra.mxu0 %v5777
      %v5892 = vpop.f32.mrf.mxu0
      %v5893 = vadd.f32 0.0, %v5892
      %5894 = vmatmul.f32.gmra.mxu0 %v5780
      %v5895 = vpop.f32.mrf.mxu0
      %v5896 = vadd.f32 0.0, %v5895
      %5897 = vmatmul.f32.gmra.mxu0 %v5783
      %v5898 = vpop.f32.mrf.mxu0
      %v5899 = vadd.f32 0.0, %v5898
      %5900 = vmatmul.f32.gmra.mxu0 %v5786
      %v5901 = vpop.f32.mrf.mxu0
      %v5902 = vadd.f32 0.0, %v5901
      %5903 = vmatmul.f32.gmra.mxu0 %v5789
      %v5904 = vpop.f32.mrf.mxu0
      %v5905 = vadd.f32 0.0, %v5904
      %5906 = vdwg.mxu0
      %v5907 = vadd.f32 %v5501, %v5812
      %v5908 = vadd.f32 %v5502, %v5815
      %v5909 = vadd.f32 %v5503, %v5818
      %v5910 = vadd.f32 %v5504, %v5821
      %v5911 = vadd.f32 %v5505, %v5824
      %v5912 = vadd.f32 %v5506, %v5827
      %v5913 = vadd.f32 %v5507, %v5830
      %v5914 = vadd.f32 %v5508, %v5833
      %v5915 = vadd.f32 %v5509, %v5836
      %v5916 = vadd.f32 %v5510, %v5839
      %v5917 = vadd.f32 %v5511, %v5842
      %v5918 = vadd.f32 %v5512, %v5845
      %v5919 = vadd.f32 %v5513, %v5848
      %v5920 = vadd.f32 %v5514, %v5851
      %v5921 = vadd.f32 %v5515, %v5854
      %v5922 = vadd.f32 %v5516, %v5857
      %v5923 = vadd.f32 %v5517, %v5860
      %v5924 = vadd.f32 %v5518, %v5863
      %v5925 = vadd.f32 %v5519, %v5866
      %v5926 = vadd.f32 %v5520, %v5869
      %v5927 = vadd.f32 %v5521, %v5872
      %v5928 = vadd.f32 %v5522, %v5875
      %v5929 = vadd.f32 %v5523, %v5878
      %v5930 = vadd.f32 %v5524, %v5881
      %v5931 = vadd.f32 %v5525, %v5884
      %v5932 = vadd.f32 %v5526, %v5887
      %v5933 = vadd.f32 %v5527, %v5890
      %v5934 = vadd.f32 %v5528, %v5893
      %v5935 = vadd.f32 %v5529, %v5896
      %v5936 = vadd.f32 %v5530, %v5899
      %v5937 = vadd.f32 %v5531, %v5902
      %v5938 = vadd.f32 %v5532, %v5905
      %s5939 = scalar_lea.vmem %s2, 28
      %v5940 = vld [vmem:[%s5939] sm:$0xf]
      %v5942 = vsel %vm684, %v5533, 0
      %v5945 = vsel %vm684, %v5534, 0
      %v5948 = vsel %vm684, %v5535, 0
      %v5951 = vsel %vm684, %v5536, 0
      %v5954 = vsel %vm684, %v5537, 0
      %v5957 = vsel %vm684, %v5538, 0
      %v5960 = vsel %vm684, %v5539, 0
      %v5963 = vsel %vm684, %v5540, 0
      %v5966 = vsel %vm684, %v5541, 0
      %v5969 = vsel %vm684, %v5542, 0
      %v5972 = vsel %vm684, %v5543, 0
      %v5975 = vsel %vm684, %v5544, 0
      %v5978 = vsel %vm684, %v5545, 0
      %v5981 = vsel %vm684, %v5546, 0
      %v5984 = vsel %vm684, %v5547, 0
      %v5987 = vsel %vm684, %v5548, 0
      %v5990 = vsel %vm684, %v5549, 0
      %v5993 = vsel %vm684, %v5550, 0
      %v5996 = vsel %vm684, %v5551, 0
      %v5999 = vsel %vm684, %v5552, 0
      %v6002 = vsel %vm684, %v5553, 0
      %v6005 = vsel %vm684, %v5554, 0
      %v6008 = vsel %vm684, %v5555, 0
      %v6011 = vsel %vm684, %v5556, 0
      %v6014 = vsel %vm684, %v5557, 0
      %v6017 = vsel %vm684, %v5558, 0
      %v6020 = vsel %vm684, %v5559, 0
      %v6023 = vsel %vm684, %v5560, 0
      %v6026 = vsel %vm684, %v5561, 0
      %v6029 = vsel %vm684, %v5562, 0
      %v6032 = vsel %vm684, %v5563, 0
      %v6035 = vsel %vm684, %v5564, 0
      %v6038 = vsel %vm1112, %v5940, 0
      %6040 = vmatpush.msra.mxu0 0.0
      %6041 = vmatpush.msra.mxu0 0.0
      %6042 = vmatpush.msra.mxu0 0.0
      %6043 = vmatpush.msra.mxu0 0.0
      %6044 = vmatpush.msra.mxu0 0.0
      %6045 = vmatpush.msra.mxu0 0.0
      %6046 = vmatpush.msra.mxu0 0.0
      %6047 = vmatpush.msra.mxu0 0.0
      %6048 = vmatpush.msra.mxu0 0.0
      %6049 = vmatpush.msra.mxu0 0.0
      %6050 = vmatpush.msra.mxu0 0.0
      %6051 = vmatpush.msra.mxu0 0.0
      %6052 = vmatpush.msra.mxu0 0.0
      %6053 = vmatpush.msra.mxu0 0.0
      %6054 = vmatpush.msra.mxu0 0.0
      %6055 = vmatpush.msra.mxu0 %v6038
      %6056 = vmatmul.f32.gmra.mxu0 %v5942
      %v6057 = vpop.f32.mrf.mxu0
      %v6058 = vadd.f32 0.0, %v6057
      %6059 = vmatmul.f32.gmra.mxu0 %v5945
      %v6060 = vpop.f32.mrf.mxu0
      %v6061 = vadd.f32 0.0, %v6060
      %6062 = vmatmul.f32.gmra.mxu0 %v5948
      %v6063 = vpop.f32.mrf.mxu0
      %v6064 = vadd.f32 0.0, %v6063
      %6065 = vmatmul.f32.gmra.mxu0 %v5951
      %v6066 = vpop.f32.mrf.mxu0
      %v6067 = vadd.f32 0.0, %v6066
      %6068 = vmatmul.f32.gmra.mxu0 %v5954
      %v6069 = vpop.f32.mrf.mxu0
      %v6070 = vadd.f32 0.0, %v6069
      %6071 = vmatmul.f32.gmra.mxu0 %v5957
      %v6072 = vpop.f32.mrf.mxu0
      %v6073 = vadd.f32 0.0, %v6072
      %6074 = vmatmul.f32.gmra.mxu0 %v5960
      %v6075 = vpop.f32.mrf.mxu0
      %v6076 = vadd.f32 0.0, %v6075
      %6077 = vmatmul.f32.gmra.mxu0 %v5963
      %v6078 = vpop.f32.mrf.mxu0
      %v6079 = vadd.f32 0.0, %v6078
      %6080 = vmatmul.f32.gmra.mxu0 %v5966
      %v6081 = vpop.f32.mrf.mxu0
      %v6082 = vadd.f32 0.0, %v6081
      %6083 = vmatmul.f32.gmra.mxu0 %v5969
      %v6084 = vpop.f32.mrf.mxu0
      %v6085 = vadd.f32 0.0, %v6084
      %6086 = vmatmul.f32.gmra.mxu0 %v5972
      %v6087 = vpop.f32.mrf.mxu0
      %v6088 = vadd.f32 0.0, %v6087
      %6089 = vmatmul.f32.gmra.mxu0 %v5975
      %v6090 = vpop.f32.mrf.mxu0
      %v6091 = vadd.f32 0.0, %v6090
      %6092 = vmatmul.f32.gmra.mxu0 %v5978
      %v6093 = vpop.f32.mrf.mxu0
      %v6094 = vadd.f32 0.0, %v6093
      %6095 = vmatmul.f32.gmra.mxu0 %v5981
      %v6096 = vpop.f32.mrf.mxu0
      %v6097 = vadd.f32 0.0, %v6096
      %6098 = vmatmul.f32.gmra.mxu0 %v5984
      %v6099 = vpop.f32.mrf.mxu0
      %v6100 = vadd.f32 0.0, %v6099
      %6101 = vmatmul.f32.gmra.mxu0 %v5987
      %v6102 = vpop.f32.mrf.mxu0
      %v6103 = vadd.f32 0.0, %v6102
      %6104 = vmatmul.f32.gmra.mxu0 %v5990
      %v6105 = vpop.f32.mrf.mxu0
      %v6106 = vadd.f32 0.0, %v6105
      %6107 = vmatmul.f32.gmra.mxu0 %v5993
      %v6108 = vpop.f32.mrf.mxu0
      %v6109 = vadd.f32 0.0, %v6108
      %6110 = vmatmul.f32.gmra.mxu0 %v5996
      %v6111 = vpop.f32.mrf.mxu0
      %v6112 = vadd.f32 0.0, %v6111
      %6113 = vmatmul.f32.gmra.mxu0 %v5999
      %v6114 = vpop.f32.mrf.mxu0
      %v6115 = vadd.f32 0.0, %v6114
      %6116 = vmatmul.f32.gmra.mxu0 %v6002
      %v6117 = vpop.f32.mrf.mxu0
      %v6118 = vadd.f32 0.0, %v6117
      %6119 = vmatmul.f32.gmra.mxu0 %v6005
      %v6120 = vpop.f32.mrf.mxu0
      %v6121 = vadd.f32 0.0, %v6120
      %6122 = vmatmul.f32.gmra.mxu0 %v6008
      %v6123 = vpop.f32.mrf.mxu0
      %v6124 = vadd.f32 0.0, %v6123
      %6125 = vmatmul.f32.gmra.mxu0 %v6011
      %v6126 = vpop.f32.mrf.mxu0
      %v6127 = vadd.f32 0.0, %v6126
      %6128 = vmatmul.f32.gmra.mxu0 %v6014
      %v6129 = vpop.f32.mrf.mxu0
      %v6130 = vadd.f32 0.0, %v6129
      %6131 = vmatmul.f32.gmra.mxu0 %v6017
      %v6132 = vpop.f32.mrf.mxu0
      %v6133 = vadd.f32 0.0, %v6132
      %6134 = vmatmul.f32.gmra.mxu0 %v6020
      %v6135 = vpop.f32.mrf.mxu0
      %v6136 = vadd.f32 0.0, %v6135
      %6137 = vmatmul.f32.gmra.mxu0 %v6023
      %v6138 = vpop.f32.mrf.mxu0
      %v6139 = vadd.f32 0.0, %v6138
      %6140 = vmatmul.f32.gmra.mxu0 %v6026
      %v6141 = vpop.f32.mrf.mxu0
      %v6142 = vadd.f32 0.0, %v6141
      %6143 = vmatmul.f32.gmra.mxu0 %v6029
      %v6144 = vpop.f32.mrf.mxu0
      %v6145 = vadd.f32 0.0, %v6144
      %6146 = vmatmul.f32.gmra.mxu0 %v6032
      %v6147 = vpop.f32.mrf.mxu0
      %v6148 = vadd.f32 0.0, %v6147
      %6149 = vmatmul.f32.gmra.mxu0 %v6035
      %v6150 = vpop.f32.mrf.mxu0
      %v6151 = vadd.f32 0.0, %v6150
      %6152 = vdwg.mxu0
      %v6153 = vadd.f32 %v5907, %v6058
      %v6154 = vadd.f32 %v5908, %v6061
      %v6155 = vadd.f32 %v5909, %v6064
      %v6156 = vadd.f32 %v5910, %v6067
      %v6157 = vadd.f32 %v5911, %v6070
      %v6158 = vadd.f32 %v5912, %v6073
      %v6159 = vadd.f32 %v5913, %v6076
      %v6160 = vadd.f32 %v5914, %v6079
      %v6161 = vadd.f32 %v5915, %v6082
      %v6162 = vadd.f32 %v5916, %v6085
      %v6163 = vadd.f32 %v5917, %v6088
      %v6164 = vadd.f32 %v5918, %v6091
      %v6165 = vadd.f32 %v5919, %v6094
      %v6166 = vadd.f32 %v5920, %v6097
      %v6167 = vadd.f32 %v5921, %v6100
      %v6168 = vadd.f32 %v5922, %v6103
      %v6169 = vadd.f32 %v5923, %v6106
      %v6170 = vadd.f32 %v5924, %v6109
      %v6171 = vadd.f32 %v5925, %v6112
      %v6172 = vadd.f32 %v5926, %v6115
      %v6173 = vadd.f32 %v5927, %v6118
      %v6174 = vadd.f32 %v5928, %v6121
      %v6175 = vadd.f32 %v5929, %v6124
      %v6176 = vadd.f32 %v5930, %v6127
      %v6177 = vadd.f32 %v5931, %v6130
      %v6178 = vadd.f32 %v5932, %v6133
      %v6179 = vadd.f32 %v5933, %v6136
      %v6180 = vadd.f32 %v5934, %v6139
      %v6181 = vadd.f32 %v5935, %v6142
      %v6182 = vadd.f32 %v5936, %v6145
      %v6183 = vadd.f32 %v5937, %v6148
      %v6184 = vadd.f32 %v5938, %v6151
      %s6185 = scalar_lea.vmem %s2, 32
      %v6186 = vld [vmem:[%s6185] sm:$0xf]
      %v6188 = vsel %vm684, %v5661, 0
      %v6191 = vsel %vm684, %v5662, 0
      %v6194 = vsel %vm684, %v5663, 0
      %v6197 = vsel %vm684, %v5664, 0
      %v6200 = vsel %vm684, %v5665, 0
      %v6203 = vsel %vm684, %v5666, 0
      %v6206 = vsel %vm684, %v5667, 0
      %v6209 = vsel %vm684, %v5668, 0
      %v6212 = vsel %vm684, %v5669, 0
      %v6215 = vsel %vm684, %v5670, 0
      %v6218 = vsel %vm684, %v5671, 0
      %v6221 = vsel %vm684, %v5672, 0
      %v6224 = vsel %vm684, %v5673, 0
      %v6227 = vsel %vm684, %v5674, 0
      %v6230 = vsel %vm684, %v5675, 0
      %v6233 = vsel %vm684, %v5676, 0
      %v6236 = vsel %vm684, %v5677, 0
      %v6239 = vsel %vm684, %v5678, 0
      %v6242 = vsel %vm684, %v5679, 0
      %v6245 = vsel %vm684, %v5680, 0
      %v6248 = vsel %vm684, %v5681, 0
      %v6251 = vsel %vm684, %v5682, 0
      %v6254 = vsel %vm684, %v5683, 0
      %v6257 = vsel %vm684, %v5684, 0
      %v6260 = vsel %vm684, %v5685, 0
      %v6263 = vsel %vm684, %v5686, 0
      %v6266 = vsel %vm684, %v5687, 0
      %v6269 = vsel %vm684, %v5688, 0
      %v6272 = vsel %vm684, %v5689, 0
      %v6275 = vsel %vm684, %v5690, 0
      %v6278 = vsel %vm684, %v5691, 0
      %v6281 = vsel %vm684, %v5692, 0
      %v6284 = vsel %vm1112, %v6186, 0
      %6286 = vmatpush.msra.mxu0 0.0
      %6287 = vmatpush.msra.mxu0 0.0
      %6288 = vmatpush.msra.mxu0 0.0
      %6289 = vmatpush.msra.mxu0 0.0
      %6290 = vmatpush.msra.mxu0 0.0
      %6291 = vmatpush.msra.mxu0 0.0
      %6292 = vmatpush.msra.mxu0 0.0
      %6293 = vmatpush.msra.mxu0 0.0
      %6294 = vmatpush.msra.mxu0 0.0
      %6295 = vmatpush.msra.mxu0 0.0
      %6296 = vmatpush.msra.mxu0 0.0
      %6297 = vmatpush.msra.mxu0 0.0
      %6298 = vmatpush.msra.mxu0 0.0
      %6299 = vmatpush.msra.mxu0 0.0
      %6300 = vmatpush.msra.mxu0 0.0
      %6301 = vmatpush.msra.mxu0 %v6284
      %6302 = vmatmul.f32.gmra.mxu0 %v6188
      %v6303 = vpop.f32.mrf.mxu0
      %v6304 = vadd.f32 0.0, %v6303
      %6305 = vmatmul.f32.gmra.mxu0 %v6191
      %v6306 = vpop.f32.mrf.mxu0
      %v6307 = vadd.f32 0.0, %v6306
      %6308 = vmatmul.f32.gmra.mxu0 %v6194
      %v6309 = vpop.f32.mrf.mxu0
      %v6310 = vadd.f32 0.0, %v6309
      %6311 = vmatmul.f32.gmra.mxu0 %v6197
      %v6312 = vpop.f32.mrf.mxu0
      %v6313 = vadd.f32 0.0, %v6312
      %6314 = vmatmul.f32.gmra.mxu0 %v6200
      %v6315 = vpop.f32.mrf.mxu0
      %v6316 = vadd.f32 0.0, %v6315
      %6317 = vmatmul.f32.gmra.mxu0 %v6203
      %v6318 = vpop.f32.mrf.mxu0
      %v6319 = vadd.f32 0.0, %v6318
      %6320 = vmatmul.f32.gmra.mxu0 %v6206
      %v6321 = vpop.f32.mrf.mxu0
      %v6322 = vadd.f32 0.0, %v6321
      %6323 = vmatmul.f32.gmra.mxu0 %v6209
      %v6324 = vpop.f32.mrf.mxu0
      %v6325 = vadd.f32 0.0, %v6324
      %6326 = vmatmul.f32.gmra.mxu0 %v6212
      %v6327 = vpop.f32.mrf.mxu0
      %v6328 = vadd.f32 0.0, %v6327
      %6329 = vmatmul.f32.gmra.mxu0 %v6215
      %v6330 = vpop.f32.mrf.mxu0
      %v6331 = vadd.f32 0.0, %v6330
      %6332 = vmatmul.f32.gmra.mxu0 %v6218
      %v6333 = vpop.f32.mrf.mxu0
      %v6334 = vadd.f32 0.0, %v6333
      %6335 = vmatmul.f32.gmra.mxu0 %v6221
      %v6336 = vpop.f32.mrf.mxu0
      %v6337 = vadd.f32 0.0, %v6336
      %6338 = vmatmul.f32.gmra.mxu0 %v6224
      %v6339 = vpop.f32.mrf.mxu0
      %v6340 = vadd.f32 0.0, %v6339
      %6341 = vmatmul.f32.gmra.mxu0 %v6227
      %v6342 = vpop.f32.mrf.mxu0
      %v6343 = vadd.f32 0.0, %v6342
      %6344 = vmatmul.f32.gmra.mxu0 %v6230
      %v6345 = vpop.f32.mrf.mxu0
      %v6346 = vadd.f32 0.0, %v6345
      %6347 = vmatmul.f32.gmra.mxu0 %v6233
      %v6348 = vpop.f32.mrf.mxu0
      %v6349 = vadd.f32 0.0, %v6348
      %6350 = vmatmul.f32.gmra.mxu0 %v6236
      %v6351 = vpop.f32.mrf.mxu0
      %v6352 = vadd.f32 0.0, %v6351
      %6353 = vmatmul.f32.gmra.mxu0 %v6239
      %v6354 = vpop.f32.mrf.mxu0
      %v6355 = vadd.f32 0.0, %v6354
      %6356 = vmatmul.f32.gmra.mxu0 %v6242
      %v6357 = vpop.f32.mrf.mxu0
      %v6358 = vadd.f32 0.0, %v6357
      %6359 = vmatmul.f32.gmra.mxu0 %v6245
      %v6360 = vpop.f32.mrf.mxu0
      %v6361 = vadd.f32 0.0, %v6360
      %6362 = vmatmul.f32.gmra.mxu0 %v6248
      %v6363 = vpop.f32.mrf.mxu0
      %v6364 = vadd.f32 0.0, %v6363
      %6365 = vmatmul.f32.gmra.mxu0 %v6251
      %v6366 = vpop.f32.mrf.mxu0
      %v6367 = vadd.f32 0.0, %v6366
      %6368 = vmatmul.f32.gmra.mxu0 %v6254
      %v6369 = vpop.f32.mrf.mxu0
      %v6370 = vadd.f32 0.0, %v6369
      %6371 = vmatmul.f32.gmra.mxu0 %v6257
      %v6372 = vpop.f32.mrf.mxu0
      %v6373 = vadd.f32 0.0, %v6372
      %6374 = vmatmul.f32.gmra.mxu0 %v6260
      %v6375 = vpop.f32.mrf.mxu0
      %v6376 = vadd.f32 0.0, %v6375
      %6377 = vmatmul.f32.gmra.mxu0 %v6263
      %v6378 = vpop.f32.mrf.mxu0
      %v6379 = vadd.f32 0.0, %v6378
      %6380 = vmatmul.f32.gmra.mxu0 %v6266
      %v6381 = vpop.f32.mrf.mxu0
      %v6382 = vadd.f32 0.0, %v6381
      %6383 = vmatmul.f32.gmra.mxu0 %v6269
      %v6384 = vpop.f32.mrf.mxu0
      %v6385 = vadd.f32 0.0, %v6384
      %6386 = vmatmul.f32.gmra.mxu0 %v6272
      %v6387 = vpop.f32.mrf.mxu0
      %v6388 = vadd.f32 0.0, %v6387
      %6389 = vmatmul.f32.gmra.mxu0 %v6275
      %v6390 = vpop.f32.mrf.mxu0
      %v6391 = vadd.f32 0.0, %v6390
      %6392 = vmatmul.f32.gmra.mxu0 %v6278
      %v6393 = vpop.f32.mrf.mxu0
      %v6394 = vadd.f32 0.0, %v6393
      %6395 = vmatmul.f32.gmra.mxu0 %v6281
      %v6396 = vpop.f32.mrf.mxu0
      %v6397 = vadd.f32 0.0, %v6396
      %6398 = vdwg.mxu0
      %v6399 = vadd.f32 %v6153, %v6304
      %v6400 = vadd.f32 %v6154, %v6307
      %v6401 = vadd.f32 %v6155, %v6310
      %v6402 = vadd.f32 %v6156, %v6313
      %v6403 = vadd.f32 %v6157, %v6316
      %v6404 = vadd.f32 %v6158, %v6319
      %v6405 = vadd.f32 %v6159, %v6322
      %v6406 = vadd.f32 %v6160, %v6325
      %v6407 = vadd.f32 %v6161, %v6328
      %v6408 = vadd.f32 %v6162, %v6331
      %v6409 = vadd.f32 %v6163, %v6334
      %v6410 = vadd.f32 %v6164, %v6337
      %v6411 = vadd.f32 %v6165, %v6340
      %v6412 = vadd.f32 %v6166, %v6343
      %v6413 = vadd.f32 %v6167, %v6346
      %v6414 = vadd.f32 %v6168, %v6349
      %v6415 = vadd.f32 %v6169, %v6352
      %v6416 = vadd.f32 %v6170, %v6355
      %v6417 = vadd.f32 %v6171, %v6358
      %v6418 = vadd.f32 %v6172, %v6361
      %v6419 = vadd.f32 %v6173, %v6364
      %v6420 = vadd.f32 %v6174, %v6367
      %v6421 = vadd.f32 %v6175, %v6370
      %v6422 = vadd.f32 %v6176, %v6373
      %v6423 = vadd.f32 %v6177, %v6376
      %v6424 = vadd.f32 %v6178, %v6379
      %v6425 = vadd.f32 %v6179, %v6382
      %v6426 = vadd.f32 %v6180, %v6385
      %v6427 = vadd.f32 %v6181, %v6388
      %v6428 = vadd.f32 %v6182, %v6391
      %v6429 = vadd.f32 %v6183, %v6394
      %v6430 = vadd.f32 %v6184, %v6397
      %v6431 = vsel %vm684, %v6399, 0.0
      %v6432 = vsel %vm684, %v6400, 0.0
      %v6433 = vadd.f32 %v6431, %v6432
      %v6434 = vsel %vm684, %v6401, 0.0
      %v6435 = vadd.f32 %v6433, %v6434
      %v6436 = vsel %vm684, %v6402, 0.0
      %v6437 = vadd.f32 %v6435, %v6436
      %v6438 = vsel %vm684, %v6403, 0.0
      %v6439 = vadd.f32 %v6437, %v6438
      %v6440 = vsel %vm684, %v6404, 0.0
      %v6441 = vadd.f32 %v6439, %v6440
      %v6442 = vsel %vm684, %v6405, 0.0
      %v6443 = vadd.f32 %v6441, %v6442
      %v6444 = vsel %vm684, %v6406, 0.0
      %v6445 = vadd.f32 %v6443, %v6444
      %v6446 = vsel %vm684, %v6407, 0.0
      %v6447 = vadd.f32 %v6445, %v6446
      %v6448 = vsel %vm684, %v6408, 0.0
      %v6449 = vadd.f32 %v6447, %v6448
      %v6450 = vsel %vm684, %v6409, 0.0
      %v6451 = vadd.f32 %v6449, %v6450
      %v6452 = vsel %vm684, %v6410, 0.0
      %v6453 = vadd.f32 %v6451, %v6452
      %v6454 = vsel %vm684, %v6411, 0.0
      %v6455 = vadd.f32 %v6453, %v6454
      %v6456 = vsel %vm684, %v6412, 0.0
      %v6457 = vadd.f32 %v6455, %v6456
      %v6458 = vsel %vm684, %v6413, 0.0
      %v6459 = vadd.f32 %v6457, %v6458
      %v6460 = vsel %vm684, %v6414, 0.0
      %v6461 = vadd.f32 %v6459, %v6460
      %v6462 = vsel %vm684, %v6415, 0.0
      %v6463 = vadd.f32 %v6461, %v6462
      %v6464 = vsel %vm684, %v6416, 0.0
      %v6465 = vadd.f32 %v6463, %v6464
      %v6466 = vsel %vm684, %v6417, 0.0
      %v6467 = vadd.f32 %v6465, %v6466
      %v6468 = vsel %vm684, %v6418, 0.0
      %v6469 = vadd.f32 %v6467, %v6468
      %v6470 = vsel %vm684, %v6419, 0.0
      %v6471 = vadd.f32 %v6469, %v6470
      %v6472 = vsel %vm684, %v6420, 0.0
      %v6473 = vadd.f32 %v6471, %v6472
      %v6474 = vsel %vm684, %v6421, 0.0
      %v6475 = vadd.f32 %v6473, %v6474
      %v6476 = vsel %vm684, %v6422, 0.0
      %v6477 = vadd.f32 %v6475, %v6476
      %v6478 = vsel %vm684, %v6423, 0.0
      %v6479 = vadd.f32 %v6477, %v6478
      %v6480 = vsel %vm684, %v6424, 0.0
      %v6481 = vadd.f32 %v6479, %v6480
      %v6482 = vsel %vm684, %v6425, 0.0
      %v6483 = vadd.f32 %v6481, %v6482
      %v6484 = vsel %vm684, %v6426, 0.0
      %v6485 = vadd.f32 %v6483, %v6484
      %v6486 = vsel %vm684, %v6427, 0.0
      %v6487 = vadd.f32 %v6485, %v6486
      %v6488 = vsel %vm684, %v6428, 0.0
      %v6489 = vadd.f32 %v6487, %v6488
      %v6490 = vsel %vm684, %v6429, 0.0
      %v6491 = vadd.f32 %v6489, %v6490
      %v6492 = vsel %vm684, %v6430, 0.0
      %v6493 = vadd.f32 %v6491, %v6492
      %v6494 = vrot.slane %v6493, 4
      %v6495 = vadd.f32 %v6493, %v6494
      %v6496 = vrot.slane %v6495, 2
      %v6497 = vadd.f32 %v6495, %v6496
      %v6498 = vrot.slane %v6497, 1
      %v6499 = vadd.f32 %v6497, %v6498
      %v6500 = vmul.f32 %v6499, 0.00390625
      %v6501 = vsub.f32 %v6399, %v6500
      %v6502 = vsub.f32 %v6400, %v6500
      %v6503 = vsub.f32 %v6401, %v6500
      %v6504 = vsub.f32 %v6402, %v6500
      %v6505 = vsub.f32 %v6403, %v6500
      %v6506 = vsub.f32 %v6404, %v6500
      %v6507 = vsub.f32 %v6405, %v6500
      %v6508 = vsub.f32 %v6406, %v6500
      %v6509 = vsub.f32 %v6407, %v6500
      %v6510 = vsub.f32 %v6408, %v6500
      %v6511 = vsub.f32 %v6409, %v6500
      %v6512 = vsub.f32 %v6410, %v6500
      %v6513 = vsub.f32 %v6411, %v6500
      %v6514 = vsub.f32 %v6412, %v6500
      %v6515 = vsub.f32 %v6413, %v6500
      %v6516 = vsub.f32 %v6414, %v6500
      %v6517 = vsub.f32 %v6415, %v6500
      %v6518 = vsub.f32 %v6416, %v6500
      %v6519 = vsub.f32 %v6417, %v6500
      %v6520 = vsub.f32 %v6418, %v6500
      %v6521 = vsub.f32 %v6419, %v6500
      %v6522 = vsub.f32 %v6420, %v6500
      %v6523 = vsub.f32 %v6421, %v6500
      %v6524 = vsub.f32 %v6422, %v6500
      %v6525 = vsub.f32 %v6423, %v6500
      %v6526 = vsub.f32 %v6424, %v6500
      %v6527 = vsub.f32 %v6425, %v6500
      %v6528 = vsub.f32 %v6426, %v6500
      %v6529 = vsub.f32 %v6427, %v6500
      %v6530 = vsub.f32 %v6428, %v6500
      %v6531 = vsub.f32 %v6429, %v6500
      %v6532 = vsub.f32 %v6430, %v6500
      %v6533 = vmul.f32 %v6501, %v6501
      %v6534 = vmul.f32 %v6502, %v6502
      %v6535 = vmul.f32 %v6503, %v6503
      %v6536 = vmul.f32 %v6504, %v6504
      %v6537 = vmul.f32 %v6505, %v6505
      %v6538 = vmul.f32 %v6506, %v6506
      %v6539 = vmul.f32 %v6507, %v6507
      %v6540 = vmul.f32 %v6508, %v6508
      %v6541 = vmul.f32 %v6509, %v6509
      %v6542 = vmul.f32 %v6510, %v6510
      %v6543 = vmul.f32 %v6511, %v6511
      %v6544 = vmul.f32 %v6512, %v6512
      %v6545 = vmul.f32 %v6513, %v6513
      %v6546 = vmul.f32 %v6514, %v6514
      %v6547 = vmul.f32 %v6515, %v6515
      %v6548 = vmul.f32 %v6516, %v6516
      %v6549 = vmul.f32 %v6517, %v6517
      %v6550 = vmul.f32 %v6518, %v6518
      %v6551 = vmul.f32 %v6519, %v6519
      %v6552 = vmul.f32 %v6520, %v6520
      %v6553 = vmul.f32 %v6521, %v6521
      %v6554 = vmul.f32 %v6522, %v6522
      %v6555 = vmul.f32 %v6523, %v6523
      %v6556 = vmul.f32 %v6524, %v6524
      %v6557 = vmul.f32 %v6525, %v6525
      %v6558 = vmul.f32 %v6526, %v6526
      %v6559 = vmul.f32 %v6527, %v6527
      %v6560 = vmul.f32 %v6528, %v6528
      %v6561 = vmul.f32 %v6529, %v6529
      %v6562 = vmul.f32 %v6530, %v6530
      %v6563 = vmul.f32 %v6531, %v6531
      %v6564 = vmul.f32 %v6532, %v6532
      %v6565 = vsel %vm684, %v6533, 0.0
      %v6566 = vsel %vm684, %v6534, 0.0
      %v6567 = vadd.f32 %v6565, %v6566
      %v6568 = vsel %vm684, %v6535, 0.0
      %v6569 = vadd.f32 %v6567, %v6568
      %v6570 = vsel %vm684, %v6536, 0.0
      %v6571 = vadd.f32 %v6569, %v6570
      %v6572 = vsel %vm684, %v6537, 0.0
      %v6573 = vadd.f32 %v6571, %v6572
      %v6574 = vsel %vm684, %v6538, 0.0
      %v6575 = vadd.f32 %v6573, %v6574
      %v6576 = vsel %vm684, %v6539, 0.0
      %v6577 = vadd.f32 %v6575, %v6576
      %v6578 = vsel %vm684, %v6540, 0.0
      %v6579 = vadd.f32 %v6577, %v6578
      %v6580 = vsel %vm684, %v6541, 0.0
      %v6581 = vadd.f32 %v6579, %v6580
      %v6582 = vsel %vm684, %v6542, 0.0
      %v6583 = vadd.f32 %v6581, %v6582
      %v6584 = vsel %vm684, %v6543, 0.0
      %v6585 = vadd.f32 %v6583, %v6584
      %v6586 = vsel %vm684, %v6544, 0.0
      %v6587 = vadd.f32 %v6585, %v6586
      %v6588 = vsel %vm684, %v6545, 0.0
      %v6589 = vadd.f32 %v6587, %v6588
      %v6590 = vsel %vm684, %v6546, 0.0
      %v6591 = vadd.f32 %v6589, %v6590
      %v6592 = vsel %vm684, %v6547, 0.0
      %v6593 = vadd.f32 %v6591, %v6592
      %v6594 = vsel %vm684, %v6548, 0.0
      %v6595 = vadd.f32 %v6593, %v6594
      %v6596 = vsel %vm684, %v6549, 0.0
      %v6597 = vadd.f32 %v6595, %v6596
      %v6598 = vsel %vm684, %v6550, 0.0
      %v6599 = vadd.f32 %v6597, %v6598
      %v6600 = vsel %vm684, %v6551, 0.0
      %v6601 = vadd.f32 %v6599, %v6600
      %v6602 = vsel %vm684, %v6552, 0.0
      %v6603 = vadd.f32 %v6601, %v6602
      %v6604 = vsel %vm684, %v6553, 0.0
      %v6605 = vadd.f32 %v6603, %v6604
      %v6606 = vsel %vm684, %v6554, 0.0
      %v6607 = vadd.f32 %v6605, %v6606
      %v6608 = vsel %vm684, %v6555, 0.0
      %v6609 = vadd.f32 %v6607, %v6608
      %v6610 = vsel %vm684, %v6556, 0.0
      %v6611 = vadd.f32 %v6609, %v6610
      %v6612 = vsel %vm684, %v6557, 0.0
      %v6613 = vadd.f32 %v6611, %v6612
      %v6614 = vsel %vm684, %v6558, 0.0
      %v6615 = vadd.f32 %v6613, %v6614
      %v6616 = vsel %vm684, %v6559, 0.0
      %v6617 = vadd.f32 %v6615, %v6616
      %v6618 = vsel %vm684, %v6560, 0.0
      %v6619 = vadd.f32 %v6617, %v6618
      %v6620 = vsel %vm684, %v6561, 0.0
      %v6621 = vadd.f32 %v6619, %v6620
      %v6622 = vsel %vm684, %v6562, 0.0
      %v6623 = vadd.f32 %v6621, %v6622
      %v6624 = vsel %vm684, %v6563, 0.0
      %v6625 = vadd.f32 %v6623, %v6624
      %v6626 = vsel %vm684, %v6564, 0.0
      %v6627 = vadd.f32 %v6625, %v6626
      %v6628 = vrot.slane %v6627, 4
      %v6629 = vadd.f32 %v6627, %v6628
      %v6630 = vrot.slane %v6629, 2
      %v6631 = vadd.f32 %v6629, %v6630
      %v6632 = vrot.slane %v6631, 1
      %v6633 = vadd.f32 %v6631, %v6632
      %v6634 = vmul.f32 %v6633, 0.00390625
      %v6635 = vadd.f32 %v6634, 1e-05
      %v6636 = vrsqrt.pop %v6635
      %v6637 = vmul.f32 %v6636, %v6635
      %v6638 = vmul.f32 %v6637, %v6636
      %v6639 = vmul.f32 0.5, %v6638
      %v6640 = vsub.f32 1.5, %v6639
      %v6641 = vmul.f32 %v6636, %v6640
      %vm6642 = vweird.f32 %v6635
      %vm6643 = vweird.f32 %v6636
      %vm6644 = vmor %vm6642, %vm6643
      %v6645 = vsel %vm6644, %v6636, %v6641
      %v6646 = vmul.f32 %v6501, %v6645
      %v6647 = vmul.f32 %v6502, %v6645
      %v6648 = vmul.f32 %v6503, %v6645
      %v6649 = vmul.f32 %v6504, %v6645
      %v6650 = vmul.f32 %v6505, %v6645
      %v6651 = vmul.f32 %v6506, %v6645
      %v6652 = vmul.f32 %v6507, %v6645
      %v6653 = vmul.f32 %v6508, %v6645
      %v6654 = vmul.f32 %v6509, %v6645
      %v6655 = vmul.f32 %v6510, %v6645
      %v6656 = vmul.f32 %v6511, %v6645
      %v6657 = vmul.f32 %v6512, %v6645
      %v6658 = vmul.f32 %v6513, %v6645
      %v6659 = vmul.f32 %v6514, %v6645
      %v6660 = vmul.f32 %v6515, %v6645
      %v6661 = vmul.f32 %v6516, %v6645
      %v6662 = vmul.f32 %v6517, %v6645
      %v6663 = vmul.f32 %v6518, %v6645
      %v6664 = vmul.f32 %v6519, %v6645
      %v6665 = vmul.f32 %v6520, %v6645
      %v6666 = vmul.f32 %v6521, %v6645
      %v6667 = vmul.f32 %v6522, %v6645
      %v6668 = vmul.f32 %v6523, %v6645
      %v6669 = vmul.f32 %v6524, %v6645
      %v6670 = vmul.f32 %v6525, %v6645
      %v6671 = vmul.f32 %v6526, %v6645
      %v6672 = vmul.f32 %v6527, %v6645
      %v6673 = vmul.f32 %v6528, %v6645
      %v6674 = vmul.f32 %v6529, %v6645
      %v6675 = vmul.f32 %v6530, %v6645
      %v6676 = vmul.f32 %v6531, %v6645
      %v6677 = vmul.f32 %v6532, %v6645
      %v6678 = vmax.f32 %v6646, 0.0
      %v6679 = vmax.f32 %v6647, 0.0
      %v6680 = vmax.f32 %v6648, 0.0
      %v6681 = vmax.f32 %v6649, 0.0
      %v6682 = vmax.f32 %v6650, 0.0
      %v6683 = vmax.f32 %v6651, 0.0
      %v6684 = vmax.f32 %v6652, 0.0
      %v6685 = vmax.f32 %v6653, 0.0
      %v6686 = vmax.f32 %v6654, 0.0
      %v6687 = vmax.f32 %v6655, 0.0
      %v6688 = vmax.f32 %v6656, 0.0
      %v6689 = vmax.f32 %v6657, 0.0
      %v6690 = vmax.f32 %v6658, 0.0
      %v6691 = vmax.f32 %v6659, 0.0
      %v6692 = vmax.f32 %v6660, 0.0
      %v6693 = vmax.f32 %v6661, 0.0
      %v6694 = vmax.f32 %v6662, 0.0
      %v6695 = vmax.f32 %v6663, 0.0
      %v6696 = vmax.f32 %v6664, 0.0
      %v6697 = vmax.f32 %v6665, 0.0
      %v6698 = vmax.f32 %v6666, 0.0
      %v6699 = vmax.f32 %v6667, 0.0
      %v6700 = vmax.f32 %v6668, 0.0
      %v6701 = vmax.f32 %v6669, 0.0
      %v6702 = vmax.f32 %v6670, 0.0
      %v6703 = vmax.f32 %v6671, 0.0
      %v6704 = vmax.f32 %v6672, 0.0
      %v6705 = vmax.f32 %v6673, 0.0
      %v6706 = vmax.f32 %v6674, 0.0
      %v6707 = vmax.f32 %v6675, 0.0
      %v6708 = vmax.f32 %v6676, 0.0
      %v6709 = vmax.f32 %v6677, 0.0
      %v6710 = vadd.f32 %v652, %v6678
      %v6711 = vadd.f32 %v653, %v6679
      %v6712 = vadd.f32 %v654, %v6680
      %v6713 = vadd.f32 %v655, %v6681
      %v6714 = vadd.f32 %v656, %v6682
      %v6715 = vadd.f32 %v657, %v6683
      %v6716 = vadd.f32 %v658, %v6684
      %v6717 = vadd.f32 %v659, %v6685
      %v6718 = vadd.f32 %v660, %v6686
      %v6719 = vadd.f32 %v661, %v6687
      %v6720 = vadd.f32 %v662, %v6688
      %v6721 = vadd.f32 %v663, %v6689
      %v6722 = vadd.f32 %v664, %v6690
      %v6723 = vadd.f32 %v665, %v6691
      %v6724 = vadd.f32 %v666, %v6692
      %v6725 = vadd.f32 %v667, %v6693
      %v6726 = vadd.f32 %v668, %v6694
      %v6727 = vadd.f32 %v669, %v6695
      %v6728 = vadd.f32 %v670, %v6696
      %v6729 = vadd.f32 %v671, %v6697
      %v6730 = vadd.f32 %v672, %v6698
      %v6731 = vadd.f32 %v673, %v6699
      %v6732 = vadd.f32 %v674, %v6700
      %v6733 = vadd.f32 %v675, %v6701
      %v6734 = vadd.f32 %v676, %v6702
      %v6735 = vadd.f32 %v677, %v6703
      %v6736 = vadd.f32 %v678, %v6704
      %v6737 = vadd.f32 %v679, %v6705
      %v6738 = vadd.f32 %v680, %v6706
      %v6739 = vadd.f32 %v681, %v6707
      %v6740 = vadd.f32 %v682, %v6708
      %v6741 = vadd.f32 %v683, %v6709
      %6742 = vst.msk [vmem:[%s170] sm:$0xff] %vm684, %v6710
      %6743 = vst.msk [vmem:[%s170 + $0x8] sm:$0xff] %vm684, %v6711
      %6744 = vst.msk [vmem:[%s170 + $0x10] sm:$0xff] %vm684, %v6712
      %6745 = vst.msk [vmem:[%s170 + $0x18] sm:$0xff] %vm684, %v6713
      %6746 = vst.msk [vmem:[%s170 + $0x20] sm:$0xff] %vm684, %v6714
      %6747 = vst.msk [vmem:[%s170 + $0x28] sm:$0xff] %vm684, %v6715
      %6748 = vst.msk [vmem:[%s170 + $0x30] sm:$0xff] %vm684, %v6716
      %6749 = vst.msk [vmem:[%s170 + $0x38] sm:$0xff] %vm684, %v6717
      %6750 = vst.msk [vmem:[%s170 + $0x40] sm:$0xff] %vm684, %v6718
      %6751 = vst.msk [vmem:[%s170 + $0x48] sm:$0xff] %vm684, %v6719
      %6752 = vst.msk [vmem:[%s170 + $0x50] sm:$0xff] %vm684, %v6720
      %6753 = vst.msk [vmem:[%s170 + $0x58] sm:$0xff] %vm684, %v6721
      %6754 = vst.msk [vmem:[%s170 + $0x60] sm:$0xff] %vm684, %v6722
      %6755 = vst.msk [vmem:[%s170 + $0x68] sm:$0xff] %vm684, %v6723
      %6756 = vst.msk [vmem:[%s170 + $0x70] sm:$0xff] %vm684, %v6724
      %6757 = vst.msk [vmem:[%s170 + $0x78] sm:$0xff] %vm684, %v6725
      %6758 = vst.msk [vmem:[%s170 + $0x80] sm:$0xff] %vm684, %v6726
      %6759 = vst.msk [vmem:[%s170 + $0x88] sm:$0xff] %vm684, %v6727
      %6760 = vst.msk [vmem:[%s170 + $0x90] sm:$0xff] %vm684, %v6728
      %6761 = vst.msk [vmem:[%s170 + $0x98] sm:$0xff] %vm684, %v6729
      %6762 = vst.msk [vmem:[%s170 + $0xa0] sm:$0xff] %vm684, %v6730
      %6763 = vst.msk [vmem:[%s170 + $0xa8] sm:$0xff] %vm684, %v6731
      %6764 = vst.msk [vmem:[%s170 + $0xb0] sm:$0xff] %vm684, %v6732
      %6765 = vst.msk [vmem:[%s170 + $0xb8] sm:$0xff] %vm684, %v6733
      %6766 = vst.msk [vmem:[%s170 + $0xc0] sm:$0xff] %vm684, %v6734
      %6767 = vst.msk [vmem:[%s170 + $0xc8] sm:$0xff] %vm684, %v6735
      %6768 = vst.msk [vmem:[%s170 + $0xd0] sm:$0xff] %vm684, %v6736
      %6769 = vst.msk [vmem:[%s170 + $0xd8] sm:$0xff] %vm684, %v6737
      %6770 = vst.msk [vmem:[%s170 + $0xe0] sm:$0xff] %vm684, %v6738
      %6771 = vst.msk [vmem:[%s170 + $0xe8] sm:$0xff] %vm684, %v6739
      %6772 = vst.msk [vmem:[%s170 + $0xf0] sm:$0xff] %vm684, %v6740
      %6773 = vst.msk [vmem:[%s170 + $0xf8] sm:$0xff] %vm684, %v6741
      %p6774 = scmp.lt.s32.totalorder %s14, 1
      %s6775 = scalar_select %p6774, %s14, 1
      %s6776 = smul.addr %s6775, 32
      %s6777 = smul.addr %s6776, 8
      %s6778 = scalar_lea.vmem %s3, %s6777
      // Predicated region
      $region33: #{residual_conv_block.1} parent=31 // pred_check
        %p6779 = pneg %p100
      $region34: #{residual_conv_block.1} parent=31 // pred_check_branch
        %6781 = sbr.rel (%p6779) target = $region36
      $region35: #{residual_conv_block.1} parent=31 // pred_region
        _
      $region36: #{residual_conv_block.1} parent=31 // pred_fallthru
        _
    $region32: #{residual_conv_block.1} parent=5 // pred_fallthru
      _
    %p6782 = scmp.le.s32.totalorder 2, %s9
    // Predicated region
    $region37: #{residual_conv_block.1} parent=5 // pred_check
      %p6783 = pneg %p6782
    $region38: #{residual_conv_block.1} parent=5 // pred_check_branch
      %6785 = sbr.rel (%p6783) target = $region40
    $region39: #{residual_conv_block.1} parent=5 // pred_region
      %s6786 = ssub.s32 %s9, 2
      // Predicated region
      $region41: #{residual_conv_block.1} parent=39 // pred_check
        %p6787 = pneg %p106
      $region42: #{residual_conv_block.1} parent=39 // pred_check_branch
        %6789 = sbr.rel (%p6787) target = $region44
      $region43: #{residual_conv_block.1} parent=39 // pred_region
        %p6790 = scmp.lt.s32.totalorder %s15, 1
        %s6791 = scalar_select %p6790, %s15, 1
        %s6792 = smul.addr %s6791, 32
        %s6793 = smul.addr %s6792, 8
        %s6794 = scalar_lea.vmem %s3, %s6793
      $region44: #{residual_conv_block.1} parent=39 // pred_fallthru
        _
    $region40: #{residual_conv_block.1} parent=5 // pred_fallthru
      _
  $region6: #{residual_conv_block.1} parent=0 // loop_footer
    %s13 = sadd.s32 1, %s9
  $region7: #{residual_conv_block.1} parent=0 // loop_footer_branch
    %8 = sbr.rel target = $region3
  $region8: #{residual_conv_block.1} parent=0 // loop_exit
    _

</llo_original>
